<compile_context>
chip_gen: v7x
topology: tpu7x:2x2x1
jax: 0.10.0
libtpu: 0.0.40
codegen_flags: <defaults>
</compile_context>

<pallas_src>
import math
from functools import partial

import jax
import jax.numpy as jnp
from jax.experimental import pallas as pl
from jax.experimental.pallas import tpu as pltpu

_LANE = 128
_TILE_BUDGET_BYTES = 4 * 1024 * 1024  # per-buffer output tile budget (keep <= 8 MiB)


def _gfft_kernel(x_ref, om_ref, out_ref, *, n_half, ch_chunk, include_original):
    # x_ref   : (TB, 1, THW)     current batch-group / spatial-tile of x
    # om_ref  : (1, F2, 1)       all Fourier frequencies, 2*pi already folded in
    # out_ref : (TB, C_out, THW) channels = [sin(F2), cos(F2)] (+ 8 copies of x)
    x = x_ref[...]                                   # (TB, 1, THW) f32
    tb, _, thw = x.shape
    for c in range(0, n_half, ch_chunk):
        om_c = om_ref[:, c:c + ch_chunk, :]          # (1, ch_chunk, 1)
        # Recompute the cheap multiply for each trig store so the
        # (TB, ch_chunk, THW) argument feeds sin/cos directly instead of
        # round-tripping a VMEM temp between the two stores.  Operand order is
        # commuted between the two uses as a best-effort CSE break; worst case
        # (if CSE merges) the temp is bounded to one small chunk.
        out_ref[:, c:c + ch_chunk, :] = jnp.sin(x * om_c).astype(out_ref.dtype)
        out_ref[:, n_half + c:n_half + c + ch_chunk, :] = (
            jnp.cos(om_c * x).astype(out_ref.dtype))
    if include_original:
        out_ref[:, 2 * n_half:, :] = jnp.broadcast_to(
            x, (tb, 8, thw)).astype(out_ref.dtype)


def _choose_tiles(B, C_out, HW):
    """Pick (TB, THW, grid_hw): lane tile (multiple of 128) + batch grouping."""
    hw128 = -(-HW // _LANE) * _LANE
    # Largest lane tile (multiple of 128) whose f32 output slab fits the budget at TB=1.
    lanes_budget = max(_LANE, (_TILE_BUDGET_BYTES // (C_out * 4 * _LANE)) * _LANE)
    thw = min(hw128, lanes_budget)
    grid_hw = pl.cdiv(HW, thw)
    tb = 1
    if grid_hw == 1 and B > 1:
        # Whole spatial extent fits one lane tile: group batch rows to amortize
        # the ~0.35us per-grid-step overhead.  No divisibility requirement (the
        # last batch block may be partial / masked), but cap TB so there are
        # >= 2 (ideally >= 4) grid steps for v7x's two TensorCores.
        max_tb = max(1, _TILE_BUDGET_BYTES // (C_out * thw * 4))
        tb = max(1, min(B, max_tb, pl.cdiv(B, 4)))
    return tb, thw, grid_hw


def gaussian_fourier_feature_transform(x_nchw, b_omegas, include_original=False,
                                       out_dtype=jnp.float32):
    """x_nchw: (B, 1, H, W) float. b_omegas: (F2,) float, F2 = n_fourier_feats // 2.

    Returns (B, 2*F2, H, W), or (B, 2*F2 + 8, H, W) if include_original.
    """
    B, C, H, W = x_nchw.shape
    assert C == 1, f"Expected input to have 1 channel, got {C}"
    F2 = int(b_omegas.shape[0])
    HW = H * W
    n_extra = 8 if include_original else 0
    C_out = 2 * F2 + n_extra

    # Keep channel-slice boundaries aligned to the sublane pack of out_dtype.
    ch_chunk = 16 if jnp.dtype(out_dtype).itemsize < 4 else 8
    assert F2 % ch_chunk == 0, (
        f"F2={F2} must be a multiple of {ch_chunk} for aligned channel stores")

    TB, THW, grid_hw = _choose_tiles(B, C_out, HW)
    grid = (pl.cdiv(B, TB), grid_hw)

    x_flat = x_nchw.reshape(B, 1, HW).astype(jnp.float32)
    # Fold 2*pi into the frequencies once, host-side.
    om2pi = (b_omegas.astype(jnp.float32) * jnp.float32(2.0 * math.pi)).reshape(1, F2, 1)

    out_flat = pl.pallas_call(
        partial(_gfft_kernel, n_half=F2, ch_chunk=ch_chunk,
                include_original=include_original),
        out_shape=jax.ShapeDtypeStruct((B, C_out, HW), out_dtype),
        grid_spec=pltpu.PrefetchScalarGridSpec(
            num_scalar_prefetch=0,
            grid=grid,
            in_specs=[
                pl.BlockSpec((TB, 1, THW), lambda i, j: (i, 0, j)),   # x tile
                pl.BlockSpec((1, F2, 1), lambda i, j: (0, 0, 0)),     # omegas (resident)
            ],
            out_specs=pl.BlockSpec((TB, C_out, THW), lambda i, j: (i, 0, j)),
        ),
        compiler_params=pltpu.CompilerParams(
            dimension_semantics=("parallel", "parallel"),
            vmem_limit_bytes=32 * 1024 * 1024),
    )(x_flat, om2pi)

    return out_flat.reshape(B, C_out, H, W)


def make_b_omegas(key, n_fourier_feats, scales):
    """Deterministic synthetic init matching the module's buffer construction."""
    n_scale_feats = n_fourier_feats // (2 * len(scales))
    assert n_scale_feats * 2 * len(scales) == n_fourier_feats
    keys = jax.random.split(key, len(scales))
    parts = [jax.random.normal(k, (n_scale_feats,), dtype=jnp.float32) * s
             for k, s in zip(keys, scales)]
    return jnp.concatenate(parts, axis=0)   # (n_fourier_feats // 2,)


if __name__ == "__main__":
    key = jax.random.PRNGKey(0)
    k_x, k_b = jax.random.split(key)

    B, C, H, W = 2, 1, 16, 16
    n_fourier_feats = 128
    scales = [0.01, 0.1, 1, 5, 10, 20, 50, 100]

    x = jax.random.normal(k_x, (B, C, H, W), dtype=jnp.float32)
    b_omegas = make_b_omegas(k_b, n_fourier_feats, scales)   # (64,)

    # Reference computed in the module's op order: (x * B) then * 2*pi.
    # The kernel folds 2*pi into the omegas; with scale=100 arguments, sin/cos
    # can only be accurate to ~ulp(arg), so a 5e-3 tolerance absorbs both the
    # reassociation and transcendental-implementation differences.
    x_omega_ref = (2.0 * math.pi) * (x * b_omegas.reshape(1, -1, 1, 1))
    sin_ref = jnp.sin(x_omega_ref)
    cos_ref = jnp.cos(x_omega_ref)

    # Case 1: include_original=False
    out = gaussian_fourier_feature_transform(x, b_omegas, include_original=False)
    out = jax.block_until_ready(out)
    ref = jnp.concatenate([sin_ref, cos_ref], axis=1)
    assert out.shape == (B, n_fourier_feats, H, W), out.shape
    assert jnp.allclose(out, ref, atol=5e-3), float(jnp.max(jnp.abs(out - ref)))

    # Case 2: include_original=True (fused inside the kernel)
    out2 = gaussian_fourier_feature_transform(x, b_omegas, include_original=True)
    out2 = jax.block_until_ready(out2)
    ref2 = jnp.concatenate([sin_ref, cos_ref] + 8 * [x], axis=1)
    assert out2.shape == (B, n_fourier_feats + 8, H, W), out2.shape
    assert jnp.allclose(out2, ref2, atol=5e-3), float(jnp.max(jnp.abs(out2 - ref2)))

    print("KERNEL_OK")
</pallas_src>

<mosaic_0001>
module attributes {stable_mosaic.version = 11 : i64} {
  func.func @_gfft_kernel(%arg0: i32, %arg1: i32, %arg2: memref<1x1x256xf32, #tpu.memory_space<vmem>>, %arg3: memref<1x64x1xf32, #tpu.memory_space<vmem>>, %arg4: memref<1x128x256xf32, #tpu.memory_space<vmem>>) attributes {dimension_semantics = [#tpu.dimension_semantics<parallel>, #tpu.dimension_semantics<parallel>], iteration_bounds = array<i64: 2, 1>, scalar_prefetch = 0 : i64, scratch_operands = 0 : i64, tpu.core_type = #tpu.core_type<tc>, window_params = [{transform_indices = @transform_0, window_bounds = array<i64: 1, 1, 256>}, {pipeline_mode = #tpu.pipeline_mode<synchronous>, transform_indices = @transform_1, window_bounds = array<i64: 1, 64, 1>}, {transform_indices = @transform_2, window_bounds = array<i64: 1, 128, 256>}]} {
    %c0 = arith.constant 0 : index
    %c0_0 = arith.constant 0 : index
    %c0_1 = arith.constant 0 : index
    %0 = vector.load %arg2[%c0, %c0_0, %c0_1] : memref<1x1x256xf32, #tpu.memory_space<vmem>>, vector<1x1x256xf32>
    %c0_2 = arith.constant 0 : index
    %c0_3 = arith.constant 0 : index
    %c0_4 = arith.constant 0 : index
    %1 = vector.load %arg3[%c0_2, %c0_3, %c0_4] : memref<1x64x1xf32, #tpu.memory_space<vmem>>, vector<1x8x1xf32>
    %2 = vector.broadcast %0 : vector<1x1x256xf32> to vector<1x8x256xf32>
    %3 = vector.broadcast %1 : vector<1x8x1xf32> to vector<1x8x256xf32>
    %4 = arith.mulf %2, %3 : vector<1x8x256xf32>
    %5 = math.sin %4 : vector<1x8x256xf32>
    %c0_5 = arith.constant 0 : index
    %c0_6 = arith.constant 0 : index
    %c0_7 = arith.constant 0 : index
    %6 = vector.load %arg4[%c0_5, %c0_6, %c0_7] : memref<1x128x256xf32, #tpu.memory_space<vmem>>, vector<1x8x256xf32>
    tpu.vector_store %arg4[%c0_5, %c0_6, %c0_7], %5 {strides = array<i32>} : memref<1x128x256xf32, #tpu.memory_space<vmem>>, vector<1x8x256xf32>,
    %7 = vector.broadcast %1 : vector<1x8x1xf32> to vector<1x8x256xf32>
    %8 = vector.broadcast %0 : vector<1x1x256xf32> to vector<1x8x256xf32>
    %9 = arith.mulf %7, %8 : vector<1x8x256xf32>
    %10 = math.cos %9 : vector<1x8x256xf32>
    %c0_8 = arith.constant 0 : index
    %c64 = arith.constant 64 : index
    %c0_9 = arith.constant 0 : index
    %11 = vector.load %arg4[%c0_8, %c64, %c0_9] : memref<1x128x256xf32, #tpu.memory_space<vmem>>, vector<1x8x256xf32>
    tpu.vector_store %arg4[%c0_8, %c64, %c0_9], %10 {strides = array<i32>} : memref<1x128x256xf32, #tpu.memory_space<vmem>>, vector<1x8x256xf32>,
    %c0_10 = arith.constant 0 : index
    %c8 = arith.constant 8 : index
    %c0_11 = arith.constant 0 : index
    %12 = vector.load %arg3[%c0_10, %c8, %c0_11] : memref<1x64x1xf32, #tpu.memory_space<vmem>>, vector<1x8x1xf32>
    %13 = vector.broadcast %0 : vector<1x1x256xf32> to vector<1x8x256xf32>
    %14 = vector.broadcast %12 : vector<1x8x1xf32> to vector<1x8x256xf32>
    %15 = arith.mulf %13, %14 : vector<1x8x256xf32>
    %16 = math.sin %15 : vector<1x8x256xf32>
    %c0_12 = arith.constant 0 : index
    %c8_13 = arith.constant 8 : index
    %c0_14 = arith.constant 0 : index
    %17 = vector.load %arg4[%c0_12, %c8_13, %c0_14] : memref<1x128x256xf32, #tpu.memory_space<vmem>>, vector<1x8x256xf32>
    tpu.vector_store %arg4[%c0_12, %c8_13, %c0_14], %16 {strides = array<i32>} : memref<1x128x256xf32, #tpu.memory_space<vmem>>, vector<1x8x256xf32>,
    %18 = vector.broadcast %12 : vector<1x8x1xf32> to vector<1x8x256xf32>
    %19 = vector.broadcast %0 : vector<1x1x256xf32> to vector<1x8x256xf32>
    %20 = arith.mulf %18, %19 : vector<1x8x256xf32>
    %21 = math.cos %20 : vector<1x8x256xf32>
    %c0_15 = arith.constant 0 : index
    %c72 = arith.constant 72 : index
    %c0_16 = arith.constant 0 : index
    %22 = vector.load %arg4[%c0_15, %c72, %c0_16] : memref<1x128x256xf32, #tpu.memory_space<vmem>>, vector<1x8x256xf32>
    tpu.vector_store %arg4[%c0_15, %c72, %c0_16], %21 {strides = array<i32>} : memref<1x128x256xf32, #tpu.memory_space<vmem>>, vector<1x8x256xf32>,
    %c0_17 = arith.constant 0 : index
    %c16 = arith.constant 16 : index
    %c0_18 = arith.constant 0 : index
    %23 = vector.load %arg3[%c0_17, %c16, %c0_18] : memref<1x64x1xf32, #tpu.memory_space<vmem>>, vector<1x8x1xf32>
    %24 = vector.broadcast %0 : vector<1x1x256xf32> to vector<1x8x256xf32>
    %25 = vector.broadcast %23 : vector<1x8x1xf32> to vector<1x8x256xf32>
    %26 = arith.mulf %24, %25 : vector<1x8x256xf32>
    %27 = math.sin %26 : vector<1x8x256xf32>
    %c0_19 = arith.constant 0 : index
    %c16_20 = arith.constant 16 : index
    %c0_21 = arith.constant 0 : index
    %28 = vector.load %arg4[%c0_19, %c16_20, %c0_21] : memref<1x128x256xf32, #tpu.memory_space<vmem>>, vector<1x8x256xf32>
    tpu.vector_store %arg4[%c0_19, %c16_20, %c0_21], %27 {strides = array<i32>} : memref<1x128x256xf32, #tpu.memory_space<vmem>>, vector<1x8x256xf32>,
    %29 = vector.broadcast %23 : vector<1x8x1xf32> to vector<1x8x256xf32>
    %30 = vector.broadcast %0 : vector<1x1x256xf32> to vector<1x8x256xf32>
    %31 = arith.mulf %29, %30 : vector<1x8x256xf32>
    %32 = math.cos %31 : vector<1x8x256xf32>
    %c0_22 = arith.constant 0 : index
    %c80 = arith.constant 80 : index
    %c0_23 = arith.constant 0 : index
    %33 = vector.load %arg4[%c0_22, %c80, %c0_23] : memref<1x128x256xf32, #tpu.memory_space<vmem>>, vector<1x8x256xf32>
    tpu.vector_store %arg4[%c0_22, %c80, %c0_23], %32 {strides = array<i32>} : memref<1x128x256xf32, #tpu.memory_space<vmem>>, vector<1x8x256xf32>,
    %c0_24 = arith.constant 0 : index
    %c24 = arith.constant 24 : index
    %c0_25 = arith.constant 0 : index
    %34 = vector.load %arg3[%c0_24, %c24, %c0_25] : memref<1x64x1xf32, #tpu.memory_space<vmem>>, vector<1x8x1xf32>
    %35 = vector.broadcast %0 : vector<1x1x256xf32> to vector<1x8x256xf32>
    %36 = vector.broadcast %34 : vector<1x8x1xf32> to vector<1x8x256xf32>
    %37 = arith.mulf %35, %36 : vector<1x8x256xf32>
    %38 = math.sin %37 : vector<1x8x256xf32>
    %c0_26 = arith.constant 0 : index
    %c24_27 = arith.constant 24 : index
    %c0_28 = arith.constant 0 : index
    %39 = vector.load %arg4[%c0_26, %c24_27, %c0_28] : memref<1x128x256xf32, #tpu.memory_space<vmem>>, vector<1x8x256xf32>
    tpu.vector_store %arg4[%c0_26, %c24_27, %c0_28], %38 {strides = array<i32>} : memref<1x128x256xf32, #tpu.memory_space<vmem>>, vector<1x8x256xf32>,
    %40 = vector.broadcast %34 : vector<1x8x1xf32> to vector<1x8x256xf32>
    %41 = vector.broadcast %0 : vector<1x1x256xf32> to vector<1x8x256xf32>
    %42 = arith.mulf %40, %41 : vector<1x8x256xf32>
    %43 = math.cos %42 : vector<1x8x256xf32>
    %c0_29 = arith.constant 0 : index
    %c88 = arith.constant 88 : index
    %c0_30 = arith.constant 0 : index
    %44 = vector.load %arg4[%c0_29, %c88, %c0_30] : memref<1x128x256xf32, #tpu.memory_space<vmem>>, vector<1x8x256xf32>
    tpu.vector_store %arg4[%c0_29, %c88, %c0_30], %43 {strides = array<i32>} : memref<1x128x256xf32, #tpu.memory_space<vmem>>, vector<1x8x256xf32>,
    %c0_31 = arith.constant 0 : index
    %c32 = arith.constant 32 : index
    %c0_32 = arith.constant 0 : index
    %45 = vector.load %arg3[%c0_31, %c32, %c0_32] : memref<1x64x1xf32, #tpu.memory_space<vmem>>, vector<1x8x1xf32>
    %46 = vector.broadcast %0 : vector<1x1x256xf32> to vector<1x8x256xf32>
    %47 = vector.broadcast %45 : vector<1x8x1xf32> to vector<1x8x256xf32>
    %48 = arith.mulf %46, %47 : vector<1x8x256xf32>
    %49 = math.sin %48 : vector<1x8x256xf32>
    %c0_33 = arith.constant 0 : index
    %c32_34 = arith.constant 32 : index
    %c0_35 = arith.constant 0 : index
    %50 = vector.load %arg4[%c0_33, %c32_34, %c0_35] : memref<1x128x256xf32, #tpu.memory_space<vmem>>, vector<1x8x256xf32>
    tpu.vector_store %arg4[%c0_33, %c32_34, %c0_35], %49 {strides = array<i32>} : memref<1x128x256xf32, #tpu.memory_space<vmem>>, vector<1x8x256xf32>,
    %51 = vector.broadcast %45 : vector<1x8x1xf32> to vector<1x8x256xf32>
    %52 = vector.broadcast %0 : vector<1x1x256xf32> to vector<1x8x256xf32>
    %53 = arith.mulf %51, %52 : vector<1x8x256xf32>
    %54 = math.cos %53 : vector<1x8x256xf32>
    %c0_36 = arith.constant 0 : index
    %c96 = arith.constant 96 : index
    %c0_37 = arith.constant 0 : index
    %55 = vector.load %arg4[%c0_36, %c96, %c0_37] : memref<1x128x256xf32, #tpu.memory_space<vmem>>, vector<1x8x256xf32>
    tpu.vector_store %arg4[%c0_36, %c96, %c0_37], %54 {strides = array<i32>} : memref<1x128x256xf32, #tpu.memory_space<vmem>>, vector<1x8x256xf32>,
    %c0_38 = arith.constant 0 : index
    %c40 = arith.constant 40 : index
    %c0_39 = arith.constant 0 : index
    %56 = vector.load %arg3[%c0_38, %c40, %c0_39] : memref<1x64x1xf32, #tpu.memory_space<vmem>>, vector<1x8x1xf32>
    %57 = vector.broadcast %0 : vector<1x1x256xf32> to vector<1x8x256xf32>
    %58 = vector.broadcast %56 : vector<1x8x1xf32> to vector<1x8x256xf32>
    %59 = arith.mulf %57, %58 : vector<1x8x256xf32>
    %60 = math.sin %59 : vector<1x8x256xf32>
    %c0_40 = arith.constant 0 : index
    %c40_41 = arith.constant 40 : index
    %c0_42 = arith.constant 0 : index
    %61 = vector.load %arg4[%c0_40, %c40_41, %c0_42] : memref<1x128x256xf32, #tpu.memory_space<vmem>>, vector<1x8x256xf32>
    tpu.vector_store %arg4[%c0_40, %c40_41, %c0_42], %60 {strides = array<i32>} : memref<1x128x256xf32, #tpu.memory_space<vmem>>, vector<1x8x256xf32>,
    %62 = vector.broadcast %56 : vector<1x8x1xf32> to vector<1x8x256xf32>
    %63 = vector.broadcast %0 : vector<1x1x256xf32> to vector<1x8x256xf32>
    %64 = arith.mulf %62, %63 : vector<1x8x256xf32>
    %65 = math.cos %64 : vector<1x8x256xf32>
    %c0_43 = arith.constant 0 : index
    %c104 = arith.constant 104 : index
    %c0_44 = arith.constant 0 : index
    %66 = vector.load %arg4[%c0_43, %c104, %c0_44] : memref<1x128x256xf32, #tpu.memory_space<vmem>>, vector<1x8x256xf32>
    tpu.vector_store %arg4[%c0_43, %c104, %c0_44], %65 {strides = array<i32>} : memref<1x128x256xf32, #tpu.memory_space<vmem>>, vector<1x8x256xf32>,
    %c0_45 = arith.constant 0 : index
    %c48 = arith.constant 48 : index
    %c0_46 = arith.constant 0 : index
    %67 = vector.load %arg3[%c0_45, %c48, %c0_46] : memref<1x64x1xf32, #tpu.memory_space<vmem>>, vector<1x8x1xf32>
    %68 = vector.broadcast %0 : vector<1x1x256xf32> to vector<1x8x256xf32>
    %69 = vector.broadcast %67 : vector<1x8x1xf32> to vector<1x8x256xf32>
    %70 = arith.mulf %68, %69 : vector<1x8x256xf32>
    %71 = math.sin %70 : vector<1x8x256xf32>
    %c0_47 = arith.constant 0 : index
    %c48_48 = arith.constant 48 : index
    %c0_49 = arith.constant 0 : index
    %72 = vector.load %arg4[%c0_47, %c48_48, %c0_49] : memref<1x128x256xf32, #tpu.memory_space<vmem>>, vector<1x8x256xf32>
    tpu.vector_store %arg4[%c0_47, %c48_48, %c0_49], %71 {strides = array<i32>} : memref<1x128x256xf32, #tpu.memory_space<vmem>>, vector<1x8x256xf32>,
    %73 = vector.broadcast %67 : vector<1x8x1xf32> to vector<1x8x256xf32>
    %74 = vector.broadcast %0 : vector<1x1x256xf32> to vector<1x8x256xf32>
    %75 = arith.mulf %73, %74 : vector<1x8x256xf32>
    %76 = math.cos %75 : vector<1x8x256xf32>
    %c0_50 = arith.constant 0 : index
    %c112 = arith.constant 112 : index
    %c0_51 = arith.constant 0 : index
    %77 = vector.load %arg4[%c0_50, %c112, %c0_51] : memref<1x128x256xf32, #tpu.memory_space<vmem>>, vector<1x8x256xf32>
    tpu.vector_store %arg4[%c0_50, %c112, %c0_51], %76 {strides = array<i32>} : memref<1x128x256xf32, #tpu.memory_space<vmem>>, vector<1x8x256xf32>,
    %c0_52 = arith.constant 0 : index
    %c56 = arith.constant 56 : index
    %c0_53 = arith.constant 0 : index
    %78 = vector.load %arg3[%c0_52, %c56, %c0_53] : memref<1x64x1xf32, #tpu.memory_space<vmem>>, vector<1x8x1xf32>
    %79 = vector.broadcast %0 : vector<1x1x256xf32> to vector<1x8x256xf32>
    %80 = vector.broadcast %78 : vector<1x8x1xf32> to vector<1x8x256xf32>
    %81 = arith.mulf %79, %80 : vector<1x8x256xf32>
    %82 = math.sin %81 : vector<1x8x256xf32>
    %c0_54 = arith.constant 0 : index
    %c56_55 = arith.constant 56 : index
    %c0_56 = arith.constant 0 : index
    %83 = vector.load %arg4[%c0_54, %c56_55, %c0_56] : memref<1x128x256xf32, #tpu.memory_space<vmem>>, vector<1x8x256xf32>
    tpu.vector_store %arg4[%c0_54, %c56_55, %c0_56], %82 {strides = array<i32>} : memref<1x128x256xf32, #tpu.memory_space<vmem>>, vector<1x8x256xf32>,
    %84 = vector.broadcast %78 : vector<1x8x1xf32> to vector<1x8x256xf32>
    %85 = vector.broadcast %0 : vector<1x1x256xf32> to vector<1x8x256xf32>
    %86 = arith.mulf %84, %85 : vector<1x8x256xf32>
    %87 = math.cos %86 : vector<1x8x256xf32>
    %c0_57 = arith.constant 0 : index
    %c120 = arith.constant 120 : index
    %c0_58 = arith.constant 0 : index
    %88 = vector.load %arg4[%c0_57, %c120, %c0_58] : memref<1x128x256xf32, #tpu.memory_space<vmem>>, vector<1x8x256xf32>
    tpu.vector_store %arg4[%c0_57, %c120, %c0_58], %87 {strides = array<i32>} : memref<1x128x256xf32, #tpu.memory_space<vmem>>, vector<1x8x256xf32>,
    return
  }
  func.func @transform_0(%arg0: i32, %arg1: i32) -> (i32, i32, i32) {
    %c0_i32 = arith.constant 0 : i32
    %c0_i32_0 = arith.constant 0 : i32
    return %arg0, %c0_i32, %arg1 : i32, i32, i32
  }
  func.func @transform_1(%arg0: i32, %arg1: i32) -> (i32, i32, i32) {
    %c0_i32 = arith.constant 0 : i32
    %c0_i32_0 = arith.constant 0 : i32
    %c0_i32_1 = arith.constant 0 : i32
    %c0_i32_2 = arith.constant 0 : i32
    return %c0_i32, %c0_i32_0, %c0_i32_1 : i32, i32, i32
  }
  func.func @transform_2(%arg0: i32, %arg1: i32) -> (i32, i32, i32) {
    %c0_i32 = arith.constant 0 : i32
    %c0_i32_0 = arith.constant 0 : i32
    return %arg0, %c0_i32, %arg1 : i32, i32, i32
  }
}

</mosaic_0001>

<llo_original>
// kernel: tpu_custom_call.1
$region0: #{tpu_custom_call.1}
  #allocation0 [shape = 'u32[]', space=smem, size = 0x4, offset = 0x4, fixed_abs, tag = 'smem constant byte address 0x4 - core index']
  #allocation1 [shape = 'u32[144,128]{1,0:T(1,128)}', space=vmem, size = 0x12000, scoped, tag = 'internal scratch']
  %s0 = inlined_call_operand.vmem [shape: f32[2,1,256], index: 0, kind: input, shape index: {}]
  %s1 = inlined_call_operand.vmem [shape: f32[1,64,1], index: 1, kind: input, shape index: {}]
  %s2 = inlined_call_operand.hbm [shape: f32[2,128,256], index: 2, kind: output, shape index: {}]
  %s3 = sld [smem:[#allocation0]]
  $region41: #{tpu_custom_call.1} parent=0
    _
  %s5 = ssub.s32 1, %s3
  %s6 = scalar_select 0, %s5, %s3
  $region1: #{tpu_custom_call.1} parent=0
    #allocation2 [shape = 'u8[262144]{0}', space=vmem, size = 0x40000, scoped, tag = 'output window, operand 0']
    #allocation3 [shape = 's32[2]{0}', space=sflag, size = 0x8, scoped, tag = 'scoped memory for tpu_custom_call.1']
    %7 = vsyncpa [#allocation3], 0
    %s8 = scalar_lea.sflag [#allocation3], 1
    %9 = vsyncpa %s8, 0
    loop: start=0, step=1, limit=4
    $region2: #{tpu_custom_call.1} parent=1 // loop_pre_header
      _
    $region3: #{tpu_custom_call.1} parent=1 // loop_header
      %s11 = sphi 0, %s15
      %p12 = scmp.ge.s32.totalorder %s11, 4
      %s18 = sphi 0, %s30
      %s19 = sphi 0, %s26
      %s20 = sphi 0, %s18
      %s21 = sphi 0, %s19
      %s22 = sphi 0, %s20
      %s23 = sphi 0, %s21
      %s35 = sphi 0, %s37
      %s38 = sphi 0, %s35
      %s39 = sphi 0, %s38
      %s55 = sphi 0, %s39
      %s59 = sphi 0, %s59
      %s61 = sphi 0, %s59
      %s62 = sphi 0, %s61
      %s76 = sphi 0, %s62
      %s84 = sphi 0, %s86
      %s87 = sphi 0, %s84
      %s88 = sphi 0, %s87
      %s104 = sphi 0, %s88
    $region4: #{tpu_custom_call.1} parent=1 // loop_header_branch
      %14 = sbr.rel (%p12) target = $region8
    $region5: #{tpu_custom_call.1} parent=1 // loop_body
      %s16 = ssub.s32 %s11, 1
      %s17 = ssub.s32 %s11, 2
      %s24 = sadd.s32 1, %s19
      %p25 = scmp.ge.s32.totalorder %s24, 1
      %s26 = scalar_select %p25, 0, %s24
      %s27 = sadd.s32 1, %s18
      %s28 = scalar_select %p25, %s27, %s18
      %p29 = scmp.ge.s32.totalorder %s28, 2
      %s30 = scalar_select %p29, 0, %s28
      %s31 = ssub.s32 %s18, %s30
      %s32 = ssub.s32 %s19, %s26
      %s33 = sor.u32 %s31, %s32
      %p34 = scmp.eq.s32.totalorder %s33, 0
      %s36 = sadd.s32 %s35, 1
      %s37 = scalar_select %p34, %s35, %s36
      %p40 = pneg %p34
      %p41 = scmp.eq.s32.totalorder %s11, 1
      %p42 = por %p40, %p41
      %p43 = scmp.ne.s32.totalorder %s35, %s38
      %p44 = scmp.eq.s32.totalorder %s11, 0
      %p45 = por %p43, %p44
      %p46 = scmp.ne.s32.totalorder %s35, %s38
      %p47 = scmp.eq.s32.totalorder %s16, 1
      %p48 = por %p46, %p47
      %p49 = scmp.ne.s32.totalorder %s38, %s39
      %p50 = scmp.eq.s32.totalorder %s16, 0
      %p51 = por %p49, %p50
      %p52 = scmp.ne.s32.totalorder %s38, %s39
      %p53 = scmp.eq.s32.totalorder %s17, 1
      %p54 = por %p52, %p53
      %p56 = scmp.ne.s32.totalorder %s39, %s55
      %p57 = scmp.eq.s32.totalorder %s17, 0
      %p58 = por %p56, %p57
      %s60 = sadd.s32 %s59, 1
      %p63 = scmp.eq.s32.totalorder %s11, 1
      %p64 = scmp.ne.s32.totalorder %s59, %s61
      %p65 = scmp.eq.s32.totalorder %s11, 0
      %p66 = por %p64, %p65
      %p67 = scmp.ne.s32.totalorder %s59, %s61
      %p68 = scmp.eq.s32.totalorder %s16, 1
      %p69 = por %p67, %p68
      %p70 = scmp.ne.s32.totalorder %s61, %s62
      %p71 = scmp.eq.s32.totalorder %s16, 0
      %p72 = por %p70, %p71
      %p73 = scmp.ne.s32.totalorder %s61, %s62
      %p74 = scmp.eq.s32.totalorder %s17, 1
      %p75 = por %p73, %p74
      %p77 = scmp.ne.s32.totalorder %s62, %s76
      %p78 = scmp.eq.s32.totalorder %s17, 0
      %p79 = por %p77, %p78
      %s80 = ssub.s32 %s18, %s30
      %s81 = ssub.s32 %s19, %s26
      %s82 = sor.u32 %s80, %s81
      %p83 = scmp.eq.s32.totalorder %s82, 0
      %s85 = sadd.s32 %s84, 1
      %s86 = scalar_select %p83, %s84, %s85
      %p89 = pneg %p83
      %p90 = scmp.eq.s32.totalorder %s11, 1
      %p91 = por %p89, %p90
      %p92 = scmp.ne.s32.totalorder %s84, %s87
      %p93 = scmp.eq.s32.totalorder %s11, 0
      %p94 = por %p92, %p93
      %p95 = scmp.ne.s32.totalorder %s84, %s87
      %p96 = scmp.eq.s32.totalorder %s16, 1
      %p97 = por %p95, %p96
      %p98 = scmp.ne.s32.totalorder %s87, %s88
      %p99 = scmp.eq.s32.totalorder %s16, 0
      %p100 = por %p98, %p99
      %p101 = scmp.ne.s32.totalorder %s87, %s88
      %p102 = scmp.eq.s32.totalorder %s17, 1
      %p103 = por %p101, %p102
      %p105 = scmp.ne.s32.totalorder %s88, %s104
      %p106 = scmp.eq.s32.totalorder %s17, 0
      %p107 = por %p105, %p106
      %p108 = scmp.le.s32.totalorder 1, %s11
      %p109 = scmp.lt.s32.totalorder %s11, 3
      %p110 = pnand %p108, %p109
      %p111 = pneg %p110
      // Predicated region
      $region9: #{tpu_custom_call.1} parent=5 // pred_check
        _
      $region10: #{tpu_custom_call.1} parent=5 // pred_check_branch
        %113 = sbr.rel (%p110) target = $region12
      $region11: #{tpu_custom_call.1} parent=5 // pred_region
        %s114 = ssub.s32 %s11, 1
        // Predicated region
        $region13: #{tpu_custom_call.1} parent=11 // pred_check
          %p115 = pneg %p72
        $region14: #{tpu_custom_call.1} parent=11 // pred_check_branch
          %117 = sbr.rel (%p115) target = $region16
        $region15: #{tpu_custom_call.1} parent=11 // pred_region
          _
        $region16: #{tpu_custom_call.1} parent=11 // pred_fallthru
          _
      $region12: #{tpu_custom_call.1} parent=5 // pred_fallthru
        _
      %p118 = scmp.lt.s32.totalorder %s11, 2
      // Predicated region
      $region17: #{tpu_custom_call.1} parent=5 // pred_check
        %p119 = pneg %p118
      $region18: #{tpu_custom_call.1} parent=5 // pred_check_branch
        %121 = sbr.rel (%p119) target = $region20
      $region19: #{tpu_custom_call.1} parent=5 // pred_region
        // Predicated region
        $region21: #{tpu_custom_call.1} parent=19 // pred_check
          %p122 = pneg %p45
        $region22: #{tpu_custom_call.1} parent=19 // pred_check_branch
          %124 = sbr.rel (%p122) target = $region24
        $region23: #{tpu_custom_call.1} parent=19 // pred_region
          %s125 = smul.u32 2, %s19
          %p126 = scmp.lt.s32.totalorder %s18, 1
          %s127 = scalar_select %p126, %s18, 1
          %p128 = scmp.lt.s32.totalorder %s125, 1
          %s129 = scalar_select %p128, %s125, 1
          %s130 = smul.addr %s127, 2
          %s131 = sadd.s32 %s129, %s130
          %s132 = scalar_lea.vmem %s0, %s131
          %s133 = smul.u32 2, %s19
        $region24: #{tpu_custom_call.1} parent=19 // pred_fallthru
          _
      $region20: #{tpu_custom_call.1} parent=5 // pred_fallthru
        _
      %p134 = scmp.le.s32.totalorder 1, %s11
      %p135 = scmp.lt.s32.totalorder %s11, 3
      %p136 = pnand %p134, %p135
      %p137 = pneg %p136
      // Predicated region
      $region25: #{tpu_custom_call.1} parent=5 // pred_check
        _
      $region26: #{tpu_custom_call.1} parent=5 // pred_check_branch
        %139 = sbr.rel (%p136) target = $region28
      $region27: #{tpu_custom_call.1} parent=5 // pred_region
        %s140 = ssub.s32 %s11, 1
        %s141 = smul.u32 2, %s21
        %p142 = scmp.lt.s32.totalorder %s20, 1
        %s143 = scalar_select %p142, %s20, 1
        %p144 = scmp.lt.s32.totalorder %s141, 1
        %s145 = scalar_select %p144, %s141, 1
        %s146 = smul.addr %s143, 2
        %s147 = sadd.s32 %s145, %s146
        %s148 = scalar_lea.vmem %s0, %s147
        %p149 = pneg %p51
        %p150 = pneg %p48
        %p151 = pneg %p72
        %p152 = pneg %p69
        %p153 = pneg %p100
        %p154 = pneg %p97
        %s155 = sand.u32 %s87, 1
        %s156 = scalar_lea.sflag [#allocation3], %s155
        %s157 = sand.u32 %s87, 1
        %s158 = smul.addr %s157, 256
        %s159 = scalar_lea.vmem [#allocation2], %s158
        %s160 = smul.u32 2, %s21
        %p161 = scmp.lt.s32.totalorder %s20, 1
        %s162 = scalar_select %p161, %s20, 1
        %p163 = scmp.lt.s32.totalorder %s160, 1
        %s164 = scalar_select %p163, %s160, 1
        %s165 = smul.addr %s162, 2
        %s166 = sadd.s32 %s164, %s165
        %s167 = scalar_lea.vmem %s0, %s166
        %s168 = smul.u32 2, %s21
        %s169 = smul.u32 2, %s21
        %v170 = vld [vmem:[%s167] sm:$0x3]
        %v171 = vld [vmem:[%s1] sm:$0xff]
        %v173 = vlaneseq
        %v174 = vshrl.u32 %v173, 7
        %v175 = vsub.s32 0, %v174
        %v176 = vrot.slane %v170, %v175
        %v177 = vlaneseq
        %v178 = vshrl.u32 %v177, 7
        %v179 = vsub.s32 1, %v178
        %v180 = vrot.slane %v170, %v179
        %184 = vset.pattern.permute.xlu0 0
        %185 = vperm.xlu0 %184, %v171
        %v186 = vpop.permute.xlu0 %185
        %v188 = vmul.f32 %v176, %v186
        %v189 = vmul.f32 %v180, %v186
        %v190 = vand.u32 2147483647, %v188
        %vm191 = vcmp.le.f32.partialorder %v190, 0.7853982
        %vm192 = vcmp.lt.s32.totalorder %v188, 0
        %v193 = vand.u32 %v188, 2139095040
        %v194 = vshrl.u32 %v193, 23
        %v195 = vsub.s32 %v194, 127
        %v196 = vand.u32 2147483647, %v188
        %v197 = vand.u32 %v196, 8388607
        %v198 = vor.u32 %v197, 8388608
        %v199 = vsub.s32 0, %v198
        %v200 = vadd.s32 %v195, 1
        %vm201 = vcmp.gt.s32.totalorder %v200, 0
        %v202 = vsel %vm201, %v200, 0
        %v203 = vshrl.u32 %v202, 5
        %v204 = vand.u32 %v202, 31
        %v205 = vsub.s32 32, %v204
        %v206 = vshrl.u32 683565275, %v205
        %v207 = vshll.u32 683565275, %v204
        %v208 = vshrl.u32 2475754826, %v205
        %v209 = vor.u32 %v207, %v208
        %v210 = vshll.u32 2475754826, %v204
        %v211 = vshrl.u32 2131351028, %v205
        %v212 = vor.u32 %v210, %v211
        %v213 = vshll.u32 2131351028, %v204
        %v214 = vshrl.u32 2102212464, %v205
        %v215 = vor.u32 %v213, %v214
        %v216 = vshll.u32 2102212464, %v204
        %v217 = vshrl.u32 920167782, %v205
        %v218 = vor.u32 %v216, %v217
        %v219 = vshll.u32 920167782, %v204
        %v220 = vshrl.u32 1326507024, %v205
        %v221 = vor.u32 %v219, %v220
        %vm222 = vcmp.lt.s32.totalorder %v203, 1
        %vm223 = vcmp.lt.s32.totalorder %v203, 2
        %vm224 = vcmp.lt.s32.totalorder %v203, 3
        %vm225 = vcmp.lt.s32.totalorder %v203, 4
        %v226 = vsel %vm222, %v206, %v209
        %v227 = vsel %vm225, %v215, 2102212464
        %v228 = vsel %vm224, %v212, %v227
        %v229 = vsel %vm223, %v226, %v228
        %v230 = vsel %vm222, %v209, %v212
        %v231 = vsel %vm225, %v218, 920167782
        %v232 = vsel %vm224, %v215, %v231
        %v233 = vsel %vm223, %v230, %v232
        %v234 = vsel %vm222, %v212, %v215
        %v235 = vsel %vm225, %v221, 1326507024
        %v236 = vsel %vm224, %v218, %v235
        %v237 = vsel %vm223, %v234, %v236
        %v238 = vshll.u32 %v198, 8
        %v239 = vmul.u32.u64.compose %v238, %v237
        %v240 = vextract.low.u32 %v239
        %v241 = vextract.high.u32 %v239
        %v242 = vmul.u32.u64.compose %v238, %v233
        %v243 = vextract.low.u32 %v242
        %v244 = vextract.high.u32 %v242
        %v245 = vmul.u32 %v238, %v229
        %v246 = vadd.s32 %v241, %v243
        %vm247 = vc.u32 %v241, %v243
        %v248 = vadd.s32 %v244, 1
        %v249 = vsel %vm247, %v248, %v244
        %v250 = vadd.s32 %v245, %v249
        %v251 = vadd.s32 %v250, 536870912
        %v252 = vshrl.u32 %v251, 30
        %v253 = vshll.u32 %v252, 30
        %v254 = vsub.s32 %v250, %v253
        %vm255 = vcmp.lt.s32.totalorder %v254, 0
        %v256 = vsub.s32 0, %v254
        %v257 = vsel %vm255, %v256, %v254
        %v258 = vclz %v257
        %v259 = vsub.s32 %v258, 2
        %vm260 = vcmp.gt.s32.totalorder 0, %v259
        %v261 = vsel %vm260, 0, %v259
        %v262 = vsub.s32 32, %v261
        %v263 = vshll.u32 %v254, %v261
        %v264 = vshrl.u32 %v246, %v262
        %v265 = vor.u32 %v263, %v264
        %v266 = vsub.s32 4294967266, %v261
        %v267 = vadd.s32 %v266, 127
        %v268 = vshll.u32 %v267, 23
        %v269 = vor.u32 4788187, %v268
        %v270 = vand.u32 2147483647, %v269
        %v272 = vcvt.s32.f32 %v265
        %v273 = vmul.f32 %v272, %v270
        %v274 = vxor.u32 %v273, 2147483648
        %v275 = vsel %vm192, %v274, %v273
        %v276 = vsub.s32 4, %v252
        %v277 = vsel %vm192, %v276, %v252
        %v278 = vsel %vm191, %v188, %v275
        %v279 = vsel %vm191, 0, %v277
        %v280 = vcosq.f32.pop %v278
        %v281 = vsinq.f32.pop %v278
        %vm282 = vweird.f32 %v188
        %v283 = vadd.s32 %v279, 3
        %v284 = vand.u32 %v283, 3
        %vm285 = vcmp.lt.s32.totalorder %v284, 2
        %vm286 = vcmp.eq.s32.totalorder %v284, 0
        %v287 = vxor.u32 %v281, 2147483648
        %v288 = vsel %vm286, %v280, %v287
        %vm289 = vcmp.eq.s32.totalorder %v284, 2
        %v290 = vxor.u32 %v280, 2147483648
        %v291 = vsel %vm289, %v290, %v281
        %v292 = vsel %vm285, %v288, %v291
        %v293 = vsel %vm282, nan, %v292
        %v294 = vand.u32 2147483647, %v189
        %vm295 = vcmp.le.f32.partialorder %v294, 0.7853982
        %vm296 = vcmp.lt.s32.totalorder %v189, 0
        %v297 = vand.u32 %v189, 2139095040
        %v298 = vshrl.u32 %v297, 23
        %v299 = vsub.s32 %v298, 127
        %v300 = vand.u32 2147483647, %v189
        %v301 = vand.u32 %v300, 8388607
        %v302 = vor.u32 %v301, 8388608
        %v303 = vsub.s32 0, %v302
        %v304 = vadd.s32 %v299, 1
        %vm305 = vcmp.gt.s32.totalorder %v304, 0
        %v306 = vsel %vm305, %v304, 0
        %v307 = vshrl.u32 %v306, 5
        %v308 = vand.u32 %v306, 31
        %v309 = vsub.s32 32, %v308
        %v310 = vshrl.u32 683565275, %v309
        %v311 = vshll.u32 683565275, %v308
        %v312 = vshrl.u32 2475754826, %v309
        %v313 = vor.u32 %v311, %v312
        %v314 = vshll.u32 2475754826, %v308
        %v315 = vshrl.u32 2131351028, %v309
        %v316 = vor.u32 %v314, %v315
        %v317 = vshll.u32 2131351028, %v308
        %v318 = vshrl.u32 2102212464, %v309
        %v319 = vor.u32 %v317, %v318
        %v320 = vshll.u32 2102212464, %v308
        %v321 = vshrl.u32 920167782, %v309
        %v322 = vor.u32 %v320, %v321
        %v323 = vshll.u32 920167782, %v308
        %v324 = vshrl.u32 1326507024, %v309
        %v325 = vor.u32 %v323, %v324
        %vm326 = vcmp.lt.s32.totalorder %v307, 1
        %vm327 = vcmp.lt.s32.totalorder %v307, 2
        %vm328 = vcmp.lt.s32.totalorder %v307, 3
        %vm329 = vcmp.lt.s32.totalorder %v307, 4
        %v330 = vsel %vm326, %v310, %v313
        %v331 = vsel %vm329, %v319, 2102212464
        %v332 = vsel %vm328, %v316, %v331
        %v333 = vsel %vm327, %v330, %v332
        %v334 = vsel %vm326, %v313, %v316
        %v335 = vsel %vm329, %v322, 920167782
        %v336 = vsel %vm328, %v319, %v335
        %v337 = vsel %vm327, %v334, %v336
        %v338 = vsel %vm326, %v316, %v319
        %v339 = vsel %vm329, %v325, 1326507024
        %v340 = vsel %vm328, %v322, %v339
        %v341 = vsel %vm327, %v338, %v340
        %v342 = vshll.u32 %v302, 8
        %v343 = vmul.u32.u64.compose %v342, %v341
        %v344 = vextract.low.u32 %v343
        %v345 = vextract.high.u32 %v343
        %v346 = vmul.u32.u64.compose %v342, %v337
        %v347 = vextract.low.u32 %v346
        %v348 = vextract.high.u32 %v346
        %v349 = vmul.u32 %v342, %v333
        %v350 = vadd.s32 %v345, %v347
        %vm351 = vc.u32 %v345, %v347
        %v352 = vadd.s32 %v348, 1
        %v353 = vsel %vm351, %v352, %v348
        %v354 = vadd.s32 %v349, %v353
        %v355 = vadd.s32 %v354, 536870912
        %v356 = vshrl.u32 %v355, 30
        %v357 = vshll.u32 %v356, 30
        %v358 = vsub.s32 %v354, %v357
        %vm359 = vcmp.lt.s32.totalorder %v358, 0
        %v360 = vsub.s32 0, %v358
        %v361 = vsel %vm359, %v360, %v358
        %v362 = vclz %v361
        %v363 = vsub.s32 %v362, 2
        %vm364 = vcmp.gt.s32.totalorder 0, %v363
        %v365 = vsel %vm364, 0, %v363
        %v366 = vsub.s32 32, %v365
        %v367 = vshll.u32 %v358, %v365
        %v368 = vshrl.u32 %v350, %v366
        %v369 = vor.u32 %v367, %v368
        %v370 = vsub.s32 4294967266, %v365
        %v371 = vadd.s32 %v370, 127
        %v372 = vshll.u32 %v371, 23
        %v373 = vor.u32 4788187, %v372
        %v374 = vand.u32 2147483647, %v373
        %v376 = vcvt.s32.f32 %v369
        %v377 = vmul.f32 %v376, %v374
        %v378 = vxor.u32 %v377, 2147483648
        %v379 = vsel %vm296, %v378, %v377
        %v380 = vsub.s32 4, %v356
        %v381 = vsel %vm296, %v380, %v356
        %v382 = vsel %vm295, %v189, %v379
        %v383 = vsel %vm295, 0, %v381
        %v384 = vcosq.f32.pop %v382
        %v385 = vsinq.f32.pop %v382
        %vm386 = vweird.f32 %v189
        %v387 = vadd.s32 %v383, 3
        %v388 = vand.u32 %v387, 3
        %vm389 = vcmp.lt.s32.totalorder %v388, 2
        %vm390 = vcmp.eq.s32.totalorder %v388, 0
        %v391 = vxor.u32 %v385, 2147483648
        %v392 = vsel %vm390, %v384, %v391
        %vm393 = vcmp.eq.s32.totalorder %v388, 2
        %v394 = vxor.u32 %v384, 2147483648
        %v395 = vsel %vm393, %v394, %v385
        %v396 = vsel %vm389, %v392, %v395
        %v397 = vsel %vm386, nan, %v396
        %398 = vst [vmem:[%s159] sm:$0xff] %v293
        %399 = vst [vmem:[%s159 + $0x8] sm:$0xff] %v397
        %v400 = vand.u32 2147483647, %v188
        %vm401 = vcmp.le.f32.partialorder %v400, 0.7853982
        %vm402 = vcmp.lt.s32.totalorder %v188, 0
        %v403 = vand.u32 %v188, 2139095040
        %v404 = vshrl.u32 %v403, 23
        %v405 = vsub.s32 %v404, 127
        %v406 = vand.u32 2147483647, %v188
        %v407 = vand.u32 %v406, 8388607
        %v408 = vor.u32 %v407, 8388608
        %v409 = vsub.s32 0, %v408
        %v410 = vadd.s32 %v405, 1
        %vm411 = vcmp.gt.s32.totalorder %v410, 0
        %v412 = vsel %vm411, %v410, 0
        %v413 = vshrl.u32 %v412, 5
        %v414 = vand.u32 %v412, 31
        %v415 = vsub.s32 32, %v414
        %v416 = vshrl.u32 683565275, %v415
        %v417 = vshll.u32 683565275, %v414
        %v418 = vshrl.u32 2475754826, %v415
        %v419 = vor.u32 %v417, %v418
        %v420 = vshll.u32 2475754826, %v414
        %v421 = vshrl.u32 2131351028, %v415
        %v422 = vor.u32 %v420, %v421
        %v423 = vshll.u32 2131351028, %v414
        %v424 = vshrl.u32 2102212464, %v415
        %v425 = vor.u32 %v423, %v424
        %v426 = vshll.u32 2102212464, %v414
        %v427 = vshrl.u32 920167782, %v415
        %v428 = vor.u32 %v426, %v427
        %v429 = vshll.u32 920167782, %v414
        %v430 = vshrl.u32 1326507024, %v415
        %v431 = vor.u32 %v429, %v430
        %vm432 = vcmp.lt.s32.totalorder %v413, 1
        %vm433 = vcmp.lt.s32.totalorder %v413, 2
        %vm434 = vcmp.lt.s32.totalorder %v413, 3
        %vm435 = vcmp.lt.s32.totalorder %v413, 4
        %v436 = vsel %vm432, %v416, %v419
        %v437 = vsel %vm435, %v425, 2102212464
        %v438 = vsel %vm434, %v422, %v437
        %v439 = vsel %vm433, %v436, %v438
        %v440 = vsel %vm432, %v419, %v422
        %v441 = vsel %vm435, %v428, 920167782
        %v442 = vsel %vm434, %v425, %v441
        %v443 = vsel %vm433, %v440, %v442
        %v444 = vsel %vm432, %v422, %v425
        %v445 = vsel %vm435, %v431, 1326507024
        %v446 = vsel %vm434, %v428, %v445
        %v447 = vsel %vm433, %v444, %v446
        %v448 = vshll.u32 %v408, 8
        %v449 = vmul.u32.u64.compose %v448, %v447
        %v450 = vextract.low.u32 %v449
        %v451 = vextract.high.u32 %v449
        %v452 = vmul.u32.u64.compose %v448, %v443
        %v453 = vextract.low.u32 %v452
        %v454 = vextract.high.u32 %v452
        %v455 = vmul.u32 %v448, %v439
        %v456 = vadd.s32 %v451, %v453
        %vm457 = vc.u32 %v451, %v453
        %v458 = vadd.s32 %v454, 1
        %v459 = vsel %vm457, %v458, %v454
        %v460 = vadd.s32 %v455, %v459
        %v461 = vadd.s32 %v460, 536870912
        %v462 = vshrl.u32 %v461, 30
        %v463 = vshll.u32 %v462, 30
        %v464 = vsub.s32 %v460, %v463
        %vm465 = vcmp.lt.s32.totalorder %v464, 0
        %v466 = vsub.s32 0, %v464
        %v467 = vsel %vm465, %v466, %v464
        %v468 = vclz %v467
        %v469 = vsub.s32 %v468, 2
        %vm470 = vcmp.gt.s32.totalorder 0, %v469
        %v471 = vsel %vm470, 0, %v469
        %v472 = vsub.s32 32, %v471
        %v473 = vshll.u32 %v464, %v471
        %v474 = vshrl.u32 %v456, %v472
        %v475 = vor.u32 %v473, %v474
        %v476 = vsub.s32 4294967266, %v471
        %v477 = vadd.s32 %v476, 127
        %v478 = vshll.u32 %v477, 23
        %v479 = vor.u32 4788187, %v478
        %v480 = vand.u32 2147483647, %v479
        %v482 = vcvt.s32.f32 %v475
        %v483 = vmul.f32 %v482, %v480
        %v484 = vxor.u32 %v483, 2147483648
        %v485 = vsel %vm402, %v484, %v483
        %v486 = vsub.s32 4, %v462
        %v487 = vsel %vm402, %v486, %v462
        %v488 = vsel %vm401, %v188, %v485
        %v489 = vsel %vm401, 0, %v487
        %v490 = vcosq.f32.pop %v488
        %v491 = vsinq.f32.pop %v488
        %vm492 = vweird.f32 %v188
        %v493 = vand.u32 %v489, 3
        %vm494 = vcmp.lt.s32.totalorder %v493, 2
        %vm495 = vcmp.eq.s32.totalorder %v493, 0
        %v496 = vxor.u32 %v491, 2147483648
        %v497 = vsel %vm495, %v490, %v496
        %vm498 = vcmp.eq.s32.totalorder %v493, 2
        %v499 = vxor.u32 %v490, 2147483648
        %v500 = vsel %vm498, %v499, %v491
        %v501 = vsel %vm494, %v497, %v500
        %v502 = vsel %vm492, nan, %v501
        %v503 = vand.u32 2147483647, %v189
        %vm504 = vcmp.le.f32.partialorder %v503, 0.7853982
        %vm505 = vcmp.lt.s32.totalorder %v189, 0
        %v506 = vand.u32 %v189, 2139095040
        %v507 = vshrl.u32 %v506, 23
        %v508 = vsub.s32 %v507, 127
        %v509 = vand.u32 2147483647, %v189
        %v510 = vand.u32 %v509, 8388607
        %v511 = vor.u32 %v510, 8388608
        %v512 = vsub.s32 0, %v511
        %v513 = vadd.s32 %v508, 1
        %vm514 = vcmp.gt.s32.totalorder %v513, 0
        %v515 = vsel %vm514, %v513, 0
        %v516 = vshrl.u32 %v515, 5
        %v517 = vand.u32 %v515, 31
        %v518 = vsub.s32 32, %v517
        %v519 = vshrl.u32 683565275, %v518
        %v520 = vshll.u32 683565275, %v517
        %v521 = vshrl.u32 2475754826, %v518
        %v522 = vor.u32 %v520, %v521
        %v523 = vshll.u32 2475754826, %v517
        %v524 = vshrl.u32 2131351028, %v518
        %v525 = vor.u32 %v523, %v524
        %v526 = vshll.u32 2131351028, %v517
        %v527 = vshrl.u32 2102212464, %v518
        %v528 = vor.u32 %v526, %v527
        %v529 = vshll.u32 2102212464, %v517
        %v530 = vshrl.u32 920167782, %v518
        %v531 = vor.u32 %v529, %v530
        %v532 = vshll.u32 920167782, %v517
        %v533 = vshrl.u32 1326507024, %v518
        %v534 = vor.u32 %v532, %v533
        %vm535 = vcmp.lt.s32.totalorder %v516, 1
        %vm536 = vcmp.lt.s32.totalorder %v516, 2
        %vm537 = vcmp.lt.s32.totalorder %v516, 3
        %vm538 = vcmp.lt.s32.totalorder %v516, 4
        %v539 = vsel %vm535, %v519, %v522
        %v540 = vsel %vm538, %v528, 2102212464
        %v541 = vsel %vm537, %v525, %v540
        %v542 = vsel %vm536, %v539, %v541
        %v543 = vsel %vm535, %v522, %v525
        %v544 = vsel %vm538, %v531, 920167782
        %v545 = vsel %vm537, %v528, %v544
        %v546 = vsel %vm536, %v543, %v545
        %v547 = vsel %vm535, %v525, %v528
        %v548 = vsel %vm538, %v534, 1326507024
        %v549 = vsel %vm537, %v531, %v548
        %v550 = vsel %vm536, %v547, %v549
        %v551 = vshll.u32 %v511, 8
        %v552 = vmul.u32.u64.compose %v551, %v550
        %v553 = vextract.low.u32 %v552
        %v554 = vextract.high.u32 %v552
        %v555 = vmul.u32.u64.compose %v551, %v546
        %v556 = vextract.low.u32 %v555
        %v557 = vextract.high.u32 %v555
        %v558 = vmul.u32 %v551, %v542
        %v559 = vadd.s32 %v554, %v556
        %vm560 = vc.u32 %v554, %v556
        %v561 = vadd.s32 %v557, 1
        %v562 = vsel %vm560, %v561, %v557
        %v563 = vadd.s32 %v558, %v562
        %v564 = vadd.s32 %v563, 536870912
        %v565 = vshrl.u32 %v564, 30
        %v566 = vshll.u32 %v565, 30
        %v567 = vsub.s32 %v563, %v566
        %vm568 = vcmp.lt.s32.totalorder %v567, 0
        %v569 = vsub.s32 0, %v567
        %v570 = vsel %vm568, %v569, %v567
        %v571 = vclz %v570
        %v572 = vsub.s32 %v571, 2
        %vm573 = vcmp.gt.s32.totalorder 0, %v572
        %v574 = vsel %vm573, 0, %v572
        %v575 = vsub.s32 32, %v574
        %v576 = vshll.u32 %v567, %v574
        %v577 = vshrl.u32 %v559, %v575
        %v578 = vor.u32 %v576, %v577
        %v579 = vsub.s32 4294967266, %v574
        %v580 = vadd.s32 %v579, 127
        %v581 = vshll.u32 %v580, 23
        %v582 = vor.u32 4788187, %v581
        %v583 = vand.u32 2147483647, %v582
        %v585 = vcvt.s32.f32 %v578
        %v586 = vmul.f32 %v585, %v583
        %v587 = vxor.u32 %v586, 2147483648
        %v588 = vsel %vm505, %v587, %v586
        %v589 = vsub.s32 4, %v565
        %v590 = vsel %vm505, %v589, %v565
        %v591 = vsel %vm504, %v189, %v588
        %v592 = vsel %vm504, 0, %v590
        %v593 = vcosq.f32.pop %v591
        %v594 = vsinq.f32.pop %v591
        %vm595 = vweird.f32 %v189
        %v596 = vand.u32 %v592, 3
        %vm597 = vcmp.lt.s32.totalorder %v596, 2
        %vm598 = vcmp.eq.s32.totalorder %v596, 0
        %v599 = vxor.u32 %v594, 2147483648
        %v600 = vsel %vm598, %v593, %v599
        %vm601 = vcmp.eq.s32.totalorder %v596, 2
        %v602 = vxor.u32 %v593, 2147483648
        %v603 = vsel %vm601, %v602, %v594
        %v604 = vsel %vm597, %v600, %v603
        %v605 = vsel %vm595, nan, %v604
        %606 = vst [vmem:[%s159 + $0x80] sm:$0xff] %v502
        %607 = vst [vmem:[%s159 + $0x88] sm:$0xff] %v605
        %v608 = vld [vmem:[%s1 + $0x8] sm:$0xff]
        %610 = vset.pattern.permute.xlu0 0
        %611 = vperm.xlu0 %610, %v608
        %v612 = vpop.permute.xlu0 %611
        %v614 = vmul.f32 %v176, %v612
        %v615 = vmul.f32 %v180, %v612
        %v616 = vand.u32 2147483647, %v614
        %vm617 = vcmp.le.f32.partialorder %v616, 0.7853982
        %vm618 = vcmp.lt.s32.totalorder %v614, 0
        %v619 = vand.u32 %v614, 2139095040
        %v620 = vshrl.u32 %v619, 23
        %v621 = vsub.s32 %v620, 127
        %v622 = vand.u32 2147483647, %v614
        %v623 = vand.u32 %v622, 8388607
        %v624 = vor.u32 %v623, 8388608
        %v625 = vsub.s32 0, %v624
        %v626 = vadd.s32 %v621, 1
        %vm627 = vcmp.gt.s32.totalorder %v626, 0
        %v628 = vsel %vm627, %v626, 0
        %v629 = vshrl.u32 %v628, 5
        %v630 = vand.u32 %v628, 31
        %v631 = vsub.s32 32, %v630
        %v632 = vshrl.u32 683565275, %v631
        %v633 = vshll.u32 683565275, %v630
        %v634 = vshrl.u32 2475754826, %v631
        %v635 = vor.u32 %v633, %v634
        %v636 = vshll.u32 2475754826, %v630
        %v637 = vshrl.u32 2131351028, %v631
        %v638 = vor.u32 %v636, %v637
        %v639 = vshll.u32 2131351028, %v630
        %v640 = vshrl.u32 2102212464, %v631
        %v641 = vor.u32 %v639, %v640
        %v642 = vshll.u32 2102212464, %v630
        %v643 = vshrl.u32 920167782, %v631
        %v644 = vor.u32 %v642, %v643
        %v645 = vshll.u32 920167782, %v630
        %v646 = vshrl.u32 1326507024, %v631
        %v647 = vor.u32 %v645, %v646
        %vm648 = vcmp.lt.s32.totalorder %v629, 1
        %vm649 = vcmp.lt.s32.totalorder %v629, 2
        %vm650 = vcmp.lt.s32.totalorder %v629, 3
        %vm651 = vcmp.lt.s32.totalorder %v629, 4
        %v652 = vsel %vm648, %v632, %v635
        %v653 = vsel %vm651, %v641, 2102212464
        %v654 = vsel %vm650, %v638, %v653
        %v655 = vsel %vm649, %v652, %v654
        %v656 = vsel %vm648, %v635, %v638
        %v657 = vsel %vm651, %v644, 920167782
        %v658 = vsel %vm650, %v641, %v657
        %v659 = vsel %vm649, %v656, %v658
        %v660 = vsel %vm648, %v638, %v641
        %v661 = vsel %vm651, %v647, 1326507024
        %v662 = vsel %vm650, %v644, %v661
        %v663 = vsel %vm649, %v660, %v662
        %v664 = vshll.u32 %v624, 8
        %v665 = vmul.u32.u64.compose %v664, %v663
        %v666 = vextract.low.u32 %v665
        %v667 = vextract.high.u32 %v665
        %v668 = vmul.u32.u64.compose %v664, %v659
        %v669 = vextract.low.u32 %v668
        %v670 = vextract.high.u32 %v668
        %v671 = vmul.u32 %v664, %v655
        %v672 = vadd.s32 %v667, %v669
        %vm673 = vc.u32 %v667, %v669
        %v674 = vadd.s32 %v670, 1
        %v675 = vsel %vm673, %v674, %v670
        %v676 = vadd.s32 %v671, %v675
        %v677 = vadd.s32 %v676, 536870912
        %v678 = vshrl.u32 %v677, 30
        %v679 = vshll.u32 %v678, 30
        %v680 = vsub.s32 %v676, %v679
        %vm681 = vcmp.lt.s32.totalorder %v680, 0
        %v682 = vsub.s32 0, %v680
        %v683 = vsel %vm681, %v682, %v680
        %v684 = vclz %v683
        %v685 = vsub.s32 %v684, 2
        %vm686 = vcmp.gt.s32.totalorder 0, %v685
        %v687 = vsel %vm686, 0, %v685
        %v688 = vsub.s32 32, %v687
        %v689 = vshll.u32 %v680, %v687
        %v690 = vshrl.u32 %v672, %v688
        %v691 = vor.u32 %v689, %v690
        %v692 = vsub.s32 4294967266, %v687
        %v693 = vadd.s32 %v692, 127
        %v694 = vshll.u32 %v693, 23
        %v695 = vor.u32 4788187, %v694
        %v696 = vand.u32 2147483647, %v695
        %v698 = vcvt.s32.f32 %v691
        %v699 = vmul.f32 %v698, %v696
        %v700 = vxor.u32 %v699, 2147483648
        %v701 = vsel %vm618, %v700, %v699
        %v702 = vsub.s32 4, %v678
        %v703 = vsel %vm618, %v702, %v678
        %v704 = vsel %vm617, %v614, %v701
        %v705 = vsel %vm617, 0, %v703
        %v706 = vcosq.f32.pop %v704
        %v707 = vsinq.f32.pop %v704
        %vm708 = vweird.f32 %v614
        %v709 = vadd.s32 %v705, 3
        %v710 = vand.u32 %v709, 3
        %vm711 = vcmp.lt.s32.totalorder %v710, 2
        %vm712 = vcmp.eq.s32.totalorder %v710, 0
        %v713 = vxor.u32 %v707, 2147483648
        %v714 = vsel %vm712, %v706, %v713
        %vm715 = vcmp.eq.s32.totalorder %v710, 2
        %v716 = vxor.u32 %v706, 2147483648
        %v717 = vsel %vm715, %v716, %v707
        %v718 = vsel %vm711, %v714, %v717
        %v719 = vsel %vm708, nan, %v718
        %v720 = vand.u32 2147483647, %v615
        %vm721 = vcmp.le.f32.partialorder %v720, 0.7853982
        %vm722 = vcmp.lt.s32.totalorder %v615, 0
        %v723 = vand.u32 %v615, 2139095040
        %v724 = vshrl.u32 %v723, 23
        %v725 = vsub.s32 %v724, 127
        %v726 = vand.u32 2147483647, %v615
        %v727 = vand.u32 %v726, 8388607
        %v728 = vor.u32 %v727, 8388608
        %v729 = vsub.s32 0, %v728
        %v730 = vadd.s32 %v725, 1
        %vm731 = vcmp.gt.s32.totalorder %v730, 0
        %v732 = vsel %vm731, %v730, 0
        %v733 = vshrl.u32 %v732, 5
        %v734 = vand.u32 %v732, 31
        %v735 = vsub.s32 32, %v734
        %v736 = vshrl.u32 683565275, %v735
        %v737 = vshll.u32 683565275, %v734
        %v738 = vshrl.u32 2475754826, %v735
        %v739 = vor.u32 %v737, %v738
        %v740 = vshll.u32 2475754826, %v734
        %v741 = vshrl.u32 2131351028, %v735
        %v742 = vor.u32 %v740, %v741
        %v743 = vshll.u32 2131351028, %v734
        %v744 = vshrl.u32 2102212464, %v735
        %v745 = vor.u32 %v743, %v744
        %v746 = vshll.u32 2102212464, %v734
        %v747 = vshrl.u32 920167782, %v735
        %v748 = vor.u32 %v746, %v747
        %v749 = vshll.u32 920167782, %v734
        %v750 = vshrl.u32 1326507024, %v735
        %v751 = vor.u32 %v749, %v750
        %vm752 = vcmp.lt.s32.totalorder %v733, 1
        %vm753 = vcmp.lt.s32.totalorder %v733, 2
        %vm754 = vcmp.lt.s32.totalorder %v733, 3
        %vm755 = vcmp.lt.s32.totalorder %v733, 4
        %v756 = vsel %vm752, %v736, %v739
        %v757 = vsel %vm755, %v745, 2102212464
        %v758 = vsel %vm754, %v742, %v757
        %v759 = vsel %vm753, %v756, %v758
        %v760 = vsel %vm752, %v739, %v742
        %v761 = vsel %vm755, %v748, 920167782
        %v762 = vsel %vm754, %v745, %v761
        %v763 = vsel %vm753, %v760, %v762
        %v764 = vsel %vm752, %v742, %v745
        %v765 = vsel %vm755, %v751, 1326507024
        %v766 = vsel %vm754, %v748, %v765
        %v767 = vsel %vm753, %v764, %v766
        %v768 = vshll.u32 %v728, 8
        %v769 = vmul.u32.u64.compose %v768, %v767
        %v770 = vextract.low.u32 %v769
        %v771 = vextract.high.u32 %v769
        %v772 = vmul.u32.u64.compose %v768, %v763
        %v773 = vextract.low.u32 %v772
        %v774 = vextract.high.u32 %v772
        %v775 = vmul.u32 %v768, %v759
        %v776 = vadd.s32 %v771, %v773
        %vm777 = vc.u32 %v771, %v773
        %v778 = vadd.s32 %v774, 1
        %v779 = vsel %vm777, %v778, %v774
        %v780 = vadd.s32 %v775, %v779
        %v781 = vadd.s32 %v780, 536870912
        %v782 = vshrl.u32 %v781, 30
        %v783 = vshll.u32 %v782, 30
        %v784 = vsub.s32 %v780, %v783
        %vm785 = vcmp.lt.s32.totalorder %v784, 0
        %v786 = vsub.s32 0, %v784
        %v787 = vsel %vm785, %v786, %v784
        %v788 = vclz %v787
        %v789 = vsub.s32 %v788, 2
        %vm790 = vcmp.gt.s32.totalorder 0, %v789
        %v791 = vsel %vm790, 0, %v789
        %v792 = vsub.s32 32, %v791
        %v793 = vshll.u32 %v784, %v791
        %v794 = vshrl.u32 %v776, %v792
        %v795 = vor.u32 %v793, %v794
        %v796 = vsub.s32 4294967266, %v791
        %v797 = vadd.s32 %v796, 127
        %v798 = vshll.u32 %v797, 23
        %v799 = vor.u32 4788187, %v798
        %v800 = vand.u32 2147483647, %v799
        %v802 = vcvt.s32.f32 %v795
        %v803 = vmul.f32 %v802, %v800
        %v804 = vxor.u32 %v803, 2147483648
        %v805 = vsel %vm722, %v804, %v803
        %v806 = vsub.s32 4, %v782
        %v807 = vsel %vm722, %v806, %v782
        %v808 = vsel %vm721, %v615, %v805
        %v809 = vsel %vm721, 0, %v807
        %v810 = vcosq.f32.pop %v808
        %v811 = vsinq.f32.pop %v808
        %vm812 = vweird.f32 %v615
        %v813 = vadd.s32 %v809, 3
        %v814 = vand.u32 %v813, 3
        %vm815 = vcmp.lt.s32.totalorder %v814, 2
        %vm816 = vcmp.eq.s32.totalorder %v814, 0
        %v817 = vxor.u32 %v811, 2147483648
        %v818 = vsel %vm816, %v810, %v817
        %vm819 = vcmp.eq.s32.totalorder %v814, 2
        %v820 = vxor.u32 %v810, 2147483648
        %v821 = vsel %vm819, %v820, %v811
        %v822 = vsel %vm815, %v818, %v821
        %v823 = vsel %vm812, nan, %v822
        %824 = vst [vmem:[%s159 + $0x10] sm:$0xff] %v719
        %825 = vst [vmem:[%s159 + $0x18] sm:$0xff] %v823
        %v826 = vand.u32 2147483647, %v614
        %vm827 = vcmp.le.f32.partialorder %v826, 0.7853982
        %vm828 = vcmp.lt.s32.totalorder %v614, 0
        %v829 = vand.u32 %v614, 2139095040
        %v830 = vshrl.u32 %v829, 23
        %v831 = vsub.s32 %v830, 127
        %v832 = vand.u32 2147483647, %v614
        %v833 = vand.u32 %v832, 8388607
        %v834 = vor.u32 %v833, 8388608
        %v835 = vsub.s32 0, %v834
        %v836 = vadd.s32 %v831, 1
        %vm837 = vcmp.gt.s32.totalorder %v836, 0
        %v838 = vsel %vm837, %v836, 0
        %v839 = vshrl.u32 %v838, 5
        %v840 = vand.u32 %v838, 31
        %v841 = vsub.s32 32, %v840
        %v842 = vshrl.u32 683565275, %v841
        %v843 = vshll.u32 683565275, %v840
        %v844 = vshrl.u32 2475754826, %v841
        %v845 = vor.u32 %v843, %v844
        %v846 = vshll.u32 2475754826, %v840
        %v847 = vshrl.u32 2131351028, %v841
        %v848 = vor.u32 %v846, %v847
        %v849 = vshll.u32 2131351028, %v840
        %v850 = vshrl.u32 2102212464, %v841
        %v851 = vor.u32 %v849, %v850
        %v852 = vshll.u32 2102212464, %v840
        %v853 = vshrl.u32 920167782, %v841
        %v854 = vor.u32 %v852, %v853
        %v855 = vshll.u32 920167782, %v840
        %v856 = vshrl.u32 1326507024, %v841
        %v857 = vor.u32 %v855, %v856
        %vm858 = vcmp.lt.s32.totalorder %v839, 1
        %vm859 = vcmp.lt.s32.totalorder %v839, 2
        %vm860 = vcmp.lt.s32.totalorder %v839, 3
        %vm861 = vcmp.lt.s32.totalorder %v839, 4
        %v862 = vsel %vm858, %v842, %v845
        %v863 = vsel %vm861, %v851, 2102212464
        %v864 = vsel %vm860, %v848, %v863
        %v865 = vsel %vm859, %v862, %v864
        %v866 = vsel %vm858, %v845, %v848
        %v867 = vsel %vm861, %v854, 920167782
        %v868 = vsel %vm860, %v851, %v867
        %v869 = vsel %vm859, %v866, %v868
        %v870 = vsel %vm858, %v848, %v851
        %v871 = vsel %vm861, %v857, 1326507024
        %v872 = vsel %vm860, %v854, %v871
        %v873 = vsel %vm859, %v870, %v872
        %v874 = vshll.u32 %v834, 8
        %v875 = vmul.u32.u64.compose %v874, %v873
        %v876 = vextract.low.u32 %v875
        %v877 = vextract.high.u32 %v875
        %v878 = vmul.u32.u64.compose %v874, %v869
        %v879 = vextract.low.u32 %v878
        %v880 = vextract.high.u32 %v878
        %v881 = vmul.u32 %v874, %v865
        %v882 = vadd.s32 %v877, %v879
        %vm883 = vc.u32 %v877, %v879
        %v884 = vadd.s32 %v880, 1
        %v885 = vsel %vm883, %v884, %v880
        %v886 = vadd.s32 %v881, %v885
        %v887 = vadd.s32 %v886, 536870912
        %v888 = vshrl.u32 %v887, 30
        %v889 = vshll.u32 %v888, 30
        %v890 = vsub.s32 %v886, %v889
        %vm891 = vcmp.lt.s32.totalorder %v890, 0
        %v892 = vsub.s32 0, %v890
        %v893 = vsel %vm891, %v892, %v890
        %v894 = vclz %v893
        %v895 = vsub.s32 %v894, 2
        %vm896 = vcmp.gt.s32.totalorder 0, %v895
        %v897 = vsel %vm896, 0, %v895
        %v898 = vsub.s32 32, %v897
        %v899 = vshll.u32 %v890, %v897
        %v900 = vshrl.u32 %v882, %v898
        %v901 = vor.u32 %v899, %v900
        %v902 = vsub.s32 4294967266, %v897
        %v903 = vadd.s32 %v902, 127
        %v904 = vshll.u32 %v903, 23
        %v905 = vor.u32 4788187, %v904
        %v906 = vand.u32 2147483647, %v905
        %v908 = vcvt.s32.f32 %v901
        %v909 = vmul.f32 %v908, %v906
        %v910 = vxor.u32 %v909, 2147483648
        %v911 = vsel %vm828, %v910, %v909
        %v912 = vsub.s32 4, %v888
        %v913 = vsel %vm828, %v912, %v888
        %v914 = vsel %vm827, %v614, %v911
        %v915 = vsel %vm827, 0, %v913
        %v916 = vcosq.f32.pop %v914
        %v917 = vsinq.f32.pop %v914
        %vm918 = vweird.f32 %v614
        %v919 = vand.u32 %v915, 3
        %vm920 = vcmp.lt.s32.totalorder %v919, 2
        %vm921 = vcmp.eq.s32.totalorder %v919, 0
        %v922 = vxor.u32 %v917, 2147483648
        %v923 = vsel %vm921, %v916, %v922
        %vm924 = vcmp.eq.s32.totalorder %v919, 2
        %v925 = vxor.u32 %v916, 2147483648
        %v926 = vsel %vm924, %v925, %v917
        %v927 = vsel %vm920, %v923, %v926
        %v928 = vsel %vm918, nan, %v927
        %v929 = vand.u32 2147483647, %v615
        %vm930 = vcmp.le.f32.partialorder %v929, 0.7853982
        %vm931 = vcmp.lt.s32.totalorder %v615, 0
        %v932 = vand.u32 %v615, 2139095040
        %v933 = vshrl.u32 %v932, 23
        %v934 = vsub.s32 %v933, 127
        %v935 = vand.u32 2147483647, %v615
        %v936 = vand.u32 %v935, 8388607
        %v937 = vor.u32 %v936, 8388608
        %v938 = vsub.s32 0, %v937
        %v939 = vadd.s32 %v934, 1
        %vm940 = vcmp.gt.s32.totalorder %v939, 0
        %v941 = vsel %vm940, %v939, 0
        %v942 = vshrl.u32 %v941, 5
        %v943 = vand.u32 %v941, 31
        %v944 = vsub.s32 32, %v943
        %v945 = vshrl.u32 683565275, %v944
        %v946 = vshll.u32 683565275, %v943
        %v947 = vshrl.u32 2475754826, %v944
        %v948 = vor.u32 %v946, %v947
        %v949 = vshll.u32 2475754826, %v943
        %v950 = vshrl.u32 2131351028, %v944
        %v951 = vor.u32 %v949, %v950
        %v952 = vshll.u32 2131351028, %v943
        %v953 = vshrl.u32 2102212464, %v944
        %v954 = vor.u32 %v952, %v953
        %v955 = vshll.u32 2102212464, %v943
        %v956 = vshrl.u32 920167782, %v944
        %v957 = vor.u32 %v955, %v956
        %v958 = vshll.u32 920167782, %v943
        %v959 = vshrl.u32 1326507024, %v944
        %v960 = vor.u32 %v958, %v959
        %vm961 = vcmp.lt.s32.totalorder %v942, 1
        %vm962 = vcmp.lt.s32.totalorder %v942, 2
        %vm963 = vcmp.lt.s32.totalorder %v942, 3
        %vm964 = vcmp.lt.s32.totalorder %v942, 4
        %v965 = vsel %vm961, %v945, %v948
        %v966 = vsel %vm964, %v954, 2102212464
        %v967 = vsel %vm963, %v951, %v966
        %v968 = vsel %vm962, %v965, %v967
        %v969 = vsel %vm961, %v948, %v951
        %v970 = vsel %vm964, %v957, 920167782
        %v971 = vsel %vm963, %v954, %v970
        %v972 = vsel %vm962, %v969, %v971
        %v973 = vsel %vm961, %v951, %v954
        %v974 = vsel %vm964, %v960, 1326507024
        %v975 = vsel %vm963, %v957, %v974
        %v976 = vsel %vm962, %v973, %v975
        %v977 = vshll.u32 %v937, 8
        %v978 = vmul.u32.u64.compose %v977, %v976
        %v979 = vextract.low.u32 %v978
        %v980 = vextract.high.u32 %v978
        %v981 = vmul.u32.u64.compose %v977, %v972
        %v982 = vextract.low.u32 %v981
        %v983 = vextract.high.u32 %v981
        %v984 = vmul.u32 %v977, %v968
        %v985 = vadd.s32 %v980, %v982
        %vm986 = vc.u32 %v980, %v982
        %v987 = vadd.s32 %v983, 1
        %v988 = vsel %vm986, %v987, %v983
        %v989 = vadd.s32 %v984, %v988
        %v990 = vadd.s32 %v989, 536870912
        %v991 = vshrl.u32 %v990, 30
        %v992 = vshll.u32 %v991, 30
        %v993 = vsub.s32 %v989, %v992
        %vm994 = vcmp.lt.s32.totalorder %v993, 0
        %v995 = vsub.s32 0, %v993
        %v996 = vsel %vm994, %v995, %v993
        %v997 = vclz %v996
        %v998 = vsub.s32 %v997, 2
        %vm999 = vcmp.gt.s32.totalorder 0, %v998
        %v1000 = vsel %vm999, 0, %v998
        %v1001 = vsub.s32 32, %v1000
        %v1002 = vshll.u32 %v993, %v1000
        %v1003 = vshrl.u32 %v985, %v1001
        %v1004 = vor.u32 %v1002, %v1003
        %v1005 = vsub.s32 4294967266, %v1000
        %v1006 = vadd.s32 %v1005, 127
        %v1007 = vshll.u32 %v1006, 23
        %v1008 = vor.u32 4788187, %v1007
        %v1009 = vand.u32 2147483647, %v1008
        %v1011 = vcvt.s32.f32 %v1004
        %v1012 = vmul.f32 %v1011, %v1009
        %v1013 = vxor.u32 %v1012, 2147483648
        %v1014 = vsel %vm931, %v1013, %v1012
        %v1015 = vsub.s32 4, %v991
        %v1016 = vsel %vm931, %v1015, %v991
        %v1017 = vsel %vm930, %v615, %v1014
        %v1018 = vsel %vm930, 0, %v1016
        %v1019 = vcosq.f32.pop %v1017
        %v1020 = vsinq.f32.pop %v1017
        %vm1021 = vweird.f32 %v615
        %v1022 = vand.u32 %v1018, 3
        %vm1023 = vcmp.lt.s32.totalorder %v1022, 2
        %vm1024 = vcmp.eq.s32.totalorder %v1022, 0
        %v1025 = vxor.u32 %v1020, 2147483648
        %v1026 = vsel %vm1024, %v1019, %v1025
        %vm1027 = vcmp.eq.s32.totalorder %v1022, 2
        %v1028 = vxor.u32 %v1019, 2147483648
        %v1029 = vsel %vm1027, %v1028, %v1020
        %v1030 = vsel %vm1023, %v1026, %v1029
        %v1031 = vsel %vm1021, nan, %v1030
        %1032 = vst [vmem:[%s159 + $0x90] sm:$0xff] %v928
        %1033 = vst [vmem:[%s159 + $0x98] sm:$0xff] %v1031
        %v1034 = vld [vmem:[%s1 + $0x10] sm:$0xff]
        %1036 = vset.pattern.permute.xlu0 0
        %1037 = vperm.xlu0 %1036, %v1034
        %v1038 = vpop.permute.xlu0 %1037
        %v1040 = vmul.f32 %v176, %v1038
        %v1041 = vmul.f32 %v180, %v1038
        %v1042 = vand.u32 2147483647, %v1040
        %vm1043 = vcmp.le.f32.partialorder %v1042, 0.7853982
        %vm1044 = vcmp.lt.s32.totalorder %v1040, 0
        %v1045 = vand.u32 %v1040, 2139095040
        %v1046 = vshrl.u32 %v1045, 23
        %v1047 = vsub.s32 %v1046, 127
        %v1048 = vand.u32 2147483647, %v1040
        %v1049 = vand.u32 %v1048, 8388607
        %v1050 = vor.u32 %v1049, 8388608
        %v1051 = vsub.s32 0, %v1050
        %v1052 = vadd.s32 %v1047, 1
        %vm1053 = vcmp.gt.s32.totalorder %v1052, 0
        %v1054 = vsel %vm1053, %v1052, 0
        %v1055 = vshrl.u32 %v1054, 5
        %v1056 = vand.u32 %v1054, 31
        %v1057 = vsub.s32 32, %v1056
        %v1058 = vshrl.u32 683565275, %v1057
        %v1059 = vshll.u32 683565275, %v1056
        %v1060 = vshrl.u32 2475754826, %v1057
        %v1061 = vor.u32 %v1059, %v1060
        %v1062 = vshll.u32 2475754826, %v1056
        %v1063 = vshrl.u32 2131351028, %v1057
        %v1064 = vor.u32 %v1062, %v1063
        %v1065 = vshll.u32 2131351028, %v1056
        %v1066 = vshrl.u32 2102212464, %v1057
        %v1067 = vor.u32 %v1065, %v1066
        %v1068 = vshll.u32 2102212464, %v1056
        %v1069 = vshrl.u32 920167782, %v1057
        %v1070 = vor.u32 %v1068, %v1069
        %v1071 = vshll.u32 920167782, %v1056
        %v1072 = vshrl.u32 1326507024, %v1057
        %v1073 = vor.u32 %v1071, %v1072
        %vm1074 = vcmp.lt.s32.totalorder %v1055, 1
        %vm1075 = vcmp.lt.s32.totalorder %v1055, 2
        %vm1076 = vcmp.lt.s32.totalorder %v1055, 3
        %vm1077 = vcmp.lt.s32.totalorder %v1055, 4
        %v1078 = vsel %vm1074, %v1058, %v1061
        %v1079 = vsel %vm1077, %v1067, 2102212464
        %v1080 = vsel %vm1076, %v1064, %v1079
        %v1081 = vsel %vm1075, %v1078, %v1080
        %v1082 = vsel %vm1074, %v1061, %v1064
        %v1083 = vsel %vm1077, %v1070, 920167782
        %v1084 = vsel %vm1076, %v1067, %v1083
        %v1085 = vsel %vm1075, %v1082, %v1084
        %v1086 = vsel %vm1074, %v1064, %v1067
        %v1087 = vsel %vm1077, %v1073, 1326507024
        %v1088 = vsel %vm1076, %v1070, %v1087
        %v1089 = vsel %vm1075, %v1086, %v1088
        %v1090 = vshll.u32 %v1050, 8
        %v1091 = vmul.u32.u64.compose %v1090, %v1089
        %v1092 = vextract.low.u32 %v1091
        %v1093 = vextract.high.u32 %v1091
        %v1094 = vmul.u32.u64.compose %v1090, %v1085
        %v1095 = vextract.low.u32 %v1094
        %v1096 = vextract.high.u32 %v1094
        %v1097 = vmul.u32 %v1090, %v1081
        %v1098 = vadd.s32 %v1093, %v1095
        %vm1099 = vc.u32 %v1093, %v1095
        %v1100 = vadd.s32 %v1096, 1
        %v1101 = vsel %vm1099, %v1100, %v1096
        %v1102 = vadd.s32 %v1097, %v1101
        %v1103 = vadd.s32 %v1102, 536870912
        %v1104 = vshrl.u32 %v1103, 30
        %v1105 = vshll.u32 %v1104, 30
        %v1106 = vsub.s32 %v1102, %v1105
        %vm1107 = vcmp.lt.s32.totalorder %v1106, 0
        %v1108 = vsub.s32 0, %v1106
        %v1109 = vsel %vm1107, %v1108, %v1106
        %v1110 = vclz %v1109
        %v1111 = vsub.s32 %v1110, 2
        %vm1112 = vcmp.gt.s32.totalorder 0, %v1111
        %v1113 = vsel %vm1112, 0, %v1111
        %v1114 = vsub.s32 32, %v1113
        %v1115 = vshll.u32 %v1106, %v1113
        %v1116 = vshrl.u32 %v1098, %v1114
        %v1117 = vor.u32 %v1115, %v1116
        %v1118 = vsub.s32 4294967266, %v1113
        %v1119 = vadd.s32 %v1118, 127
        %v1120 = vshll.u32 %v1119, 23
        %v1121 = vor.u32 4788187, %v1120
        %v1122 = vand.u32 2147483647, %v1121
        %v1124 = vcvt.s32.f32 %v1117
        %v1125 = vmul.f32 %v1124, %v1122
        %v1126 = vxor.u32 %v1125, 2147483648
        %v1127 = vsel %vm1044, %v1126, %v1125
        %v1128 = vsub.s32 4, %v1104
        %v1129 = vsel %vm1044, %v1128, %v1104
        %v1130 = vsel %vm1043, %v1040, %v1127
        %v1131 = vsel %vm1043, 0, %v1129
        %v1132 = vcosq.f32.pop %v1130
        %v1133 = vsinq.f32.pop %v1130
        %vm1134 = vweird.f32 %v1040
        %v1135 = vadd.s32 %v1131, 3
        %v1136 = vand.u32 %v1135, 3
        %vm1137 = vcmp.lt.s32.totalorder %v1136, 2
        %vm1138 = vcmp.eq.s32.totalorder %v1136, 0
        %v1139 = vxor.u32 %v1133, 2147483648
        %v1140 = vsel %vm1138, %v1132, %v1139
        %vm1141 = vcmp.eq.s32.totalorder %v1136, 2
        %v1142 = vxor.u32 %v1132, 2147483648
        %v1143 = vsel %vm1141, %v1142, %v1133
        %v1144 = vsel %vm1137, %v1140, %v1143
        %v1145 = vsel %vm1134, nan, %v1144
        %v1146 = vand.u32 2147483647, %v1041
        %vm1147 = vcmp.le.f32.partialorder %v1146, 0.7853982
        %vm1148 = vcmp.lt.s32.totalorder %v1041, 0
        %v1149 = vand.u32 %v1041, 2139095040
        %v1150 = vshrl.u32 %v1149, 23
        %v1151 = vsub.s32 %v1150, 127
        %v1152 = vand.u32 2147483647, %v1041
        %v1153 = vand.u32 %v1152, 8388607
        %v1154 = vor.u32 %v1153, 8388608
        %v1155 = vsub.s32 0, %v1154
        %v1156 = vadd.s32 %v1151, 1
        %vm1157 = vcmp.gt.s32.totalorder %v1156, 0
        %v1158 = vsel %vm1157, %v1156, 0
        %v1159 = vshrl.u32 %v1158, 5
        %v1160 = vand.u32 %v1158, 31
        %v1161 = vsub.s32 32, %v1160
        %v1162 = vshrl.u32 683565275, %v1161
        %v1163 = vshll.u32 683565275, %v1160
        %v1164 = vshrl.u32 2475754826, %v1161
        %v1165 = vor.u32 %v1163, %v1164
        %v1166 = vshll.u32 2475754826, %v1160
        %v1167 = vshrl.u32 2131351028, %v1161
        %v1168 = vor.u32 %v1166, %v1167
        %v1169 = vshll.u32 2131351028, %v1160
        %v1170 = vshrl.u32 2102212464, %v1161
        %v1171 = vor.u32 %v1169, %v1170
        %v1172 = vshll.u32 2102212464, %v1160
        %v1173 = vshrl.u32 920167782, %v1161
        %v1174 = vor.u32 %v1172, %v1173
        %v1175 = vshll.u32 920167782, %v1160
        %v1176 = vshrl.u32 1326507024, %v1161
        %v1177 = vor.u32 %v1175, %v1176
        %vm1178 = vcmp.lt.s32.totalorder %v1159, 1
        %vm1179 = vcmp.lt.s32.totalorder %v1159, 2
        %vm1180 = vcmp.lt.s32.totalorder %v1159, 3
        %vm1181 = vcmp.lt.s32.totalorder %v1159, 4
        %v1182 = vsel %vm1178, %v1162, %v1165
        %v1183 = vsel %vm1181, %v1171, 2102212464
        %v1184 = vsel %vm1180, %v1168, %v1183
        %v1185 = vsel %vm1179, %v1182, %v1184
        %v1186 = vsel %vm1178, %v1165, %v1168
        %v1187 = vsel %vm1181, %v1174, 920167782
        %v1188 = vsel %vm1180, %v1171, %v1187
        %v1189 = vsel %vm1179, %v1186, %v1188
        %v1190 = vsel %vm1178, %v1168, %v1171
        %v1191 = vsel %vm1181, %v1177, 1326507024
        %v1192 = vsel %vm1180, %v1174, %v1191
        %v1193 = vsel %vm1179, %v1190, %v1192
        %v1194 = vshll.u32 %v1154, 8
        %v1195 = vmul.u32.u64.compose %v1194, %v1193
        %v1196 = vextract.low.u32 %v1195
        %v1197 = vextract.high.u32 %v1195
        %v1198 = vmul.u32.u64.compose %v1194, %v1189
        %v1199 = vextract.low.u32 %v1198
        %v1200 = vextract.high.u32 %v1198
        %v1201 = vmul.u32 %v1194, %v1185
        %v1202 = vadd.s32 %v1197, %v1199
        %vm1203 = vc.u32 %v1197, %v1199
        %v1204 = vadd.s32 %v1200, 1
        %v1205 = vsel %vm1203, %v1204, %v1200
        %v1206 = vadd.s32 %v1201, %v1205
        %v1207 = vadd.s32 %v1206, 536870912
        %v1208 = vshrl.u32 %v1207, 30
        %v1209 = vshll.u32 %v1208, 30
        %v1210 = vsub.s32 %v1206, %v1209
        %vm1211 = vcmp.lt.s32.totalorder %v1210, 0
        %v1212 = vsub.s32 0, %v1210
        %v1213 = vsel %vm1211, %v1212, %v1210
        %v1214 = vclz %v1213
        %v1215 = vsub.s32 %v1214, 2
        %vm1216 = vcmp.gt.s32.totalorder 0, %v1215
        %v1217 = vsel %vm1216, 0, %v1215
        %v1218 = vsub.s32 32, %v1217
        %v1219 = vshll.u32 %v1210, %v1217
        %v1220 = vshrl.u32 %v1202, %v1218
        %v1221 = vor.u32 %v1219, %v1220
        %v1222 = vsub.s32 4294967266, %v1217
        %v1223 = vadd.s32 %v1222, 127
        %v1224 = vshll.u32 %v1223, 23
        %v1225 = vor.u32 4788187, %v1224
        %v1226 = vand.u32 2147483647, %v1225
        %v1228 = vcvt.s32.f32 %v1221
        %v1229 = vmul.f32 %v1228, %v1226
        %v1230 = vxor.u32 %v1229, 2147483648
        %v1231 = vsel %vm1148, %v1230, %v1229
        %v1232 = vsub.s32 4, %v1208
        %v1233 = vsel %vm1148, %v1232, %v1208
        %v1234 = vsel %vm1147, %v1041, %v1231
        %v1235 = vsel %vm1147, 0, %v1233
        %v1236 = vcosq.f32.pop %v1234
        %v1237 = vsinq.f32.pop %v1234
        %vm1238 = vweird.f32 %v1041
        %v1239 = vadd.s32 %v1235, 3
        %v1240 = vand.u32 %v1239, 3
        %vm1241 = vcmp.lt.s32.totalorder %v1240, 2
        %vm1242 = vcmp.eq.s32.totalorder %v1240, 0
        %v1243 = vxor.u32 %v1237, 2147483648
        %v1244 = vsel %vm1242, %v1236, %v1243
        %vm1245 = vcmp.eq.s32.totalorder %v1240, 2
        %v1246 = vxor.u32 %v1236, 2147483648
        %v1247 = vsel %vm1245, %v1246, %v1237
        %v1248 = vsel %vm1241, %v1244, %v1247
        %v1249 = vsel %vm1238, nan, %v1248
        %1250 = vst [vmem:[%s159 + $0x20] sm:$0xff] %v1145
        %1251 = vst [vmem:[%s159 + $0x28] sm:$0xff] %v1249
        %v1252 = vand.u32 2147483647, %v1040
        %vm1253 = vcmp.le.f32.partialorder %v1252, 0.7853982
        %vm1254 = vcmp.lt.s32.totalorder %v1040, 0
        %v1255 = vand.u32 %v1040, 2139095040
        %v1256 = vshrl.u32 %v1255, 23
        %v1257 = vsub.s32 %v1256, 127
        %v1258 = vand.u32 2147483647, %v1040
        %v1259 = vand.u32 %v1258, 8388607
        %v1260 = vor.u32 %v1259, 8388608
        %v1261 = vsub.s32 0, %v1260
        %v1262 = vadd.s32 %v1257, 1
        %vm1263 = vcmp.gt.s32.totalorder %v1262, 0
        %v1264 = vsel %vm1263, %v1262, 0
        %v1265 = vshrl.u32 %v1264, 5
        %v1266 = vand.u32 %v1264, 31
        %v1267 = vsub.s32 32, %v1266
        %v1268 = vshrl.u32 683565275, %v1267
        %v1269 = vshll.u32 683565275, %v1266
        %v1270 = vshrl.u32 2475754826, %v1267
        %v1271 = vor.u32 %v1269, %v1270
        %v1272 = vshll.u32 2475754826, %v1266
        %v1273 = vshrl.u32 2131351028, %v1267
        %v1274 = vor.u32 %v1272, %v1273
        %v1275 = vshll.u32 2131351028, %v1266
        %v1276 = vshrl.u32 2102212464, %v1267
        %v1277 = vor.u32 %v1275, %v1276
        %v1278 = vshll.u32 2102212464, %v1266
        %v1279 = vshrl.u32 920167782, %v1267
        %v1280 = vor.u32 %v1278, %v1279
        %v1281 = vshll.u32 920167782, %v1266
        %v1282 = vshrl.u32 1326507024, %v1267
        %v1283 = vor.u32 %v1281, %v1282
        %vm1284 = vcmp.lt.s32.totalorder %v1265, 1
        %vm1285 = vcmp.lt.s32.totalorder %v1265, 2
        %vm1286 = vcmp.lt.s32.totalorder %v1265, 3
        %vm1287 = vcmp.lt.s32.totalorder %v1265, 4
        %v1288 = vsel %vm1284, %v1268, %v1271
        %v1289 = vsel %vm1287, %v1277, 2102212464
        %v1290 = vsel %vm1286, %v1274, %v1289
        %v1291 = vsel %vm1285, %v1288, %v1290
        %v1292 = vsel %vm1284, %v1271, %v1274
        %v1293 = vsel %vm1287, %v1280, 920167782
        %v1294 = vsel %vm1286, %v1277, %v1293
        %v1295 = vsel %vm1285, %v1292, %v1294
        %v1296 = vsel %vm1284, %v1274, %v1277
        %v1297 = vsel %vm1287, %v1283, 1326507024
        %v1298 = vsel %vm1286, %v1280, %v1297
        %v1299 = vsel %vm1285, %v1296, %v1298
        %v1300 = vshll.u32 %v1260, 8
        %v1301 = vmul.u32.u64.compose %v1300, %v1299
        %v1302 = vextract.low.u32 %v1301
        %v1303 = vextract.high.u32 %v1301
        %v1304 = vmul.u32.u64.compose %v1300, %v1295
        %v1305 = vextract.low.u32 %v1304
        %v1306 = vextract.high.u32 %v1304
        %v1307 = vmul.u32 %v1300, %v1291
        %v1308 = vadd.s32 %v1303, %v1305
        %vm1309 = vc.u32 %v1303, %v1305
        %v1310 = vadd.s32 %v1306, 1
        %v1311 = vsel %vm1309, %v1310, %v1306
        %v1312 = vadd.s32 %v1307, %v1311
        %v1313 = vadd.s32 %v1312, 536870912
        %v1314 = vshrl.u32 %v1313, 30
        %v1315 = vshll.u32 %v1314, 30
        %v1316 = vsub.s32 %v1312, %v1315
        %vm1317 = vcmp.lt.s32.totalorder %v1316, 0
        %v1318 = vsub.s32 0, %v1316
        %v1319 = vsel %vm1317, %v1318, %v1316
        %v1320 = vclz %v1319
        %v1321 = vsub.s32 %v1320, 2
        %vm1322 = vcmp.gt.s32.totalorder 0, %v1321
        %v1323 = vsel %vm1322, 0, %v1321
        %v1324 = vsub.s32 32, %v1323
        %v1325 = vshll.u32 %v1316, %v1323
        %v1326 = vshrl.u32 %v1308, %v1324
        %v1327 = vor.u32 %v1325, %v1326
        %v1328 = vsub.s32 4294967266, %v1323
        %v1329 = vadd.s32 %v1328, 127
        %v1330 = vshll.u32 %v1329, 23
        %v1331 = vor.u32 4788187, %v1330
        %v1332 = vand.u32 2147483647, %v1331
        %v1334 = vcvt.s32.f32 %v1327
        %v1335 = vmul.f32 %v1334, %v1332
        %v1336 = vxor.u32 %v1335, 2147483648
        %v1337 = vsel %vm1254, %v1336, %v1335
        %v1338 = vsub.s32 4, %v1314
        %v1339 = vsel %vm1254, %v1338, %v1314
        %v1340 = vsel %vm1253, %v1040, %v1337
        %v1341 = vsel %vm1253, 0, %v1339
        %v1342 = vcosq.f32.pop %v1340
        %v1343 = vsinq.f32.pop %v1340
        %vm1344 = vweird.f32 %v1040
        %v1345 = vand.u32 %v1341, 3
        %vm1346 = vcmp.lt.s32.totalorder %v1345, 2
        %vm1347 = vcmp.eq.s32.totalorder %v1345, 0
        %v1348 = vxor.u32 %v1343, 2147483648
        %v1349 = vsel %vm1347, %v1342, %v1348
        %vm1350 = vcmp.eq.s32.totalorder %v1345, 2
        %v1351 = vxor.u32 %v1342, 2147483648
        %v1352 = vsel %vm1350, %v1351, %v1343
        %v1353 = vsel %vm1346, %v1349, %v1352
        %v1354 = vsel %vm1344, nan, %v1353
        %v1355 = vand.u32 2147483647, %v1041
        %vm1356 = vcmp.le.f32.partialorder %v1355, 0.7853982
        %vm1357 = vcmp.lt.s32.totalorder %v1041, 0
        %v1358 = vand.u32 %v1041, 2139095040
        %v1359 = vshrl.u32 %v1358, 23
        %v1360 = vsub.s32 %v1359, 127
        %v1361 = vand.u32 2147483647, %v1041
        %v1362 = vand.u32 %v1361, 8388607
        %v1363 = vor.u32 %v1362, 8388608
        %v1364 = vsub.s32 0, %v1363
        %v1365 = vadd.s32 %v1360, 1
        %vm1366 = vcmp.gt.s32.totalorder %v1365, 0
        %v1367 = vsel %vm1366, %v1365, 0
        %v1368 = vshrl.u32 %v1367, 5
        %v1369 = vand.u32 %v1367, 31
        %v1370 = vsub.s32 32, %v1369
        %v1371 = vshrl.u32 683565275, %v1370
        %v1372 = vshll.u32 683565275, %v1369
        %v1373 = vshrl.u32 2475754826, %v1370
        %v1374 = vor.u32 %v1372, %v1373
        %v1375 = vshll.u32 2475754826, %v1369
        %v1376 = vshrl.u32 2131351028, %v1370
        %v1377 = vor.u32 %v1375, %v1376
        %v1378 = vshll.u32 2131351028, %v1369
        %v1379 = vshrl.u32 2102212464, %v1370
        %v1380 = vor.u32 %v1378, %v1379
        %v1381 = vshll.u32 2102212464, %v1369
        %v1382 = vshrl.u32 920167782, %v1370
        %v1383 = vor.u32 %v1381, %v1382
        %v1384 = vshll.u32 920167782, %v1369
        %v1385 = vshrl.u32 1326507024, %v1370
        %v1386 = vor.u32 %v1384, %v1385
        %vm1387 = vcmp.lt.s32.totalorder %v1368, 1
        %vm1388 = vcmp.lt.s32.totalorder %v1368, 2
        %vm1389 = vcmp.lt.s32.totalorder %v1368, 3
        %vm1390 = vcmp.lt.s32.totalorder %v1368, 4
        %v1391 = vsel %vm1387, %v1371, %v1374
        %v1392 = vsel %vm1390, %v1380, 2102212464
        %v1393 = vsel %vm1389, %v1377, %v1392
        %v1394 = vsel %vm1388, %v1391, %v1393
        %v1395 = vsel %vm1387, %v1374, %v1377
        %v1396 = vsel %vm1390, %v1383, 920167782
        %v1397 = vsel %vm1389, %v1380, %v1396
        %v1398 = vsel %vm1388, %v1395, %v1397
        %v1399 = vsel %vm1387, %v1377, %v1380
        %v1400 = vsel %vm1390, %v1386, 1326507024
        %v1401 = vsel %vm1389, %v1383, %v1400
        %v1402 = vsel %vm1388, %v1399, %v1401
        %v1403 = vshll.u32 %v1363, 8
        %v1404 = vmul.u32.u64.compose %v1403, %v1402
        %v1405 = vextract.low.u32 %v1404
        %v1406 = vextract.high.u32 %v1404
        %v1407 = vmul.u32.u64.compose %v1403, %v1398
        %v1408 = vextract.low.u32 %v1407
        %v1409 = vextract.high.u32 %v1407
        %v1410 = vmul.u32 %v1403, %v1394
        %v1411 = vadd.s32 %v1406, %v1408
        %vm1412 = vc.u32 %v1406, %v1408
        %v1413 = vadd.s32 %v1409, 1
        %v1414 = vsel %vm1412, %v1413, %v1409
        %v1415 = vadd.s32 %v1410, %v1414
        %v1416 = vadd.s32 %v1415, 536870912
        %v1417 = vshrl.u32 %v1416, 30
        %v1418 = vshll.u32 %v1417, 30
        %v1419 = vsub.s32 %v1415, %v1418
        %vm1420 = vcmp.lt.s32.totalorder %v1419, 0
        %v1421 = vsub.s32 0, %v1419
        %v1422 = vsel %vm1420, %v1421, %v1419
        %v1423 = vclz %v1422
        %v1424 = vsub.s32 %v1423, 2
        %vm1425 = vcmp.gt.s32.totalorder 0, %v1424
        %v1426 = vsel %vm1425, 0, %v1424
        %v1427 = vsub.s32 32, %v1426
        %v1428 = vshll.u32 %v1419, %v1426
        %v1429 = vshrl.u32 %v1411, %v1427
        %v1430 = vor.u32 %v1428, %v1429
        %v1431 = vsub.s32 4294967266, %v1426
        %v1432 = vadd.s32 %v1431, 127
        %v1433 = vshll.u32 %v1432, 23
        %v1434 = vor.u32 4788187, %v1433
        %v1435 = vand.u32 2147483647, %v1434
        %v1437 = vcvt.s32.f32 %v1430
        %v1438 = vmul.f32 %v1437, %v1435
        %v1439 = vxor.u32 %v1438, 2147483648
        %v1440 = vsel %vm1357, %v1439, %v1438
        %v1441 = vsub.s32 4, %v1417
        %v1442 = vsel %vm1357, %v1441, %v1417
        %v1443 = vsel %vm1356, %v1041, %v1440
        %v1444 = vsel %vm1356, 0, %v1442
        %v1445 = vcosq.f32.pop %v1443
        %v1446 = vsinq.f32.pop %v1443
        %vm1447 = vweird.f32 %v1041
        %v1448 = vand.u32 %v1444, 3
        %vm1449 = vcmp.lt.s32.totalorder %v1448, 2
        %vm1450 = vcmp.eq.s32.totalorder %v1448, 0
        %v1451 = vxor.u32 %v1446, 2147483648
        %v1452 = vsel %vm1450, %v1445, %v1451
        %vm1453 = vcmp.eq.s32.totalorder %v1448, 2
        %v1454 = vxor.u32 %v1445, 2147483648
        %v1455 = vsel %vm1453, %v1454, %v1446
        %v1456 = vsel %vm1449, %v1452, %v1455
        %v1457 = vsel %vm1447, nan, %v1456
        %1458 = vst [vmem:[%s159 + $0xa0] sm:$0xff] %v1354
        %1459 = vst [vmem:[%s159 + $0xa8] sm:$0xff] %v1457
        %v1460 = vld [vmem:[%s1 + $0x18] sm:$0xff]
        %1462 = vset.pattern.permute.xlu0 0
        %1463 = vperm.xlu0 %1462, %v1460
        %v1464 = vpop.permute.xlu0 %1463
        %v1466 = vmul.f32 %v176, %v1464
        %v1467 = vmul.f32 %v180, %v1464
        %v1468 = vand.u32 2147483647, %v1466
        %vm1469 = vcmp.le.f32.partialorder %v1468, 0.7853982
        %vm1470 = vcmp.lt.s32.totalorder %v1466, 0
        %v1471 = vand.u32 %v1466, 2139095040
        %v1472 = vshrl.u32 %v1471, 23
        %v1473 = vsub.s32 %v1472, 127
        %v1474 = vand.u32 2147483647, %v1466
        %v1475 = vand.u32 %v1474, 8388607
        %v1476 = vor.u32 %v1475, 8388608
        %v1477 = vsub.s32 0, %v1476
        %v1478 = vadd.s32 %v1473, 1
        %vm1479 = vcmp.gt.s32.totalorder %v1478, 0
        %v1480 = vsel %vm1479, %v1478, 0
        %v1481 = vshrl.u32 %v1480, 5
        %v1482 = vand.u32 %v1480, 31
        %v1483 = vsub.s32 32, %v1482
        %v1484 = vshrl.u32 683565275, %v1483
        %v1485 = vshll.u32 683565275, %v1482
        %v1486 = vshrl.u32 2475754826, %v1483
        %v1487 = vor.u32 %v1485, %v1486
        %v1488 = vshll.u32 2475754826, %v1482
        %v1489 = vshrl.u32 2131351028, %v1483
        %v1490 = vor.u32 %v1488, %v1489
        %v1491 = vshll.u32 2131351028, %v1482
        %v1492 = vshrl.u32 2102212464, %v1483
        %v1493 = vor.u32 %v1491, %v1492
        %v1494 = vshll.u32 2102212464, %v1482
        %v1495 = vshrl.u32 920167782, %v1483
        %v1496 = vor.u32 %v1494, %v1495
        %v1497 = vshll.u32 920167782, %v1482
        %v1498 = vshrl.u32 1326507024, %v1483
        %v1499 = vor.u32 %v1497, %v1498
        %vm1500 = vcmp.lt.s32.totalorder %v1481, 1
        %vm1501 = vcmp.lt.s32.totalorder %v1481, 2
        %vm1502 = vcmp.lt.s32.totalorder %v1481, 3
        %vm1503 = vcmp.lt.s32.totalorder %v1481, 4
        %v1504 = vsel %vm1500, %v1484, %v1487
        %v1505 = vsel %vm1503, %v1493, 2102212464
        %v1506 = vsel %vm1502, %v1490, %v1505
        %v1507 = vsel %vm1501, %v1504, %v1506
        %v1508 = vsel %vm1500, %v1487, %v1490
        %v1509 = vsel %vm1503, %v1496, 920167782
        %v1510 = vsel %vm1502, %v1493, %v1509
        %v1511 = vsel %vm1501, %v1508, %v1510
        %v1512 = vsel %vm1500, %v1490, %v1493
        %v1513 = vsel %vm1503, %v1499, 1326507024
        %v1514 = vsel %vm1502, %v1496, %v1513
        %v1515 = vsel %vm1501, %v1512, %v1514
        %v1516 = vshll.u32 %v1476, 8
        %v1517 = vmul.u32.u64.compose %v1516, %v1515
        %v1518 = vextract.low.u32 %v1517
        %v1519 = vextract.high.u32 %v1517
        %v1520 = vmul.u32.u64.compose %v1516, %v1511
        %v1521 = vextract.low.u32 %v1520
        %v1522 = vextract.high.u32 %v1520
        %v1523 = vmul.u32 %v1516, %v1507
        %v1524 = vadd.s32 %v1519, %v1521
        %vm1525 = vc.u32 %v1519, %v1521
        %v1526 = vadd.s32 %v1522, 1
        %v1527 = vsel %vm1525, %v1526, %v1522
        %v1528 = vadd.s32 %v1523, %v1527
        %v1529 = vadd.s32 %v1528, 536870912
        %v1530 = vshrl.u32 %v1529, 30
        %v1531 = vshll.u32 %v1530, 30
        %v1532 = vsub.s32 %v1528, %v1531
        %vm1533 = vcmp.lt.s32.totalorder %v1532, 0
        %v1534 = vsub.s32 0, %v1532
        %v1535 = vsel %vm1533, %v1534, %v1532
        %v1536 = vclz %v1535
        %v1537 = vsub.s32 %v1536, 2
        %vm1538 = vcmp.gt.s32.totalorder 0, %v1537
        %v1539 = vsel %vm1538, 0, %v1537
        %v1540 = vsub.s32 32, %v1539
        %v1541 = vshll.u32 %v1532, %v1539
        %v1542 = vshrl.u32 %v1524, %v1540
        %v1543 = vor.u32 %v1541, %v1542
        %v1544 = vsub.s32 4294967266, %v1539
        %v1545 = vadd.s32 %v1544, 127
        %v1546 = vshll.u32 %v1545, 23
        %v1547 = vor.u32 4788187, %v1546
        %v1548 = vand.u32 2147483647, %v1547
        %v1550 = vcvt.s32.f32 %v1543
        %v1551 = vmul.f32 %v1550, %v1548
        %v1552 = vxor.u32 %v1551, 2147483648
        %v1553 = vsel %vm1470, %v1552, %v1551
        %v1554 = vsub.s32 4, %v1530
        %v1555 = vsel %vm1470, %v1554, %v1530
        %v1556 = vsel %vm1469, %v1466, %v1553
        %v1557 = vsel %vm1469, 0, %v1555
        %v1558 = vcosq.f32.pop %v1556
        %v1559 = vsinq.f32.pop %v1556
        %vm1560 = vweird.f32 %v1466
        %v1561 = vadd.s32 %v1557, 3
        %v1562 = vand.u32 %v1561, 3
        %vm1563 = vcmp.lt.s32.totalorder %v1562, 2
        %vm1564 = vcmp.eq.s32.totalorder %v1562, 0
        %v1565 = vxor.u32 %v1559, 2147483648
        %v1566 = vsel %vm1564, %v1558, %v1565
        %vm1567 = vcmp.eq.s32.totalorder %v1562, 2
        %v1568 = vxor.u32 %v1558, 2147483648
        %v1569 = vsel %vm1567, %v1568, %v1559
        %v1570 = vsel %vm1563, %v1566, %v1569
        %v1571 = vsel %vm1560, nan, %v1570
        %v1572 = vand.u32 2147483647, %v1467
        %vm1573 = vcmp.le.f32.partialorder %v1572, 0.7853982
        %vm1574 = vcmp.lt.s32.totalorder %v1467, 0
        %v1575 = vand.u32 %v1467, 2139095040
        %v1576 = vshrl.u32 %v1575, 23
        %v1577 = vsub.s32 %v1576, 127
        %v1578 = vand.u32 2147483647, %v1467
        %v1579 = vand.u32 %v1578, 8388607
        %v1580 = vor.u32 %v1579, 8388608
        %v1581 = vsub.s32 0, %v1580
        %v1582 = vadd.s32 %v1577, 1
        %vm1583 = vcmp.gt.s32.totalorder %v1582, 0
        %v1584 = vsel %vm1583, %v1582, 0
        %v1585 = vshrl.u32 %v1584, 5
        %v1586 = vand.u32 %v1584, 31
        %v1587 = vsub.s32 32, %v1586
        %v1588 = vshrl.u32 683565275, %v1587
        %v1589 = vshll.u32 683565275, %v1586
        %v1590 = vshrl.u32 2475754826, %v1587
        %v1591 = vor.u32 %v1589, %v1590
        %v1592 = vshll.u32 2475754826, %v1586
        %v1593 = vshrl.u32 2131351028, %v1587
        %v1594 = vor.u32 %v1592, %v1593
        %v1595 = vshll.u32 2131351028, %v1586
        %v1596 = vshrl.u32 2102212464, %v1587
        %v1597 = vor.u32 %v1595, %v1596
        %v1598 = vshll.u32 2102212464, %v1586
        %v1599 = vshrl.u32 920167782, %v1587
        %v1600 = vor.u32 %v1598, %v1599
        %v1601 = vshll.u32 920167782, %v1586
        %v1602 = vshrl.u32 1326507024, %v1587
        %v1603 = vor.u32 %v1601, %v1602
        %vm1604 = vcmp.lt.s32.totalorder %v1585, 1
        %vm1605 = vcmp.lt.s32.totalorder %v1585, 2
        %vm1606 = vcmp.lt.s32.totalorder %v1585, 3
        %vm1607 = vcmp.lt.s32.totalorder %v1585, 4
        %v1608 = vsel %vm1604, %v1588, %v1591
        %v1609 = vsel %vm1607, %v1597, 2102212464
        %v1610 = vsel %vm1606, %v1594, %v1609
        %v1611 = vsel %vm1605, %v1608, %v1610
        %v1612 = vsel %vm1604, %v1591, %v1594
        %v1613 = vsel %vm1607, %v1600, 920167782
        %v1614 = vsel %vm1606, %v1597, %v1613
        %v1615 = vsel %vm1605, %v1612, %v1614
        %v1616 = vsel %vm1604, %v1594, %v1597
        %v1617 = vsel %vm1607, %v1603, 1326507024
        %v1618 = vsel %vm1606, %v1600, %v1617
        %v1619 = vsel %vm1605, %v1616, %v1618
        %v1620 = vshll.u32 %v1580, 8
        %v1621 = vmul.u32.u64.compose %v1620, %v1619
        %v1622 = vextract.low.u32 %v1621
        %v1623 = vextract.high.u32 %v1621
        %v1624 = vmul.u32.u64.compose %v1620, %v1615
        %v1625 = vextract.low.u32 %v1624
        %v1626 = vextract.high.u32 %v1624
        %v1627 = vmul.u32 %v1620, %v1611
        %v1628 = vadd.s32 %v1623, %v1625
        %vm1629 = vc.u32 %v1623, %v1625
        %v1630 = vadd.s32 %v1626, 1
        %v1631 = vsel %vm1629, %v1630, %v1626
        %v1632 = vadd.s32 %v1627, %v1631
        %v1633 = vadd.s32 %v1632, 536870912
        %v1634 = vshrl.u32 %v1633, 30
        %v1635 = vshll.u32 %v1634, 30
        %v1636 = vsub.s32 %v1632, %v1635
        %vm1637 = vcmp.lt.s32.totalorder %v1636, 0
        %v1638 = vsub.s32 0, %v1636
        %v1639 = vsel %vm1637, %v1638, %v1636
        %v1640 = vclz %v1639
        %v1641 = vsub.s32 %v1640, 2
        %vm1642 = vcmp.gt.s32.totalorder 0, %v1641
        %v1643 = vsel %vm1642, 0, %v1641
        %v1644 = vsub.s32 32, %v1643
        %v1645 = vshll.u32 %v1636, %v1643
        %v1646 = vshrl.u32 %v1628, %v1644
        %v1647 = vor.u32 %v1645, %v1646
        %v1648 = vsub.s32 4294967266, %v1643
        %v1649 = vadd.s32 %v1648, 127
        %v1650 = vshll.u32 %v1649, 23
        %v1651 = vor.u32 4788187, %v1650
        %v1652 = vand.u32 2147483647, %v1651
        %v1654 = vcvt.s32.f32 %v1647
        %v1655 = vmul.f32 %v1654, %v1652
        %v1656 = vxor.u32 %v1655, 2147483648
        %v1657 = vsel %vm1574, %v1656, %v1655
        %v1658 = vsub.s32 4, %v1634
        %v1659 = vsel %vm1574, %v1658, %v1634
        %v1660 = vsel %vm1573, %v1467, %v1657
        %v1661 = vsel %vm1573, 0, %v1659
        %v1662 = vcosq.f32.pop %v1660
        %v1663 = vsinq.f32.pop %v1660
        %vm1664 = vweird.f32 %v1467
        %v1665 = vadd.s32 %v1661, 3
        %v1666 = vand.u32 %v1665, 3
        %vm1667 = vcmp.lt.s32.totalorder %v1666, 2
        %vm1668 = vcmp.eq.s32.totalorder %v1666, 0
        %v1669 = vxor.u32 %v1663, 2147483648
        %v1670 = vsel %vm1668, %v1662, %v1669
        %vm1671 = vcmp.eq.s32.totalorder %v1666, 2
        %v1672 = vxor.u32 %v1662, 2147483648
        %v1673 = vsel %vm1671, %v1672, %v1663
        %v1674 = vsel %vm1667, %v1670, %v1673
        %v1675 = vsel %vm1664, nan, %v1674
        %1676 = vst [vmem:[%s159 + $0x30] sm:$0xff] %v1571
        %1677 = vst [vmem:[%s159 + $0x38] sm:$0xff] %v1675
        %v1678 = vand.u32 2147483647, %v1466
        %vm1679 = vcmp.le.f32.partialorder %v1678, 0.7853982
        %vm1680 = vcmp.lt.s32.totalorder %v1466, 0
        %v1681 = vand.u32 %v1466, 2139095040
        %v1682 = vshrl.u32 %v1681, 23
        %v1683 = vsub.s32 %v1682, 127
        %v1684 = vand.u32 2147483647, %v1466
        %v1685 = vand.u32 %v1684, 8388607
        %v1686 = vor.u32 %v1685, 8388608
        %v1687 = vsub.s32 0, %v1686
        %v1688 = vadd.s32 %v1683, 1
        %vm1689 = vcmp.gt.s32.totalorder %v1688, 0
        %v1690 = vsel %vm1689, %v1688, 0
        %v1691 = vshrl.u32 %v1690, 5
        %v1692 = vand.u32 %v1690, 31
        %v1693 = vsub.s32 32, %v1692
        %v1694 = vshrl.u32 683565275, %v1693
        %v1695 = vshll.u32 683565275, %v1692
        %v1696 = vshrl.u32 2475754826, %v1693
        %v1697 = vor.u32 %v1695, %v1696
        %v1698 = vshll.u32 2475754826, %v1692
        %v1699 = vshrl.u32 2131351028, %v1693
        %v1700 = vor.u32 %v1698, %v1699
        %v1701 = vshll.u32 2131351028, %v1692
        %v1702 = vshrl.u32 2102212464, %v1693
        %v1703 = vor.u32 %v1701, %v1702
        %v1704 = vshll.u32 2102212464, %v1692
        %v1705 = vshrl.u32 920167782, %v1693
        %v1706 = vor.u32 %v1704, %v1705
        %v1707 = vshll.u32 920167782, %v1692
        %v1708 = vshrl.u32 1326507024, %v1693
        %v1709 = vor.u32 %v1707, %v1708
        %vm1710 = vcmp.lt.s32.totalorder %v1691, 1
        %vm1711 = vcmp.lt.s32.totalorder %v1691, 2
        %vm1712 = vcmp.lt.s32.totalorder %v1691, 3
        %vm1713 = vcmp.lt.s32.totalorder %v1691, 4
        %v1714 = vsel %vm1710, %v1694, %v1697
        %v1715 = vsel %vm1713, %v1703, 2102212464
        %v1716 = vsel %vm1712, %v1700, %v1715
        %v1717 = vsel %vm1711, %v1714, %v1716
        %v1718 = vsel %vm1710, %v1697, %v1700
        %v1719 = vsel %vm1713, %v1706, 920167782
        %v1720 = vsel %vm1712, %v1703, %v1719
        %v1721 = vsel %vm1711, %v1718, %v1720
        %v1722 = vsel %vm1710, %v1700, %v1703
        %v1723 = vsel %vm1713, %v1709, 1326507024
        %v1724 = vsel %vm1712, %v1706, %v1723
        %v1725 = vsel %vm1711, %v1722, %v1724
        %v1726 = vshll.u32 %v1686, 8
        %v1727 = vmul.u32.u64.compose %v1726, %v1725
        %v1728 = vextract.low.u32 %v1727
        %v1729 = vextract.high.u32 %v1727
        %v1730 = vmul.u32.u64.compose %v1726, %v1721
        %v1731 = vextract.low.u32 %v1730
        %v1732 = vextract.high.u32 %v1730
        %v1733 = vmul.u32 %v1726, %v1717
        %v1734 = vadd.s32 %v1729, %v1731
        %vm1735 = vc.u32 %v1729, %v1731
        %v1736 = vadd.s32 %v1732, 1
        %v1737 = vsel %vm1735, %v1736, %v1732
        %v1738 = vadd.s32 %v1733, %v1737
        %v1739 = vadd.s32 %v1738, 536870912
        %v1740 = vshrl.u32 %v1739, 30
        %v1741 = vshll.u32 %v1740, 30
        %v1742 = vsub.s32 %v1738, %v1741
        %vm1743 = vcmp.lt.s32.totalorder %v1742, 0
        %v1744 = vsub.s32 0, %v1742
        %v1745 = vsel %vm1743, %v1744, %v1742
        %v1746 = vclz %v1745
        %v1747 = vsub.s32 %v1746, 2
        %vm1748 = vcmp.gt.s32.totalorder 0, %v1747
        %v1749 = vsel %vm1748, 0, %v1747
        %v1750 = vsub.s32 32, %v1749
        %v1751 = vshll.u32 %v1742, %v1749
        %v1752 = vshrl.u32 %v1734, %v1750
        %v1753 = vor.u32 %v1751, %v1752
        %v1754 = vsub.s32 4294967266, %v1749
        %v1755 = vadd.s32 %v1754, 127
        %v1756 = vshll.u32 %v1755, 23
        %v1757 = vor.u32 4788187, %v1756
        %v1758 = vand.u32 2147483647, %v1757
        %v1760 = vcvt.s32.f32 %v1753
        %v1761 = vmul.f32 %v1760, %v1758
        %v1762 = vxor.u32 %v1761, 2147483648
        %v1763 = vsel %vm1680, %v1762, %v1761
        %v1764 = vsub.s32 4, %v1740
        %v1765 = vsel %vm1680, %v1764, %v1740
        %v1766 = vsel %vm1679, %v1466, %v1763
        %v1767 = vsel %vm1679, 0, %v1765
        %v1768 = vcosq.f32.pop %v1766
        %v1769 = vsinq.f32.pop %v1766
        %vm1770 = vweird.f32 %v1466
        %v1771 = vand.u32 %v1767, 3
        %vm1772 = vcmp.lt.s32.totalorder %v1771, 2
        %vm1773 = vcmp.eq.s32.totalorder %v1771, 0
        %v1774 = vxor.u32 %v1769, 2147483648
        %v1775 = vsel %vm1773, %v1768, %v1774
        %vm1776 = vcmp.eq.s32.totalorder %v1771, 2
        %v1777 = vxor.u32 %v1768, 2147483648
        %v1778 = vsel %vm1776, %v1777, %v1769
        %v1779 = vsel %vm1772, %v1775, %v1778
        %v1780 = vsel %vm1770, nan, %v1779
        %v1781 = vand.u32 2147483647, %v1467
        %vm1782 = vcmp.le.f32.partialorder %v1781, 0.7853982
        %vm1783 = vcmp.lt.s32.totalorder %v1467, 0
        %v1784 = vand.u32 %v1467, 2139095040
        %v1785 = vshrl.u32 %v1784, 23
        %v1786 = vsub.s32 %v1785, 127
        %v1787 = vand.u32 2147483647, %v1467
        %v1788 = vand.u32 %v1787, 8388607
        %v1789 = vor.u32 %v1788, 8388608
        %v1790 = vsub.s32 0, %v1789
        %v1791 = vadd.s32 %v1786, 1
        %vm1792 = vcmp.gt.s32.totalorder %v1791, 0
        %v1793 = vsel %vm1792, %v1791, 0
        %v1794 = vshrl.u32 %v1793, 5
        %v1795 = vand.u32 %v1793, 31
        %v1796 = vsub.s32 32, %v1795
        %v1797 = vshrl.u32 683565275, %v1796
        %v1798 = vshll.u32 683565275, %v1795
        %v1799 = vshrl.u32 2475754826, %v1796
        %v1800 = vor.u32 %v1798, %v1799
        %v1801 = vshll.u32 2475754826, %v1795
        %v1802 = vshrl.u32 2131351028, %v1796
        %v1803 = vor.u32 %v1801, %v1802
        %v1804 = vshll.u32 2131351028, %v1795
        %v1805 = vshrl.u32 2102212464, %v1796
        %v1806 = vor.u32 %v1804, %v1805
        %v1807 = vshll.u32 2102212464, %v1795
        %v1808 = vshrl.u32 920167782, %v1796
        %v1809 = vor.u32 %v1807, %v1808
        %v1810 = vshll.u32 920167782, %v1795
        %v1811 = vshrl.u32 1326507024, %v1796
        %v1812 = vor.u32 %v1810, %v1811
        %vm1813 = vcmp.lt.s32.totalorder %v1794, 1
        %vm1814 = vcmp.lt.s32.totalorder %v1794, 2
        %vm1815 = vcmp.lt.s32.totalorder %v1794, 3
        %vm1816 = vcmp.lt.s32.totalorder %v1794, 4
        %v1817 = vsel %vm1813, %v1797, %v1800
        %v1818 = vsel %vm1816, %v1806, 2102212464
        %v1819 = vsel %vm1815, %v1803, %v1818
        %v1820 = vsel %vm1814, %v1817, %v1819
        %v1821 = vsel %vm1813, %v1800, %v1803
        %v1822 = vsel %vm1816, %v1809, 920167782
        %v1823 = vsel %vm1815, %v1806, %v1822
        %v1824 = vsel %vm1814, %v1821, %v1823
        %v1825 = vsel %vm1813, %v1803, %v1806
        %v1826 = vsel %vm1816, %v1812, 1326507024
        %v1827 = vsel %vm1815, %v1809, %v1826
        %v1828 = vsel %vm1814, %v1825, %v1827
        %v1829 = vshll.u32 %v1789, 8
        %v1830 = vmul.u32.u64.compose %v1829, %v1828
        %v1831 = vextract.low.u32 %v1830
        %v1832 = vextract.high.u32 %v1830
        %v1833 = vmul.u32.u64.compose %v1829, %v1824
        %v1834 = vextract.low.u32 %v1833
        %v1835 = vextract.high.u32 %v1833
        %v1836 = vmul.u32 %v1829, %v1820
        %v1837 = vadd.s32 %v1832, %v1834
        %vm1838 = vc.u32 %v1832, %v1834
        %v1839 = vadd.s32 %v1835, 1
        %v1840 = vsel %vm1838, %v1839, %v1835
        %v1841 = vadd.s32 %v1836, %v1840
        %v1842 = vadd.s32 %v1841, 536870912
        %v1843 = vshrl.u32 %v1842, 30
        %v1844 = vshll.u32 %v1843, 30
        %v1845 = vsub.s32 %v1841, %v1844
        %vm1846 = vcmp.lt.s32.totalorder %v1845, 0
        %v1847 = vsub.s32 0, %v1845
        %v1848 = vsel %vm1846, %v1847, %v1845
        %v1849 = vclz %v1848
        %v1850 = vsub.s32 %v1849, 2
        %vm1851 = vcmp.gt.s32.totalorder 0, %v1850
        %v1852 = vsel %vm1851, 0, %v1850
        %v1853 = vsub.s32 32, %v1852
        %v1854 = vshll.u32 %v1845, %v1852
        %v1855 = vshrl.u32 %v1837, %v1853
        %v1856 = vor.u32 %v1854, %v1855
        %v1857 = vsub.s32 4294967266, %v1852
        %v1858 = vadd.s32 %v1857, 127
        %v1859 = vshll.u32 %v1858, 23
        %v1860 = vor.u32 4788187, %v1859
        %v1861 = vand.u32 2147483647, %v1860
        %v1863 = vcvt.s32.f32 %v1856
        %v1864 = vmul.f32 %v1863, %v1861
        %v1865 = vxor.u32 %v1864, 2147483648
        %v1866 = vsel %vm1783, %v1865, %v1864
        %v1867 = vsub.s32 4, %v1843
        %v1868 = vsel %vm1783, %v1867, %v1843
        %v1869 = vsel %vm1782, %v1467, %v1866
        %v1870 = vsel %vm1782, 0, %v1868
        %v1871 = vcosq.f32.pop %v1869
        %v1872 = vsinq.f32.pop %v1869
        %vm1873 = vweird.f32 %v1467
        %v1874 = vand.u32 %v1870, 3
        %vm1875 = vcmp.lt.s32.totalorder %v1874, 2
        %vm1876 = vcmp.eq.s32.totalorder %v1874, 0
        %v1877 = vxor.u32 %v1872, 2147483648
        %v1878 = vsel %vm1876, %v1871, %v1877
        %vm1879 = vcmp.eq.s32.totalorder %v1874, 2
        %v1880 = vxor.u32 %v1871, 2147483648
        %v1881 = vsel %vm1879, %v1880, %v1872
        %v1882 = vsel %vm1875, %v1878, %v1881
        %v1883 = vsel %vm1873, nan, %v1882
        %1884 = vst [vmem:[%s159 + $0xb0] sm:$0xff] %v1780
        %1885 = vst [vmem:[%s159 + $0xb8] sm:$0xff] %v1883
        %v1886 = vld [vmem:[%s1 + $0x20] sm:$0xff]
        %1888 = vset.pattern.permute.xlu0 0
        %1889 = vperm.xlu0 %1888, %v1886
        %v1890 = vpop.permute.xlu0 %1889
        %v1892 = vmul.f32 %v176, %v1890
        %v1893 = vmul.f32 %v180, %v1890
        %v1894 = vand.u32 2147483647, %v1892
        %vm1895 = vcmp.le.f32.partialorder %v1894, 0.7853982
        %vm1896 = vcmp.lt.s32.totalorder %v1892, 0
        %v1897 = vand.u32 %v1892, 2139095040
        %v1898 = vshrl.u32 %v1897, 23
        %v1899 = vsub.s32 %v1898, 127
        %v1900 = vand.u32 2147483647, %v1892
        %v1901 = vand.u32 %v1900, 8388607
        %v1902 = vor.u32 %v1901, 8388608
        %v1903 = vsub.s32 0, %v1902
        %v1904 = vadd.s32 %v1899, 1
        %vm1905 = vcmp.gt.s32.totalorder %v1904, 0
        %v1906 = vsel %vm1905, %v1904, 0
        %v1907 = vshrl.u32 %v1906, 5
        %v1908 = vand.u32 %v1906, 31
        %v1909 = vsub.s32 32, %v1908
        %v1910 = vshrl.u32 683565275, %v1909
        %v1911 = vshll.u32 683565275, %v1908
        %v1912 = vshrl.u32 2475754826, %v1909
        %v1913 = vor.u32 %v1911, %v1912
        %v1914 = vshll.u32 2475754826, %v1908
        %v1915 = vshrl.u32 2131351028, %v1909
        %v1916 = vor.u32 %v1914, %v1915
        %v1917 = vshll.u32 2131351028, %v1908
        %v1918 = vshrl.u32 2102212464, %v1909
        %v1919 = vor.u32 %v1917, %v1918
        %v1920 = vshll.u32 2102212464, %v1908
        %v1921 = vshrl.u32 920167782, %v1909
        %v1922 = vor.u32 %v1920, %v1921
        %v1923 = vshll.u32 920167782, %v1908
        %v1924 = vshrl.u32 1326507024, %v1909
        %v1925 = vor.u32 %v1923, %v1924
        %vm1926 = vcmp.lt.s32.totalorder %v1907, 1
        %vm1927 = vcmp.lt.s32.totalorder %v1907, 2
        %vm1928 = vcmp.lt.s32.totalorder %v1907, 3
        %vm1929 = vcmp.lt.s32.totalorder %v1907, 4
        %v1930 = vsel %vm1926, %v1910, %v1913
        %v1931 = vsel %vm1929, %v1919, 2102212464
        %v1932 = vsel %vm1928, %v1916, %v1931
        %v1933 = vsel %vm1927, %v1930, %v1932
        %v1934 = vsel %vm1926, %v1913, %v1916
        %v1935 = vsel %vm1929, %v1922, 920167782
        %v1936 = vsel %vm1928, %v1919, %v1935
        %v1937 = vsel %vm1927, %v1934, %v1936
        %v1938 = vsel %vm1926, %v1916, %v1919
        %v1939 = vsel %vm1929, %v1925, 1326507024
        %v1940 = vsel %vm1928, %v1922, %v1939
        %v1941 = vsel %vm1927, %v1938, %v1940
        %v1942 = vshll.u32 %v1902, 8
        %v1943 = vmul.u32.u64.compose %v1942, %v1941
        %v1944 = vextract.low.u32 %v1943
        %v1945 = vextract.high.u32 %v1943
        %v1946 = vmul.u32.u64.compose %v1942, %v1937
        %v1947 = vextract.low.u32 %v1946
        %v1948 = vextract.high.u32 %v1946
        %v1949 = vmul.u32 %v1942, %v1933
        %v1950 = vadd.s32 %v1945, %v1947
        %vm1951 = vc.u32 %v1945, %v1947
        %v1952 = vadd.s32 %v1948, 1
        %v1953 = vsel %vm1951, %v1952, %v1948
        %v1954 = vadd.s32 %v1949, %v1953
        %v1955 = vadd.s32 %v1954, 536870912
        %v1956 = vshrl.u32 %v1955, 30
        %v1957 = vshll.u32 %v1956, 30
        %v1958 = vsub.s32 %v1954, %v1957
        %vm1959 = vcmp.lt.s32.totalorder %v1958, 0
        %v1960 = vsub.s32 0, %v1958
        %v1961 = vsel %vm1959, %v1960, %v1958
        %v1962 = vclz %v1961
        %v1963 = vsub.s32 %v1962, 2
        %vm1964 = vcmp.gt.s32.totalorder 0, %v1963
        %v1965 = vsel %vm1964, 0, %v1963
        %v1966 = vsub.s32 32, %v1965
        %v1967 = vshll.u32 %v1958, %v1965
        %v1968 = vshrl.u32 %v1950, %v1966
        %v1969 = vor.u32 %v1967, %v1968
        %v1970 = vsub.s32 4294967266, %v1965
        %v1971 = vadd.s32 %v1970, 127
        %v1972 = vshll.u32 %v1971, 23
        %v1973 = vor.u32 4788187, %v1972
        %v1974 = vand.u32 2147483647, %v1973
        %v1976 = vcvt.s32.f32 %v1969
        %v1977 = vmul.f32 %v1976, %v1974
        %v1978 = vxor.u32 %v1977, 2147483648
        %v1979 = vsel %vm1896, %v1978, %v1977
        %v1980 = vsub.s32 4, %v1956
        %v1981 = vsel %vm1896, %v1980, %v1956
        %v1982 = vsel %vm1895, %v1892, %v1979
        %v1983 = vsel %vm1895, 0, %v1981
        %v1984 = vcosq.f32.pop %v1982
        %v1985 = vsinq.f32.pop %v1982
        %vm1986 = vweird.f32 %v1892
        %v1987 = vadd.s32 %v1983, 3
        %v1988 = vand.u32 %v1987, 3
        %vm1989 = vcmp.lt.s32.totalorder %v1988, 2
        %vm1990 = vcmp.eq.s32.totalorder %v1988, 0
        %v1991 = vxor.u32 %v1985, 2147483648
        %v1992 = vsel %vm1990, %v1984, %v1991
        %vm1993 = vcmp.eq.s32.totalorder %v1988, 2
        %v1994 = vxor.u32 %v1984, 2147483648
        %v1995 = vsel %vm1993, %v1994, %v1985
        %v1996 = vsel %vm1989, %v1992, %v1995
        %v1997 = vsel %vm1986, nan, %v1996
        %v1998 = vand.u32 2147483647, %v1893
        %vm1999 = vcmp.le.f32.partialorder %v1998, 0.7853982
        %vm2000 = vcmp.lt.s32.totalorder %v1893, 0
        %v2001 = vand.u32 %v1893, 2139095040
        %v2002 = vshrl.u32 %v2001, 23
        %v2003 = vsub.s32 %v2002, 127
        %v2004 = vand.u32 2147483647, %v1893
        %v2005 = vand.u32 %v2004, 8388607
        %v2006 = vor.u32 %v2005, 8388608
        %v2007 = vsub.s32 0, %v2006
        %v2008 = vadd.s32 %v2003, 1
        %vm2009 = vcmp.gt.s32.totalorder %v2008, 0
        %v2010 = vsel %vm2009, %v2008, 0
        %v2011 = vshrl.u32 %v2010, 5
        %v2012 = vand.u32 %v2010, 31
        %v2013 = vsub.s32 32, %v2012
        %v2014 = vshrl.u32 683565275, %v2013
        %v2015 = vshll.u32 683565275, %v2012
        %v2016 = vshrl.u32 2475754826, %v2013
        %v2017 = vor.u32 %v2015, %v2016
        %v2018 = vshll.u32 2475754826, %v2012
        %v2019 = vshrl.u32 2131351028, %v2013
        %v2020 = vor.u32 %v2018, %v2019
        %v2021 = vshll.u32 2131351028, %v2012
        %v2022 = vshrl.u32 2102212464, %v2013
        %v2023 = vor.u32 %v2021, %v2022
        %v2024 = vshll.u32 2102212464, %v2012
        %v2025 = vshrl.u32 920167782, %v2013
        %v2026 = vor.u32 %v2024, %v2025
        %v2027 = vshll.u32 920167782, %v2012
        %v2028 = vshrl.u32 1326507024, %v2013
        %v2029 = vor.u32 %v2027, %v2028
        %vm2030 = vcmp.lt.s32.totalorder %v2011, 1
        %vm2031 = vcmp.lt.s32.totalorder %v2011, 2
        %vm2032 = vcmp.lt.s32.totalorder %v2011, 3
        %vm2033 = vcmp.lt.s32.totalorder %v2011, 4
        %v2034 = vsel %vm2030, %v2014, %v2017
        %v2035 = vsel %vm2033, %v2023, 2102212464
        %v2036 = vsel %vm2032, %v2020, %v2035
        %v2037 = vsel %vm2031, %v2034, %v2036
        %v2038 = vsel %vm2030, %v2017, %v2020
        %v2039 = vsel %vm2033, %v2026, 920167782
        %v2040 = vsel %vm2032, %v2023, %v2039
        %v2041 = vsel %vm2031, %v2038, %v2040
        %v2042 = vsel %vm2030, %v2020, %v2023
        %v2043 = vsel %vm2033, %v2029, 1326507024
        %v2044 = vsel %vm2032, %v2026, %v2043
        %v2045 = vsel %vm2031, %v2042, %v2044
        %v2046 = vshll.u32 %v2006, 8
        %v2047 = vmul.u32.u64.compose %v2046, %v2045
        %v2048 = vextract.low.u32 %v2047
        %v2049 = vextract.high.u32 %v2047
        %v2050 = vmul.u32.u64.compose %v2046, %v2041
        %v2051 = vextract.low.u32 %v2050
        %v2052 = vextract.high.u32 %v2050
        %v2053 = vmul.u32 %v2046, %v2037
        %v2054 = vadd.s32 %v2049, %v2051
        %vm2055 = vc.u32 %v2049, %v2051
        %v2056 = vadd.s32 %v2052, 1
        %v2057 = vsel %vm2055, %v2056, %v2052
        %v2058 = vadd.s32 %v2053, %v2057
        %v2059 = vadd.s32 %v2058, 536870912
        %v2060 = vshrl.u32 %v2059, 30
        %v2061 = vshll.u32 %v2060, 30
        %v2062 = vsub.s32 %v2058, %v2061
        %vm2063 = vcmp.lt.s32.totalorder %v2062, 0
        %v2064 = vsub.s32 0, %v2062
        %v2065 = vsel %vm2063, %v2064, %v2062
        %v2066 = vclz %v2065
        %v2067 = vsub.s32 %v2066, 2
        %vm2068 = vcmp.gt.s32.totalorder 0, %v2067
        %v2069 = vsel %vm2068, 0, %v2067
        %v2070 = vsub.s32 32, %v2069
        %v2071 = vshll.u32 %v2062, %v2069
        %v2072 = vshrl.u32 %v2054, %v2070
        %v2073 = vor.u32 %v2071, %v2072
        %v2074 = vsub.s32 4294967266, %v2069
        %v2075 = vadd.s32 %v2074, 127
        %v2076 = vshll.u32 %v2075, 23
        %v2077 = vor.u32 4788187, %v2076
        %v2078 = vand.u32 2147483647, %v2077
        %v2080 = vcvt.s32.f32 %v2073
        %v2081 = vmul.f32 %v2080, %v2078
        %v2082 = vxor.u32 %v2081, 2147483648
        %v2083 = vsel %vm2000, %v2082, %v2081
        %v2084 = vsub.s32 4, %v2060
        %v2085 = vsel %vm2000, %v2084, %v2060
        %v2086 = vsel %vm1999, %v1893, %v2083
        %v2087 = vsel %vm1999, 0, %v2085
        %v2088 = vcosq.f32.pop %v2086
        %v2089 = vsinq.f32.pop %v2086
        %vm2090 = vweird.f32 %v1893
        %v2091 = vadd.s32 %v2087, 3
        %v2092 = vand.u32 %v2091, 3
        %vm2093 = vcmp.lt.s32.totalorder %v2092, 2
        %vm2094 = vcmp.eq.s32.totalorder %v2092, 0
        %v2095 = vxor.u32 %v2089, 2147483648
        %v2096 = vsel %vm2094, %v2088, %v2095
        %vm2097 = vcmp.eq.s32.totalorder %v2092, 2
        %v2098 = vxor.u32 %v2088, 2147483648
        %v2099 = vsel %vm2097, %v2098, %v2089
        %v2100 = vsel %vm2093, %v2096, %v2099
        %v2101 = vsel %vm2090, nan, %v2100
        %2102 = vst [vmem:[%s159 + $0x40] sm:$0xff] %v1997
        %2103 = vst [vmem:[%s159 + $0x48] sm:$0xff] %v2101
        %v2104 = vand.u32 2147483647, %v1892
        %vm2105 = vcmp.le.f32.partialorder %v2104, 0.7853982
        %vm2106 = vcmp.lt.s32.totalorder %v1892, 0
        %v2107 = vand.u32 %v1892, 2139095040
        %v2108 = vshrl.u32 %v2107, 23
        %v2109 = vsub.s32 %v2108, 127
        %v2110 = vand.u32 2147483647, %v1892
        %v2111 = vand.u32 %v2110, 8388607
        %v2112 = vor.u32 %v2111, 8388608
        %v2113 = vsub.s32 0, %v2112
        %v2114 = vadd.s32 %v2109, 1
        %vm2115 = vcmp.gt.s32.totalorder %v2114, 0
        %v2116 = vsel %vm2115, %v2114, 0
        %v2117 = vshrl.u32 %v2116, 5
        %v2118 = vand.u32 %v2116, 31
        %v2119 = vsub.s32 32, %v2118
        %v2120 = vshrl.u32 683565275, %v2119
        %v2121 = vshll.u32 683565275, %v2118
        %v2122 = vshrl.u32 2475754826, %v2119
        %v2123 = vor.u32 %v2121, %v2122
        %v2124 = vshll.u32 2475754826, %v2118
        %v2125 = vshrl.u32 2131351028, %v2119
        %v2126 = vor.u32 %v2124, %v2125
        %v2127 = vshll.u32 2131351028, %v2118
        %v2128 = vshrl.u32 2102212464, %v2119
        %v2129 = vor.u32 %v2127, %v2128
        %v2130 = vshll.u32 2102212464, %v2118
        %v2131 = vshrl.u32 920167782, %v2119
        %v2132 = vor.u32 %v2130, %v2131
        %v2133 = vshll.u32 920167782, %v2118
        %v2134 = vshrl.u32 1326507024, %v2119
        %v2135 = vor.u32 %v2133, %v2134
        %vm2136 = vcmp.lt.s32.totalorder %v2117, 1
        %vm2137 = vcmp.lt.s32.totalorder %v2117, 2
        %vm2138 = vcmp.lt.s32.totalorder %v2117, 3
        %vm2139 = vcmp.lt.s32.totalorder %v2117, 4
        %v2140 = vsel %vm2136, %v2120, %v2123
        %v2141 = vsel %vm2139, %v2129, 2102212464
        %v2142 = vsel %vm2138, %v2126, %v2141
        %v2143 = vsel %vm2137, %v2140, %v2142
        %v2144 = vsel %vm2136, %v2123, %v2126
        %v2145 = vsel %vm2139, %v2132, 920167782
        %v2146 = vsel %vm2138, %v2129, %v2145
        %v2147 = vsel %vm2137, %v2144, %v2146
        %v2148 = vsel %vm2136, %v2126, %v2129
        %v2149 = vsel %vm2139, %v2135, 1326507024
        %v2150 = vsel %vm2138, %v2132, %v2149
        %v2151 = vsel %vm2137, %v2148, %v2150
        %v2152 = vshll.u32 %v2112, 8
        %v2153 = vmul.u32.u64.compose %v2152, %v2151
        %v2154 = vextract.low.u32 %v2153
        %v2155 = vextract.high.u32 %v2153
        %v2156 = vmul.u32.u64.compose %v2152, %v2147
        %v2157 = vextract.low.u32 %v2156
        %v2158 = vextract.high.u32 %v2156
        %v2159 = vmul.u32 %v2152, %v2143
        %v2160 = vadd.s32 %v2155, %v2157
        %vm2161 = vc.u32 %v2155, %v2157
        %v2162 = vadd.s32 %v2158, 1
        %v2163 = vsel %vm2161, %v2162, %v2158
        %v2164 = vadd.s32 %v2159, %v2163
        %v2165 = vadd.s32 %v2164, 536870912
        %v2166 = vshrl.u32 %v2165, 30
        %v2167 = vshll.u32 %v2166, 30
        %v2168 = vsub.s32 %v2164, %v2167
        %vm2169 = vcmp.lt.s32.totalorder %v2168, 0
        %v2170 = vsub.s32 0, %v2168
        %v2171 = vsel %vm2169, %v2170, %v2168
        %v2172 = vclz %v2171
        %v2173 = vsub.s32 %v2172, 2
        %vm2174 = vcmp.gt.s32.totalorder 0, %v2173
        %v2175 = vsel %vm2174, 0, %v2173
        %v2176 = vsub.s32 32, %v2175
        %v2177 = vshll.u32 %v2168, %v2175
        %v2178 = vshrl.u32 %v2160, %v2176
        %v2179 = vor.u32 %v2177, %v2178
        %v2180 = vsub.s32 4294967266, %v2175
        %v2181 = vadd.s32 %v2180, 127
        %v2182 = vshll.u32 %v2181, 23
        %v2183 = vor.u32 4788187, %v2182
        %v2184 = vand.u32 2147483647, %v2183
        %v2186 = vcvt.s32.f32 %v2179
        %v2187 = vmul.f32 %v2186, %v2184
        %v2188 = vxor.u32 %v2187, 2147483648
        %v2189 = vsel %vm2106, %v2188, %v2187
        %v2190 = vsub.s32 4, %v2166
        %v2191 = vsel %vm2106, %v2190, %v2166
        %v2192 = vsel %vm2105, %v1892, %v2189
        %v2193 = vsel %vm2105, 0, %v2191
        %v2194 = vcosq.f32.pop %v2192
        %v2195 = vsinq.f32.pop %v2192
        %vm2196 = vweird.f32 %v1892
        %v2197 = vand.u32 %v2193, 3
        %vm2198 = vcmp.lt.s32.totalorder %v2197, 2
        %vm2199 = vcmp.eq.s32.totalorder %v2197, 0
        %v2200 = vxor.u32 %v2195, 2147483648
        %v2201 = vsel %vm2199, %v2194, %v2200
        %vm2202 = vcmp.eq.s32.totalorder %v2197, 2
        %v2203 = vxor.u32 %v2194, 2147483648
        %v2204 = vsel %vm2202, %v2203, %v2195
        %v2205 = vsel %vm2198, %v2201, %v2204
        %v2206 = vsel %vm2196, nan, %v2205
        %v2207 = vand.u32 2147483647, %v1893
        %vm2208 = vcmp.le.f32.partialorder %v2207, 0.7853982
        %vm2209 = vcmp.lt.s32.totalorder %v1893, 0
        %v2210 = vand.u32 %v1893, 2139095040
        %v2211 = vshrl.u32 %v2210, 23
        %v2212 = vsub.s32 %v2211, 127
        %v2213 = vand.u32 2147483647, %v1893
        %v2214 = vand.u32 %v2213, 8388607
        %v2215 = vor.u32 %v2214, 8388608
        %v2216 = vsub.s32 0, %v2215
        %v2217 = vadd.s32 %v2212, 1
        %vm2218 = vcmp.gt.s32.totalorder %v2217, 0
        %v2219 = vsel %vm2218, %v2217, 0
        %v2220 = vshrl.u32 %v2219, 5
        %v2221 = vand.u32 %v2219, 31
        %v2222 = vsub.s32 32, %v2221
        %v2223 = vshrl.u32 683565275, %v2222
        %v2224 = vshll.u32 683565275, %v2221
        %v2225 = vshrl.u32 2475754826, %v2222
        %v2226 = vor.u32 %v2224, %v2225
        %v2227 = vshll.u32 2475754826, %v2221
        %v2228 = vshrl.u32 2131351028, %v2222
        %v2229 = vor.u32 %v2227, %v2228
        %v2230 = vshll.u32 2131351028, %v2221
        %v2231 = vshrl.u32 2102212464, %v2222
        %v2232 = vor.u32 %v2230, %v2231
        %v2233 = vshll.u32 2102212464, %v2221
        %v2234 = vshrl.u32 920167782, %v2222
        %v2235 = vor.u32 %v2233, %v2234
        %v2236 = vshll.u32 920167782, %v2221
        %v2237 = vshrl.u32 1326507024, %v2222
        %v2238 = vor.u32 %v2236, %v2237
        %vm2239 = vcmp.lt.s32.totalorder %v2220, 1
        %vm2240 = vcmp.lt.s32.totalorder %v2220, 2
        %vm2241 = vcmp.lt.s32.totalorder %v2220, 3
        %vm2242 = vcmp.lt.s32.totalorder %v2220, 4
        %v2243 = vsel %vm2239, %v2223, %v2226
        %v2244 = vsel %vm2242, %v2232, 2102212464
        %v2245 = vsel %vm2241, %v2229, %v2244
        %v2246 = vsel %vm2240, %v2243, %v2245
        %v2247 = vsel %vm2239, %v2226, %v2229
        %v2248 = vsel %vm2242, %v2235, 920167782
        %v2249 = vsel %vm2241, %v2232, %v2248
        %v2250 = vsel %vm2240, %v2247, %v2249
        %v2251 = vsel %vm2239, %v2229, %v2232
        %v2252 = vsel %vm2242, %v2238, 1326507024
        %v2253 = vsel %vm2241, %v2235, %v2252
        %v2254 = vsel %vm2240, %v2251, %v2253
        %v2255 = vshll.u32 %v2215, 8
        %v2256 = vmul.u32.u64.compose %v2255, %v2254
        %v2257 = vextract.low.u32 %v2256
        %v2258 = vextract.high.u32 %v2256
        %v2259 = vmul.u32.u64.compose %v2255, %v2250
        %v2260 = vextract.low.u32 %v2259
        %v2261 = vextract.high.u32 %v2259
        %v2262 = vmul.u32 %v2255, %v2246
        %v2263 = vadd.s32 %v2258, %v2260
        %vm2264 = vc.u32 %v2258, %v2260
        %v2265 = vadd.s32 %v2261, 1
        %v2266 = vsel %vm2264, %v2265, %v2261
        %v2267 = vadd.s32 %v2262, %v2266
        %v2268 = vadd.s32 %v2267, 536870912
        %v2269 = vshrl.u32 %v2268, 30
        %v2270 = vshll.u32 %v2269, 30
        %v2271 = vsub.s32 %v2267, %v2270
        %vm2272 = vcmp.lt.s32.totalorder %v2271, 0
        %v2273 = vsub.s32 0, %v2271
        %v2274 = vsel %vm2272, %v2273, %v2271
        %v2275 = vclz %v2274
        %v2276 = vsub.s32 %v2275, 2
        %vm2277 = vcmp.gt.s32.totalorder 0, %v2276
        %v2278 = vsel %vm2277, 0, %v2276
        %v2279 = vsub.s32 32, %v2278
        %v2280 = vshll.u32 %v2271, %v2278
        %v2281 = vshrl.u32 %v2263, %v2279
        %v2282 = vor.u32 %v2280, %v2281
        %v2283 = vsub.s32 4294967266, %v2278
        %v2284 = vadd.s32 %v2283, 127
        %v2285 = vshll.u32 %v2284, 23
        %v2286 = vor.u32 4788187, %v2285
        %v2287 = vand.u32 2147483647, %v2286
        %v2289 = vcvt.s32.f32 %v2282
        %v2290 = vmul.f32 %v2289, %v2287
        %v2291 = vxor.u32 %v2290, 2147483648
        %v2292 = vsel %vm2209, %v2291, %v2290
        %v2293 = vsub.s32 4, %v2269
        %v2294 = vsel %vm2209, %v2293, %v2269
        %v2295 = vsel %vm2208, %v1893, %v2292
        %v2296 = vsel %vm2208, 0, %v2294
        %v2297 = vcosq.f32.pop %v2295
        %v2298 = vsinq.f32.pop %v2295
        %vm2299 = vweird.f32 %v1893
        %v2300 = vand.u32 %v2296, 3
        %vm2301 = vcmp.lt.s32.totalorder %v2300, 2
        %vm2302 = vcmp.eq.s32.totalorder %v2300, 0
        %v2303 = vxor.u32 %v2298, 2147483648
        %v2304 = vsel %vm2302, %v2297, %v2303
        %vm2305 = vcmp.eq.s32.totalorder %v2300, 2
        %v2306 = vxor.u32 %v2297, 2147483648
        %v2307 = vsel %vm2305, %v2306, %v2298
        %v2308 = vsel %vm2301, %v2304, %v2307
        %v2309 = vsel %vm2299, nan, %v2308
        %2310 = vst [vmem:[%s159 + $0xc0] sm:$0xff] %v2206
        %2311 = vst [vmem:[%s159 + $0xc8] sm:$0xff] %v2309
        %v2312 = vld [vmem:[%s1 + $0x28] sm:$0xff]
        %2314 = vset.pattern.permute.xlu0 0
        %2315 = vperm.xlu0 %2314, %v2312
        %v2316 = vpop.permute.xlu0 %2315
        %v2318 = vmul.f32 %v176, %v2316
        %v2319 = vmul.f32 %v180, %v2316
        %v2320 = vand.u32 2147483647, %v2318
        %vm2321 = vcmp.le.f32.partialorder %v2320, 0.7853982
        %vm2322 = vcmp.lt.s32.totalorder %v2318, 0
        %v2323 = vand.u32 %v2318, 2139095040
        %v2324 = vshrl.u32 %v2323, 23
        %v2325 = vsub.s32 %v2324, 127
        %v2326 = vand.u32 2147483647, %v2318
        %v2327 = vand.u32 %v2326, 8388607
        %v2328 = vor.u32 %v2327, 8388608
        %v2329 = vsub.s32 0, %v2328
        %v2330 = vadd.s32 %v2325, 1
        %vm2331 = vcmp.gt.s32.totalorder %v2330, 0
        %v2332 = vsel %vm2331, %v2330, 0
        %v2333 = vshrl.u32 %v2332, 5
        %v2334 = vand.u32 %v2332, 31
        %v2335 = vsub.s32 32, %v2334
        %v2336 = vshrl.u32 683565275, %v2335
        %v2337 = vshll.u32 683565275, %v2334
        %v2338 = vshrl.u32 2475754826, %v2335
        %v2339 = vor.u32 %v2337, %v2338
        %v2340 = vshll.u32 2475754826, %v2334
        %v2341 = vshrl.u32 2131351028, %v2335
        %v2342 = vor.u32 %v2340, %v2341
        %v2343 = vshll.u32 2131351028, %v2334
        %v2344 = vshrl.u32 2102212464, %v2335
        %v2345 = vor.u32 %v2343, %v2344
        %v2346 = vshll.u32 2102212464, %v2334
        %v2347 = vshrl.u32 920167782, %v2335
        %v2348 = vor.u32 %v2346, %v2347
        %v2349 = vshll.u32 920167782, %v2334
        %v2350 = vshrl.u32 1326507024, %v2335
        %v2351 = vor.u32 %v2349, %v2350
        %vm2352 = vcmp.lt.s32.totalorder %v2333, 1
        %vm2353 = vcmp.lt.s32.totalorder %v2333, 2
        %vm2354 = vcmp.lt.s32.totalorder %v2333, 3
        %vm2355 = vcmp.lt.s32.totalorder %v2333, 4
        %v2356 = vsel %vm2352, %v2336, %v2339
        %v2357 = vsel %vm2355, %v2345, 2102212464
        %v2358 = vsel %vm2354, %v2342, %v2357
        %v2359 = vsel %vm2353, %v2356, %v2358
        %v2360 = vsel %vm2352, %v2339, %v2342
        %v2361 = vsel %vm2355, %v2348, 920167782
        %v2362 = vsel %vm2354, %v2345, %v2361
        %v2363 = vsel %vm2353, %v2360, %v2362
        %v2364 = vsel %vm2352, %v2342, %v2345
        %v2365 = vsel %vm2355, %v2351, 1326507024
        %v2366 = vsel %vm2354, %v2348, %v2365
        %v2367 = vsel %vm2353, %v2364, %v2366
        %v2368 = vshll.u32 %v2328, 8
        %v2369 = vmul.u32.u64.compose %v2368, %v2367
        %v2370 = vextract.low.u32 %v2369
        %v2371 = vextract.high.u32 %v2369
        %v2372 = vmul.u32.u64.compose %v2368, %v2363
        %v2373 = vextract.low.u32 %v2372
        %v2374 = vextract.high.u32 %v2372
        %v2375 = vmul.u32 %v2368, %v2359
        %v2376 = vadd.s32 %v2371, %v2373
        %vm2377 = vc.u32 %v2371, %v2373
        %v2378 = vadd.s32 %v2374, 1
        %v2379 = vsel %vm2377, %v2378, %v2374
        %v2380 = vadd.s32 %v2375, %v2379
        %v2381 = vadd.s32 %v2380, 536870912
        %v2382 = vshrl.u32 %v2381, 30
        %v2383 = vshll.u32 %v2382, 30
        %v2384 = vsub.s32 %v2380, %v2383
        %vm2385 = vcmp.lt.s32.totalorder %v2384, 0
        %v2386 = vsub.s32 0, %v2384
        %v2387 = vsel %vm2385, %v2386, %v2384
        %v2388 = vclz %v2387
        %v2389 = vsub.s32 %v2388, 2
        %vm2390 = vcmp.gt.s32.totalorder 0, %v2389
        %v2391 = vsel %vm2390, 0, %v2389
        %v2392 = vsub.s32 32, %v2391
        %v2393 = vshll.u32 %v2384, %v2391
        %v2394 = vshrl.u32 %v2376, %v2392
        %v2395 = vor.u32 %v2393, %v2394
        %v2396 = vsub.s32 4294967266, %v2391
        %v2397 = vadd.s32 %v2396, 127
        %v2398 = vshll.u32 %v2397, 23
        %v2399 = vor.u32 4788187, %v2398
        %v2400 = vand.u32 2147483647, %v2399
        %v2402 = vcvt.s32.f32 %v2395
        %v2403 = vmul.f32 %v2402, %v2400
        %v2404 = vxor.u32 %v2403, 2147483648
        %v2405 = vsel %vm2322, %v2404, %v2403
        %v2406 = vsub.s32 4, %v2382
        %v2407 = vsel %vm2322, %v2406, %v2382
        %v2408 = vsel %vm2321, %v2318, %v2405
        %v2409 = vsel %vm2321, 0, %v2407
        %v2410 = vcosq.f32.pop %v2408
        %v2411 = vsinq.f32.pop %v2408
        %vm2412 = vweird.f32 %v2318
        %v2413 = vadd.s32 %v2409, 3
        %v2414 = vand.u32 %v2413, 3
        %vm2415 = vcmp.lt.s32.totalorder %v2414, 2
        %vm2416 = vcmp.eq.s32.totalorder %v2414, 0
        %v2417 = vxor.u32 %v2411, 2147483648
        %v2418 = vsel %vm2416, %v2410, %v2417
        %vm2419 = vcmp.eq.s32.totalorder %v2414, 2
        %v2420 = vxor.u32 %v2410, 2147483648
        %v2421 = vsel %vm2419, %v2420, %v2411
        %v2422 = vsel %vm2415, %v2418, %v2421
        %v2423 = vsel %vm2412, nan, %v2422
        %v2424 = vand.u32 2147483647, %v2319
        %vm2425 = vcmp.le.f32.partialorder %v2424, 0.7853982
        %vm2426 = vcmp.lt.s32.totalorder %v2319, 0
        %v2427 = vand.u32 %v2319, 2139095040
        %v2428 = vshrl.u32 %v2427, 23
        %v2429 = vsub.s32 %v2428, 127
        %v2430 = vand.u32 2147483647, %v2319
        %v2431 = vand.u32 %v2430, 8388607
        %v2432 = vor.u32 %v2431, 8388608
        %v2433 = vsub.s32 0, %v2432
        %v2434 = vadd.s32 %v2429, 1
        %vm2435 = vcmp.gt.s32.totalorder %v2434, 0
        %v2436 = vsel %vm2435, %v2434, 0
        %v2437 = vshrl.u32 %v2436, 5
        %v2438 = vand.u32 %v2436, 31
        %v2439 = vsub.s32 32, %v2438
        %v2440 = vshrl.u32 683565275, %v2439
        %v2441 = vshll.u32 683565275, %v2438
        %v2442 = vshrl.u32 2475754826, %v2439
        %v2443 = vor.u32 %v2441, %v2442
        %v2444 = vshll.u32 2475754826, %v2438
        %v2445 = vshrl.u32 2131351028, %v2439
        %v2446 = vor.u32 %v2444, %v2445
        %v2447 = vshll.u32 2131351028, %v2438
        %v2448 = vshrl.u32 2102212464, %v2439
        %v2449 = vor.u32 %v2447, %v2448
        %v2450 = vshll.u32 2102212464, %v2438
        %v2451 = vshrl.u32 920167782, %v2439
        %v2452 = vor.u32 %v2450, %v2451
        %v2453 = vshll.u32 920167782, %v2438
        %v2454 = vshrl.u32 1326507024, %v2439
        %v2455 = vor.u32 %v2453, %v2454
        %vm2456 = vcmp.lt.s32.totalorder %v2437, 1
        %vm2457 = vcmp.lt.s32.totalorder %v2437, 2
        %vm2458 = vcmp.lt.s32.totalorder %v2437, 3
        %vm2459 = vcmp.lt.s32.totalorder %v2437, 4
        %v2460 = vsel %vm2456, %v2440, %v2443
        %v2461 = vsel %vm2459, %v2449, 2102212464
        %v2462 = vsel %vm2458, %v2446, %v2461
        %v2463 = vsel %vm2457, %v2460, %v2462
        %v2464 = vsel %vm2456, %v2443, %v2446
        %v2465 = vsel %vm2459, %v2452, 920167782
        %v2466 = vsel %vm2458, %v2449, %v2465
        %v2467 = vsel %vm2457, %v2464, %v2466
        %v2468 = vsel %vm2456, %v2446, %v2449
        %v2469 = vsel %vm2459, %v2455, 1326507024
        %v2470 = vsel %vm2458, %v2452, %v2469
        %v2471 = vsel %vm2457, %v2468, %v2470
        %v2472 = vshll.u32 %v2432, 8
        %v2473 = vmul.u32.u64.compose %v2472, %v2471
        %v2474 = vextract.low.u32 %v2473
        %v2475 = vextract.high.u32 %v2473
        %v2476 = vmul.u32.u64.compose %v2472, %v2467
        %v2477 = vextract.low.u32 %v2476
        %v2478 = vextract.high.u32 %v2476
        %v2479 = vmul.u32 %v2472, %v2463
        %v2480 = vadd.s32 %v2475, %v2477
        %vm2481 = vc.u32 %v2475, %v2477
        %v2482 = vadd.s32 %v2478, 1
        %v2483 = vsel %vm2481, %v2482, %v2478
        %v2484 = vadd.s32 %v2479, %v2483
        %v2485 = vadd.s32 %v2484, 536870912
        %v2486 = vshrl.u32 %v2485, 30
        %v2487 = vshll.u32 %v2486, 30
        %v2488 = vsub.s32 %v2484, %v2487
        %vm2489 = vcmp.lt.s32.totalorder %v2488, 0
        %v2490 = vsub.s32 0, %v2488
        %v2491 = vsel %vm2489, %v2490, %v2488
        %v2492 = vclz %v2491
        %v2493 = vsub.s32 %v2492, 2
        %vm2494 = vcmp.gt.s32.totalorder 0, %v2493
        %v2495 = vsel %vm2494, 0, %v2493
        %v2496 = vsub.s32 32, %v2495
        %v2497 = vshll.u32 %v2488, %v2495
        %v2498 = vshrl.u32 %v2480, %v2496
        %v2499 = vor.u32 %v2497, %v2498
        %v2500 = vsub.s32 4294967266, %v2495
        %v2501 = vadd.s32 %v2500, 127
        %v2502 = vshll.u32 %v2501, 23
        %v2503 = vor.u32 4788187, %v2502
        %v2504 = vand.u32 2147483647, %v2503
        %v2506 = vcvt.s32.f32 %v2499
        %v2507 = vmul.f32 %v2506, %v2504
        %v2508 = vxor.u32 %v2507, 2147483648
        %v2509 = vsel %vm2426, %v2508, %v2507
        %v2510 = vsub.s32 4, %v2486
        %v2511 = vsel %vm2426, %v2510, %v2486
        %v2512 = vsel %vm2425, %v2319, %v2509
        %v2513 = vsel %vm2425, 0, %v2511
        %v2514 = vcosq.f32.pop %v2512
        %v2515 = vsinq.f32.pop %v2512
        %vm2516 = vweird.f32 %v2319
        %v2517 = vadd.s32 %v2513, 3
        %v2518 = vand.u32 %v2517, 3
        %vm2519 = vcmp.lt.s32.totalorder %v2518, 2
        %vm2520 = vcmp.eq.s32.totalorder %v2518, 0
        %v2521 = vxor.u32 %v2515, 2147483648
        %v2522 = vsel %vm2520, %v2514, %v2521
        %vm2523 = vcmp.eq.s32.totalorder %v2518, 2
        %v2524 = vxor.u32 %v2514, 2147483648
        %v2525 = vsel %vm2523, %v2524, %v2515
        %v2526 = vsel %vm2519, %v2522, %v2525
        %v2527 = vsel %vm2516, nan, %v2526
        %2528 = vst [vmem:[%s159 + $0x50] sm:$0xff] %v2423
        %2529 = vst [vmem:[%s159 + $0x58] sm:$0xff] %v2527
        %v2530 = vand.u32 2147483647, %v2318
        %vm2531 = vcmp.le.f32.partialorder %v2530, 0.7853982
        %vm2532 = vcmp.lt.s32.totalorder %v2318, 0
        %v2533 = vand.u32 %v2318, 2139095040
        %v2534 = vshrl.u32 %v2533, 23
        %v2535 = vsub.s32 %v2534, 127
        %v2536 = vand.u32 2147483647, %v2318
        %v2537 = vand.u32 %v2536, 8388607
        %v2538 = vor.u32 %v2537, 8388608
        %v2539 = vsub.s32 0, %v2538
        %v2540 = vadd.s32 %v2535, 1
        %vm2541 = vcmp.gt.s32.totalorder %v2540, 0
        %v2542 = vsel %vm2541, %v2540, 0
        %v2543 = vshrl.u32 %v2542, 5
        %v2544 = vand.u32 %v2542, 31
        %v2545 = vsub.s32 32, %v2544
        %v2546 = vshrl.u32 683565275, %v2545
        %v2547 = vshll.u32 683565275, %v2544
        %v2548 = vshrl.u32 2475754826, %v2545
        %v2549 = vor.u32 %v2547, %v2548
        %v2550 = vshll.u32 2475754826, %v2544
        %v2551 = vshrl.u32 2131351028, %v2545
        %v2552 = vor.u32 %v2550, %v2551
        %v2553 = vshll.u32 2131351028, %v2544
        %v2554 = vshrl.u32 2102212464, %v2545
        %v2555 = vor.u32 %v2553, %v2554
        %v2556 = vshll.u32 2102212464, %v2544
        %v2557 = vshrl.u32 920167782, %v2545
        %v2558 = vor.u32 %v2556, %v2557
        %v2559 = vshll.u32 920167782, %v2544
        %v2560 = vshrl.u32 1326507024, %v2545
        %v2561 = vor.u32 %v2559, %v2560
        %vm2562 = vcmp.lt.s32.totalorder %v2543, 1
        %vm2563 = vcmp.lt.s32.totalorder %v2543, 2
        %vm2564 = vcmp.lt.s32.totalorder %v2543, 3
        %vm2565 = vcmp.lt.s32.totalorder %v2543, 4
        %v2566 = vsel %vm2562, %v2546, %v2549
        %v2567 = vsel %vm2565, %v2555, 2102212464
        %v2568 = vsel %vm2564, %v2552, %v2567
        %v2569 = vsel %vm2563, %v2566, %v2568
        %v2570 = vsel %vm2562, %v2549, %v2552
        %v2571 = vsel %vm2565, %v2558, 920167782
        %v2572 = vsel %vm2564, %v2555, %v2571
        %v2573 = vsel %vm2563, %v2570, %v2572
        %v2574 = vsel %vm2562, %v2552, %v2555
        %v2575 = vsel %vm2565, %v2561, 1326507024
        %v2576 = vsel %vm2564, %v2558, %v2575
        %v2577 = vsel %vm2563, %v2574, %v2576
        %v2578 = vshll.u32 %v2538, 8
        %v2579 = vmul.u32.u64.compose %v2578, %v2577
        %v2580 = vextract.low.u32 %v2579
        %v2581 = vextract.high.u32 %v2579
        %v2582 = vmul.u32.u64.compose %v2578, %v2573
        %v2583 = vextract.low.u32 %v2582
        %v2584 = vextract.high.u32 %v2582
        %v2585 = vmul.u32 %v2578, %v2569
        %v2586 = vadd.s32 %v2581, %v2583
        %vm2587 = vc.u32 %v2581, %v2583
        %v2588 = vadd.s32 %v2584, 1
        %v2589 = vsel %vm2587, %v2588, %v2584
        %v2590 = vadd.s32 %v2585, %v2589
        %v2591 = vadd.s32 %v2590, 536870912
        %v2592 = vshrl.u32 %v2591, 30
        %v2593 = vshll.u32 %v2592, 30
        %v2594 = vsub.s32 %v2590, %v2593
        %vm2595 = vcmp.lt.s32.totalorder %v2594, 0
        %v2596 = vsub.s32 0, %v2594
        %v2597 = vsel %vm2595, %v2596, %v2594
        %v2598 = vclz %v2597
        %v2599 = vsub.s32 %v2598, 2
        %vm2600 = vcmp.gt.s32.totalorder 0, %v2599
        %v2601 = vsel %vm2600, 0, %v2599
        %v2602 = vsub.s32 32, %v2601
        %v2603 = vshll.u32 %v2594, %v2601
        %v2604 = vshrl.u32 %v2586, %v2602
        %v2605 = vor.u32 %v2603, %v2604
        %v2606 = vsub.s32 4294967266, %v2601
        %v2607 = vadd.s32 %v2606, 127
        %v2608 = vshll.u32 %v2607, 23
        %v2609 = vor.u32 4788187, %v2608
        %v2610 = vand.u32 2147483647, %v2609
        %v2612 = vcvt.s32.f32 %v2605
        %v2613 = vmul.f32 %v2612, %v2610
        %v2614 = vxor.u32 %v2613, 2147483648
        %v2615 = vsel %vm2532, %v2614, %v2613
        %v2616 = vsub.s32 4, %v2592
        %v2617 = vsel %vm2532, %v2616, %v2592
        %v2618 = vsel %vm2531, %v2318, %v2615
        %v2619 = vsel %vm2531, 0, %v2617
        %v2620 = vcosq.f32.pop %v2618
        %v2621 = vsinq.f32.pop %v2618
        %vm2622 = vweird.f32 %v2318
        %v2623 = vand.u32 %v2619, 3
        %vm2624 = vcmp.lt.s32.totalorder %v2623, 2
        %vm2625 = vcmp.eq.s32.totalorder %v2623, 0
        %v2626 = vxor.u32 %v2621, 2147483648
        %v2627 = vsel %vm2625, %v2620, %v2626
        %vm2628 = vcmp.eq.s32.totalorder %v2623, 2
        %v2629 = vxor.u32 %v2620, 2147483648
        %v2630 = vsel %vm2628, %v2629, %v2621
        %v2631 = vsel %vm2624, %v2627, %v2630
        %v2632 = vsel %vm2622, nan, %v2631
        %v2633 = vand.u32 2147483647, %v2319
        %vm2634 = vcmp.le.f32.partialorder %v2633, 0.7853982
        %vm2635 = vcmp.lt.s32.totalorder %v2319, 0
        %v2636 = vand.u32 %v2319, 2139095040
        %v2637 = vshrl.u32 %v2636, 23
        %v2638 = vsub.s32 %v2637, 127
        %v2639 = vand.u32 2147483647, %v2319
        %v2640 = vand.u32 %v2639, 8388607
        %v2641 = vor.u32 %v2640, 8388608
        %v2642 = vsub.s32 0, %v2641
        %v2643 = vadd.s32 %v2638, 1
        %vm2644 = vcmp.gt.s32.totalorder %v2643, 0
        %v2645 = vsel %vm2644, %v2643, 0
        %v2646 = vshrl.u32 %v2645, 5
        %v2647 = vand.u32 %v2645, 31
        %v2648 = vsub.s32 32, %v2647
        %v2649 = vshrl.u32 683565275, %v2648
        %v2650 = vshll.u32 683565275, %v2647
        %v2651 = vshrl.u32 2475754826, %v2648
        %v2652 = vor.u32 %v2650, %v2651
        %v2653 = vshll.u32 2475754826, %v2647
        %v2654 = vshrl.u32 2131351028, %v2648
        %v2655 = vor.u32 %v2653, %v2654
        %v2656 = vshll.u32 2131351028, %v2647
        %v2657 = vshrl.u32 2102212464, %v2648
        %v2658 = vor.u32 %v2656, %v2657
        %v2659 = vshll.u32 2102212464, %v2647
        %v2660 = vshrl.u32 920167782, %v2648
        %v2661 = vor.u32 %v2659, %v2660
        %v2662 = vshll.u32 920167782, %v2647
        %v2663 = vshrl.u32 1326507024, %v2648
        %v2664 = vor.u32 %v2662, %v2663
        %vm2665 = vcmp.lt.s32.totalorder %v2646, 1
        %vm2666 = vcmp.lt.s32.totalorder %v2646, 2
        %vm2667 = vcmp.lt.s32.totalorder %v2646, 3
        %vm2668 = vcmp.lt.s32.totalorder %v2646, 4
        %v2669 = vsel %vm2665, %v2649, %v2652
        %v2670 = vsel %vm2668, %v2658, 2102212464
        %v2671 = vsel %vm2667, %v2655, %v2670
        %v2672 = vsel %vm2666, %v2669, %v2671
        %v2673 = vsel %vm2665, %v2652, %v2655
        %v2674 = vsel %vm2668, %v2661, 920167782
        %v2675 = vsel %vm2667, %v2658, %v2674
        %v2676 = vsel %vm2666, %v2673, %v2675
        %v2677 = vsel %vm2665, %v2655, %v2658
        %v2678 = vsel %vm2668, %v2664, 1326507024
        %v2679 = vsel %vm2667, %v2661, %v2678
        %v2680 = vsel %vm2666, %v2677, %v2679
        %v2681 = vshll.u32 %v2641, 8
        %v2682 = vmul.u32.u64.compose %v2681, %v2680
        %v2683 = vextract.low.u32 %v2682
        %v2684 = vextract.high.u32 %v2682
        %v2685 = vmul.u32.u64.compose %v2681, %v2676
        %v2686 = vextract.low.u32 %v2685
        %v2687 = vextract.high.u32 %v2685
        %v2688 = vmul.u32 %v2681, %v2672
        %v2689 = vadd.s32 %v2684, %v2686
        %vm2690 = vc.u32 %v2684, %v2686
        %v2691 = vadd.s32 %v2687, 1
        %v2692 = vsel %vm2690, %v2691, %v2687
        %v2693 = vadd.s32 %v2688, %v2692
        %v2694 = vadd.s32 %v2693, 536870912
        %v2695 = vshrl.u32 %v2694, 30
        %v2696 = vshll.u32 %v2695, 30
        %v2697 = vsub.s32 %v2693, %v2696
        %vm2698 = vcmp.lt.s32.totalorder %v2697, 0
        %v2699 = vsub.s32 0, %v2697
        %v2700 = vsel %vm2698, %v2699, %v2697
        %v2701 = vclz %v2700
        %v2702 = vsub.s32 %v2701, 2
        %vm2703 = vcmp.gt.s32.totalorder 0, %v2702
        %v2704 = vsel %vm2703, 0, %v2702
        %v2705 = vsub.s32 32, %v2704
        %v2706 = vshll.u32 %v2697, %v2704
        %v2707 = vshrl.u32 %v2689, %v2705
        %v2708 = vor.u32 %v2706, %v2707
        %v2709 = vsub.s32 4294967266, %v2704
        %v2710 = vadd.s32 %v2709, 127
        %v2711 = vshll.u32 %v2710, 23
        %v2712 = vor.u32 4788187, %v2711
        %v2713 = vand.u32 2147483647, %v2712
        %v2715 = vcvt.s32.f32 %v2708
        %v2716 = vmul.f32 %v2715, %v2713
        %v2717 = vxor.u32 %v2716, 2147483648
        %v2718 = vsel %vm2635, %v2717, %v2716
        %v2719 = vsub.s32 4, %v2695
        %v2720 = vsel %vm2635, %v2719, %v2695
        %v2721 = vsel %vm2634, %v2319, %v2718
        %v2722 = vsel %vm2634, 0, %v2720
        %v2723 = vcosq.f32.pop %v2721
        %v2724 = vsinq.f32.pop %v2721
        %vm2725 = vweird.f32 %v2319
        %v2726 = vand.u32 %v2722, 3
        %vm2727 = vcmp.lt.s32.totalorder %v2726, 2
        %vm2728 = vcmp.eq.s32.totalorder %v2726, 0
        %v2729 = vxor.u32 %v2724, 2147483648
        %v2730 = vsel %vm2728, %v2723, %v2729
        %vm2731 = vcmp.eq.s32.totalorder %v2726, 2
        %v2732 = vxor.u32 %v2723, 2147483648
        %v2733 = vsel %vm2731, %v2732, %v2724
        %v2734 = vsel %vm2727, %v2730, %v2733
        %v2735 = vsel %vm2725, nan, %v2734
        %2736 = vst [vmem:[%s159 + $0xd0] sm:$0xff] %v2632
        %2737 = vst [vmem:[%s159 + $0xd8] sm:$0xff] %v2735
        %v2738 = vld [vmem:[%s1 + $0x30] sm:$0xff]
        %2740 = vset.pattern.permute.xlu0 0
        %2741 = vperm.xlu0 %2740, %v2738
        %v2742 = vpop.permute.xlu0 %2741
        %v2744 = vmul.f32 %v176, %v2742
        %v2745 = vmul.f32 %v180, %v2742
        %v2746 = vand.u32 2147483647, %v2744
        %vm2747 = vcmp.le.f32.partialorder %v2746, 0.7853982
        %vm2748 = vcmp.lt.s32.totalorder %v2744, 0
        %v2749 = vand.u32 %v2744, 2139095040
        %v2750 = vshrl.u32 %v2749, 23
        %v2751 = vsub.s32 %v2750, 127
        %v2752 = vand.u32 2147483647, %v2744
        %v2753 = vand.u32 %v2752, 8388607
        %v2754 = vor.u32 %v2753, 8388608
        %v2755 = vsub.s32 0, %v2754
        %v2756 = vadd.s32 %v2751, 1
        %vm2757 = vcmp.gt.s32.totalorder %v2756, 0
        %v2758 = vsel %vm2757, %v2756, 0
        %v2759 = vshrl.u32 %v2758, 5
        %v2760 = vand.u32 %v2758, 31
        %v2761 = vsub.s32 32, %v2760
        %v2762 = vshrl.u32 683565275, %v2761
        %v2763 = vshll.u32 683565275, %v2760
        %v2764 = vshrl.u32 2475754826, %v2761
        %v2765 = vor.u32 %v2763, %v2764
        %v2766 = vshll.u32 2475754826, %v2760
        %v2767 = vshrl.u32 2131351028, %v2761
        %v2768 = vor.u32 %v2766, %v2767
        %v2769 = vshll.u32 2131351028, %v2760
        %v2770 = vshrl.u32 2102212464, %v2761
        %v2771 = vor.u32 %v2769, %v2770
        %v2772 = vshll.u32 2102212464, %v2760
        %v2773 = vshrl.u32 920167782, %v2761
        %v2774 = vor.u32 %v2772, %v2773
        %v2775 = vshll.u32 920167782, %v2760
        %v2776 = vshrl.u32 1326507024, %v2761
        %v2777 = vor.u32 %v2775, %v2776
        %vm2778 = vcmp.lt.s32.totalorder %v2759, 1
        %vm2779 = vcmp.lt.s32.totalorder %v2759, 2
        %vm2780 = vcmp.lt.s32.totalorder %v2759, 3
        %vm2781 = vcmp.lt.s32.totalorder %v2759, 4
        %v2782 = vsel %vm2778, %v2762, %v2765
        %v2783 = vsel %vm2781, %v2771, 2102212464
        %v2784 = vsel %vm2780, %v2768, %v2783
        %v2785 = vsel %vm2779, %v2782, %v2784
        %v2786 = vsel %vm2778, %v2765, %v2768
        %v2787 = vsel %vm2781, %v2774, 920167782
        %v2788 = vsel %vm2780, %v2771, %v2787
        %v2789 = vsel %vm2779, %v2786, %v2788
        %v2790 = vsel %vm2778, %v2768, %v2771
        %v2791 = vsel %vm2781, %v2777, 1326507024
        %v2792 = vsel %vm2780, %v2774, %v2791
        %v2793 = vsel %vm2779, %v2790, %v2792
        %v2794 = vshll.u32 %v2754, 8
        %v2795 = vmul.u32.u64.compose %v2794, %v2793
        %v2796 = vextract.low.u32 %v2795
        %v2797 = vextract.high.u32 %v2795
        %v2798 = vmul.u32.u64.compose %v2794, %v2789
        %v2799 = vextract.low.u32 %v2798
        %v2800 = vextract.high.u32 %v2798
        %v2801 = vmul.u32 %v2794, %v2785
        %v2802 = vadd.s32 %v2797, %v2799
        %vm2803 = vc.u32 %v2797, %v2799
        %v2804 = vadd.s32 %v2800, 1
        %v2805 = vsel %vm2803, %v2804, %v2800
        %v2806 = vadd.s32 %v2801, %v2805
        %v2807 = vadd.s32 %v2806, 536870912
        %v2808 = vshrl.u32 %v2807, 30
        %v2809 = vshll.u32 %v2808, 30
        %v2810 = vsub.s32 %v2806, %v2809
        %vm2811 = vcmp.lt.s32.totalorder %v2810, 0
        %v2812 = vsub.s32 0, %v2810
        %v2813 = vsel %vm2811, %v2812, %v2810
        %v2814 = vclz %v2813
        %v2815 = vsub.s32 %v2814, 2
        %vm2816 = vcmp.gt.s32.totalorder 0, %v2815
        %v2817 = vsel %vm2816, 0, %v2815
        %v2818 = vsub.s32 32, %v2817
        %v2819 = vshll.u32 %v2810, %v2817
        %v2820 = vshrl.u32 %v2802, %v2818
        %v2821 = vor.u32 %v2819, %v2820
        %v2822 = vsub.s32 4294967266, %v2817
        %v2823 = vadd.s32 %v2822, 127
        %v2824 = vshll.u32 %v2823, 23
        %v2825 = vor.u32 4788187, %v2824
        %v2826 = vand.u32 2147483647, %v2825
        %v2828 = vcvt.s32.f32 %v2821
        %v2829 = vmul.f32 %v2828, %v2826
        %v2830 = vxor.u32 %v2829, 2147483648
        %v2831 = vsel %vm2748, %v2830, %v2829
        %v2832 = vsub.s32 4, %v2808
        %v2833 = vsel %vm2748, %v2832, %v2808
        %v2834 = vsel %vm2747, %v2744, %v2831
        %v2835 = vsel %vm2747, 0, %v2833
        %v2836 = vcosq.f32.pop %v2834
        %v2837 = vsinq.f32.pop %v2834
        %vm2838 = vweird.f32 %v2744
        %v2839 = vadd.s32 %v2835, 3
        %v2840 = vand.u32 %v2839, 3
        %vm2841 = vcmp.lt.s32.totalorder %v2840, 2
        %vm2842 = vcmp.eq.s32.totalorder %v2840, 0
        %v2843 = vxor.u32 %v2837, 2147483648
        %v2844 = vsel %vm2842, %v2836, %v2843
        %vm2845 = vcmp.eq.s32.totalorder %v2840, 2
        %v2846 = vxor.u32 %v2836, 2147483648
        %v2847 = vsel %vm2845, %v2846, %v2837
        %v2848 = vsel %vm2841, %v2844, %v2847
        %v2849 = vsel %vm2838, nan, %v2848
        %v2850 = vand.u32 2147483647, %v2745
        %vm2851 = vcmp.le.f32.partialorder %v2850, 0.7853982
        %vm2852 = vcmp.lt.s32.totalorder %v2745, 0
        %v2853 = vand.u32 %v2745, 2139095040
        %v2854 = vshrl.u32 %v2853, 23
        %v2855 = vsub.s32 %v2854, 127
        %v2856 = vand.u32 2147483647, %v2745
        %v2857 = vand.u32 %v2856, 8388607
        %v2858 = vor.u32 %v2857, 8388608
        %v2859 = vsub.s32 0, %v2858
        %v2860 = vadd.s32 %v2855, 1
        %vm2861 = vcmp.gt.s32.totalorder %v2860, 0
        %v2862 = vsel %vm2861, %v2860, 0
        %v2863 = vshrl.u32 %v2862, 5
        %v2864 = vand.u32 %v2862, 31
        %v2865 = vsub.s32 32, %v2864
        %v2866 = vshrl.u32 683565275, %v2865
        %v2867 = vshll.u32 683565275, %v2864
        %v2868 = vshrl.u32 2475754826, %v2865
        %v2869 = vor.u32 %v2867, %v2868
        %v2870 = vshll.u32 2475754826, %v2864
        %v2871 = vshrl.u32 2131351028, %v2865
        %v2872 = vor.u32 %v2870, %v2871
        %v2873 = vshll.u32 2131351028, %v2864
        %v2874 = vshrl.u32 2102212464, %v2865
        %v2875 = vor.u32 %v2873, %v2874
        %v2876 = vshll.u32 2102212464, %v2864
        %v2877 = vshrl.u32 920167782, %v2865
        %v2878 = vor.u32 %v2876, %v2877
        %v2879 = vshll.u32 920167782, %v2864
        %v2880 = vshrl.u32 1326507024, %v2865
        %v2881 = vor.u32 %v2879, %v2880
        %vm2882 = vcmp.lt.s32.totalorder %v2863, 1
        %vm2883 = vcmp.lt.s32.totalorder %v2863, 2
        %vm2884 = vcmp.lt.s32.totalorder %v2863, 3
        %vm2885 = vcmp.lt.s32.totalorder %v2863, 4
        %v2886 = vsel %vm2882, %v2866, %v2869
        %v2887 = vsel %vm2885, %v2875, 2102212464
        %v2888 = vsel %vm2884, %v2872, %v2887
        %v2889 = vsel %vm2883, %v2886, %v2888
        %v2890 = vsel %vm2882, %v2869, %v2872
        %v2891 = vsel %vm2885, %v2878, 920167782
        %v2892 = vsel %vm2884, %v2875, %v2891
        %v2893 = vsel %vm2883, %v2890, %v2892
        %v2894 = vsel %vm2882, %v2872, %v2875
        %v2895 = vsel %vm2885, %v2881, 1326507024
        %v2896 = vsel %vm2884, %v2878, %v2895
        %v2897 = vsel %vm2883, %v2894, %v2896
        %v2898 = vshll.u32 %v2858, 8
        %v2899 = vmul.u32.u64.compose %v2898, %v2897
        %v2900 = vextract.low.u32 %v2899
        %v2901 = vextract.high.u32 %v2899
        %v2902 = vmul.u32.u64.compose %v2898, %v2893
        %v2903 = vextract.low.u32 %v2902
        %v2904 = vextract.high.u32 %v2902
        %v2905 = vmul.u32 %v2898, %v2889
        %v2906 = vadd.s32 %v2901, %v2903
        %vm2907 = vc.u32 %v2901, %v2903
        %v2908 = vadd.s32 %v2904, 1
        %v2909 = vsel %vm2907, %v2908, %v2904
        %v2910 = vadd.s32 %v2905, %v2909
        %v2911 = vadd.s32 %v2910, 536870912
        %v2912 = vshrl.u32 %v2911, 30
        %v2913 = vshll.u32 %v2912, 30
        %v2914 = vsub.s32 %v2910, %v2913
        %vm2915 = vcmp.lt.s32.totalorder %v2914, 0
        %v2916 = vsub.s32 0, %v2914
        %v2917 = vsel %vm2915, %v2916, %v2914
        %v2918 = vclz %v2917
        %v2919 = vsub.s32 %v2918, 2
        %vm2920 = vcmp.gt.s32.totalorder 0, %v2919
        %v2921 = vsel %vm2920, 0, %v2919
        %v2922 = vsub.s32 32, %v2921
        %v2923 = vshll.u32 %v2914, %v2921
        %v2924 = vshrl.u32 %v2906, %v2922
        %v2925 = vor.u32 %v2923, %v2924
        %v2926 = vsub.s32 4294967266, %v2921
        %v2927 = vadd.s32 %v2926, 127
        %v2928 = vshll.u32 %v2927, 23
        %v2929 = vor.u32 4788187, %v2928
        %v2930 = vand.u32 2147483647, %v2929
        %v2932 = vcvt.s32.f32 %v2925
        %v2933 = vmul.f32 %v2932, %v2930
        %v2934 = vxor.u32 %v2933, 2147483648
        %v2935 = vsel %vm2852, %v2934, %v2933
        %v2936 = vsub.s32 4, %v2912
        %v2937 = vsel %vm2852, %v2936, %v2912
        %v2938 = vsel %vm2851, %v2745, %v2935
        %v2939 = vsel %vm2851, 0, %v2937
        %v2940 = vcosq.f32.pop %v2938
        %v2941 = vsinq.f32.pop %v2938
        %vm2942 = vweird.f32 %v2745
        %v2943 = vadd.s32 %v2939, 3
        %v2944 = vand.u32 %v2943, 3
        %vm2945 = vcmp.lt.s32.totalorder %v2944, 2
        %vm2946 = vcmp.eq.s32.totalorder %v2944, 0
        %v2947 = vxor.u32 %v2941, 2147483648
        %v2948 = vsel %vm2946, %v2940, %v2947
        %vm2949 = vcmp.eq.s32.totalorder %v2944, 2
        %v2950 = vxor.u32 %v2940, 2147483648
        %v2951 = vsel %vm2949, %v2950, %v2941
        %v2952 = vsel %vm2945, %v2948, %v2951
        %v2953 = vsel %vm2942, nan, %v2952
        %2954 = vst [vmem:[%s159 + $0x60] sm:$0xff] %v2849
        %2955 = vst [vmem:[%s159 + $0x68] sm:$0xff] %v2953
        %v2956 = vand.u32 2147483647, %v2744
        %vm2957 = vcmp.le.f32.partialorder %v2956, 0.7853982
        %vm2958 = vcmp.lt.s32.totalorder %v2744, 0
        %v2959 = vand.u32 %v2744, 2139095040
        %v2960 = vshrl.u32 %v2959, 23
        %v2961 = vsub.s32 %v2960, 127
        %v2962 = vand.u32 2147483647, %v2744
        %v2963 = vand.u32 %v2962, 8388607
        %v2964 = vor.u32 %v2963, 8388608
        %v2965 = vsub.s32 0, %v2964
        %v2966 = vadd.s32 %v2961, 1
        %vm2967 = vcmp.gt.s32.totalorder %v2966, 0
        %v2968 = vsel %vm2967, %v2966, 0
        %v2969 = vshrl.u32 %v2968, 5
        %v2970 = vand.u32 %v2968, 31
        %v2971 = vsub.s32 32, %v2970
        %v2972 = vshrl.u32 683565275, %v2971
        %v2973 = vshll.u32 683565275, %v2970
        %v2974 = vshrl.u32 2475754826, %v2971
        %v2975 = vor.u32 %v2973, %v2974
        %v2976 = vshll.u32 2475754826, %v2970
        %v2977 = vshrl.u32 2131351028, %v2971
        %v2978 = vor.u32 %v2976, %v2977
        %v2979 = vshll.u32 2131351028, %v2970
        %v2980 = vshrl.u32 2102212464, %v2971
        %v2981 = vor.u32 %v2979, %v2980
        %v2982 = vshll.u32 2102212464, %v2970
        %v2983 = vshrl.u32 920167782, %v2971
        %v2984 = vor.u32 %v2982, %v2983
        %v2985 = vshll.u32 920167782, %v2970
        %v2986 = vshrl.u32 1326507024, %v2971
        %v2987 = vor.u32 %v2985, %v2986
        %vm2988 = vcmp.lt.s32.totalorder %v2969, 1
        %vm2989 = vcmp.lt.s32.totalorder %v2969, 2
        %vm2990 = vcmp.lt.s32.totalorder %v2969, 3
        %vm2991 = vcmp.lt.s32.totalorder %v2969, 4
        %v2992 = vsel %vm2988, %v2972, %v2975
        %v2993 = vsel %vm2991, %v2981, 2102212464
        %v2994 = vsel %vm2990, %v2978, %v2993
        %v2995 = vsel %vm2989, %v2992, %v2994
        %v2996 = vsel %vm2988, %v2975, %v2978
        %v2997 = vsel %vm2991, %v2984, 920167782
        %v2998 = vsel %vm2990, %v2981, %v2997
        %v2999 = vsel %vm2989, %v2996, %v2998
        %v3000 = vsel %vm2988, %v2978, %v2981
        %v3001 = vsel %vm2991, %v2987, 1326507024
        %v3002 = vsel %vm2990, %v2984, %v3001
        %v3003 = vsel %vm2989, %v3000, %v3002
        %v3004 = vshll.u32 %v2964, 8
        %v3005 = vmul.u32.u64.compose %v3004, %v3003
        %v3006 = vextract.low.u32 %v3005
        %v3007 = vextract.high.u32 %v3005
        %v3008 = vmul.u32.u64.compose %v3004, %v2999
        %v3009 = vextract.low.u32 %v3008
        %v3010 = vextract.high.u32 %v3008
        %v3011 = vmul.u32 %v3004, %v2995
        %v3012 = vadd.s32 %v3007, %v3009
        %vm3013 = vc.u32 %v3007, %v3009
        %v3014 = vadd.s32 %v3010, 1
        %v3015 = vsel %vm3013, %v3014, %v3010
        %v3016 = vadd.s32 %v3011, %v3015
        %v3017 = vadd.s32 %v3016, 536870912
        %v3018 = vshrl.u32 %v3017, 30
        %v3019 = vshll.u32 %v3018, 30
        %v3020 = vsub.s32 %v3016, %v3019
        %vm3021 = vcmp.lt.s32.totalorder %v3020, 0
        %v3022 = vsub.s32 0, %v3020
        %v3023 = vsel %vm3021, %v3022, %v3020
        %v3024 = vclz %v3023
        %v3025 = vsub.s32 %v3024, 2
        %vm3026 = vcmp.gt.s32.totalorder 0, %v3025
        %v3027 = vsel %vm3026, 0, %v3025
        %v3028 = vsub.s32 32, %v3027
        %v3029 = vshll.u32 %v3020, %v3027
        %v3030 = vshrl.u32 %v3012, %v3028
        %v3031 = vor.u32 %v3029, %v3030
        %v3032 = vsub.s32 4294967266, %v3027
        %v3033 = vadd.s32 %v3032, 127
        %v3034 = vshll.u32 %v3033, 23
        %v3035 = vor.u32 4788187, %v3034
        %v3036 = vand.u32 2147483647, %v3035
        %v3038 = vcvt.s32.f32 %v3031
        %v3039 = vmul.f32 %v3038, %v3036
        %v3040 = vxor.u32 %v3039, 2147483648
        %v3041 = vsel %vm2958, %v3040, %v3039
        %v3042 = vsub.s32 4, %v3018
        %v3043 = vsel %vm2958, %v3042, %v3018
        %v3044 = vsel %vm2957, %v2744, %v3041
        %v3045 = vsel %vm2957, 0, %v3043
        %v3046 = vcosq.f32.pop %v3044
        %v3047 = vsinq.f32.pop %v3044
        %vm3048 = vweird.f32 %v2744
        %v3049 = vand.u32 %v3045, 3
        %vm3050 = vcmp.lt.s32.totalorder %v3049, 2
        %vm3051 = vcmp.eq.s32.totalorder %v3049, 0
        %v3052 = vxor.u32 %v3047, 2147483648
        %v3053 = vsel %vm3051, %v3046, %v3052
        %vm3054 = vcmp.eq.s32.totalorder %v3049, 2
        %v3055 = vxor.u32 %v3046, 2147483648
        %v3056 = vsel %vm3054, %v3055, %v3047
        %v3057 = vsel %vm3050, %v3053, %v3056
        %v3058 = vsel %vm3048, nan, %v3057
        %v3059 = vand.u32 2147483647, %v2745
        %vm3060 = vcmp.le.f32.partialorder %v3059, 0.7853982
        %vm3061 = vcmp.lt.s32.totalorder %v2745, 0
        %v3062 = vand.u32 %v2745, 2139095040
        %v3063 = vshrl.u32 %v3062, 23
        %v3064 = vsub.s32 %v3063, 127
        %v3065 = vand.u32 2147483647, %v2745
        %v3066 = vand.u32 %v3065, 8388607
        %v3067 = vor.u32 %v3066, 8388608
        %v3068 = vsub.s32 0, %v3067
        %v3069 = vadd.s32 %v3064, 1
        %vm3070 = vcmp.gt.s32.totalorder %v3069, 0
        %v3071 = vsel %vm3070, %v3069, 0
        %v3072 = vshrl.u32 %v3071, 5
        %v3073 = vand.u32 %v3071, 31
        %v3074 = vsub.s32 32, %v3073
        %v3075 = vshrl.u32 683565275, %v3074
        %v3076 = vshll.u32 683565275, %v3073
        %v3077 = vshrl.u32 2475754826, %v3074
        %v3078 = vor.u32 %v3076, %v3077
        %v3079 = vshll.u32 2475754826, %v3073
        %v3080 = vshrl.u32 2131351028, %v3074
        %v3081 = vor.u32 %v3079, %v3080
        %v3082 = vshll.u32 2131351028, %v3073
        %v3083 = vshrl.u32 2102212464, %v3074
        %v3084 = vor.u32 %v3082, %v3083
        %v3085 = vshll.u32 2102212464, %v3073
        %v3086 = vshrl.u32 920167782, %v3074
        %v3087 = vor.u32 %v3085, %v3086
        %v3088 = vshll.u32 920167782, %v3073
        %v3089 = vshrl.u32 1326507024, %v3074
        %v3090 = vor.u32 %v3088, %v3089
        %vm3091 = vcmp.lt.s32.totalorder %v3072, 1
        %vm3092 = vcmp.lt.s32.totalorder %v3072, 2
        %vm3093 = vcmp.lt.s32.totalorder %v3072, 3
        %vm3094 = vcmp.lt.s32.totalorder %v3072, 4
        %v3095 = vsel %vm3091, %v3075, %v3078
        %v3096 = vsel %vm3094, %v3084, 2102212464
        %v3097 = vsel %vm3093, %v3081, %v3096
        %v3098 = vsel %vm3092, %v3095, %v3097
        %v3099 = vsel %vm3091, %v3078, %v3081
        %v3100 = vsel %vm3094, %v3087, 920167782
        %v3101 = vsel %vm3093, %v3084, %v3100
        %v3102 = vsel %vm3092, %v3099, %v3101
        %v3103 = vsel %vm3091, %v3081, %v3084
        %v3104 = vsel %vm3094, %v3090, 1326507024
        %v3105 = vsel %vm3093, %v3087, %v3104
        %v3106 = vsel %vm3092, %v3103, %v3105
        %v3107 = vshll.u32 %v3067, 8
        %v3108 = vmul.u32.u64.compose %v3107, %v3106
        %v3109 = vextract.low.u32 %v3108
        %v3110 = vextract.high.u32 %v3108
        %v3111 = vmul.u32.u64.compose %v3107, %v3102
        %v3112 = vextract.low.u32 %v3111
        %v3113 = vextract.high.u32 %v3111
        %v3114 = vmul.u32 %v3107, %v3098
        %v3115 = vadd.s32 %v3110, %v3112
        %vm3116 = vc.u32 %v3110, %v3112
        %v3117 = vadd.s32 %v3113, 1
        %v3118 = vsel %vm3116, %v3117, %v3113
        %v3119 = vadd.s32 %v3114, %v3118
        %v3120 = vadd.s32 %v3119, 536870912
        %v3121 = vshrl.u32 %v3120, 30
        %v3122 = vshll.u32 %v3121, 30
        %v3123 = vsub.s32 %v3119, %v3122
        %vm3124 = vcmp.lt.s32.totalorder %v3123, 0
        %v3125 = vsub.s32 0, %v3123
        %v3126 = vsel %vm3124, %v3125, %v3123
        %v3127 = vclz %v3126
        %v3128 = vsub.s32 %v3127, 2
        %vm3129 = vcmp.gt.s32.totalorder 0, %v3128
        %v3130 = vsel %vm3129, 0, %v3128
        %v3131 = vsub.s32 32, %v3130
        %v3132 = vshll.u32 %v3123, %v3130
        %v3133 = vshrl.u32 %v3115, %v3131
        %v3134 = vor.u32 %v3132, %v3133
        %v3135 = vsub.s32 4294967266, %v3130
        %v3136 = vadd.s32 %v3135, 127
        %v3137 = vshll.u32 %v3136, 23
        %v3138 = vor.u32 4788187, %v3137
        %v3139 = vand.u32 2147483647, %v3138
        %v3141 = vcvt.s32.f32 %v3134
        %v3142 = vmul.f32 %v3141, %v3139
        %v3143 = vxor.u32 %v3142, 2147483648
        %v3144 = vsel %vm3061, %v3143, %v3142
        %v3145 = vsub.s32 4, %v3121
        %v3146 = vsel %vm3061, %v3145, %v3121
        %v3147 = vsel %vm3060, %v2745, %v3144
        %v3148 = vsel %vm3060, 0, %v3146
        %v3149 = vcosq.f32.pop %v3147
        %v3150 = vsinq.f32.pop %v3147
        %vm3151 = vweird.f32 %v2745
        %v3152 = vand.u32 %v3148, 3
        %vm3153 = vcmp.lt.s32.totalorder %v3152, 2
        %vm3154 = vcmp.eq.s32.totalorder %v3152, 0
        %v3155 = vxor.u32 %v3150, 2147483648
        %v3156 = vsel %vm3154, %v3149, %v3155
        %vm3157 = vcmp.eq.s32.totalorder %v3152, 2
        %v3158 = vxor.u32 %v3149, 2147483648
        %v3159 = vsel %vm3157, %v3158, %v3150
        %v3160 = vsel %vm3153, %v3156, %v3159
        %v3161 = vsel %vm3151, nan, %v3160
        %3162 = vst [vmem:[%s159 + $0xe0] sm:$0xff] %v3058
        %3163 = vst [vmem:[%s159 + $0xe8] sm:$0xff] %v3161
        %v3164 = vld [vmem:[%s1 + $0x38] sm:$0xff]
        %3166 = vset.pattern.permute.xlu0 0
        %3167 = vperm.xlu0 %3166, %v3164
        %v3168 = vpop.permute.xlu0 %3167
        %v3170 = vmul.f32 %v176, %v3168
        %v3171 = vmul.f32 %v180, %v3168
        %v3172 = vand.u32 2147483647, %v3170
        %vm3173 = vcmp.le.f32.partialorder %v3172, 0.7853982
        %vm3174 = vcmp.lt.s32.totalorder %v3170, 0
        %v3175 = vand.u32 %v3170, 2139095040
        %v3176 = vshrl.u32 %v3175, 23
        %v3177 = vsub.s32 %v3176, 127
        %v3178 = vand.u32 2147483647, %v3170
        %v3179 = vand.u32 %v3178, 8388607
        %v3180 = vor.u32 %v3179, 8388608
        %v3181 = vsub.s32 0, %v3180
        %v3182 = vadd.s32 %v3177, 1
        %vm3183 = vcmp.gt.s32.totalorder %v3182, 0
        %v3184 = vsel %vm3183, %v3182, 0
        %v3185 = vshrl.u32 %v3184, 5
        %v3186 = vand.u32 %v3184, 31
        %v3187 = vsub.s32 32, %v3186
        %v3188 = vshrl.u32 683565275, %v3187
        %v3189 = vshll.u32 683565275, %v3186
        %v3190 = vshrl.u32 2475754826, %v3187
        %v3191 = vor.u32 %v3189, %v3190
        %v3192 = vshll.u32 2475754826, %v3186
        %v3193 = vshrl.u32 2131351028, %v3187
        %v3194 = vor.u32 %v3192, %v3193
        %v3195 = vshll.u32 2131351028, %v3186
        %v3196 = vshrl.u32 2102212464, %v3187
        %v3197 = vor.u32 %v3195, %v3196
        %v3198 = vshll.u32 2102212464, %v3186
        %v3199 = vshrl.u32 920167782, %v3187
        %v3200 = vor.u32 %v3198, %v3199
        %v3201 = vshll.u32 920167782, %v3186
        %v3202 = vshrl.u32 1326507024, %v3187
        %v3203 = vor.u32 %v3201, %v3202
        %vm3204 = vcmp.lt.s32.totalorder %v3185, 1
        %vm3205 = vcmp.lt.s32.totalorder %v3185, 2
        %vm3206 = vcmp.lt.s32.totalorder %v3185, 3
        %vm3207 = vcmp.lt.s32.totalorder %v3185, 4
        %v3208 = vsel %vm3204, %v3188, %v3191
        %v3209 = vsel %vm3207, %v3197, 2102212464
        %v3210 = vsel %vm3206, %v3194, %v3209
        %v3211 = vsel %vm3205, %v3208, %v3210
        %v3212 = vsel %vm3204, %v3191, %v3194
        %v3213 = vsel %vm3207, %v3200, 920167782
        %v3214 = vsel %vm3206, %v3197, %v3213
        %v3215 = vsel %vm3205, %v3212, %v3214
        %v3216 = vsel %vm3204, %v3194, %v3197
        %v3217 = vsel %vm3207, %v3203, 1326507024
        %v3218 = vsel %vm3206, %v3200, %v3217
        %v3219 = vsel %vm3205, %v3216, %v3218
        %v3220 = vshll.u32 %v3180, 8
        %v3221 = vmul.u32.u64.compose %v3220, %v3219
        %v3222 = vextract.low.u32 %v3221
        %v3223 = vextract.high.u32 %v3221
        %v3224 = vmul.u32.u64.compose %v3220, %v3215
        %v3225 = vextract.low.u32 %v3224
        %v3226 = vextract.high.u32 %v3224
        %v3227 = vmul.u32 %v3220, %v3211
        %v3228 = vadd.s32 %v3223, %v3225
        %vm3229 = vc.u32 %v3223, %v3225
        %v3230 = vadd.s32 %v3226, 1
        %v3231 = vsel %vm3229, %v3230, %v3226
        %v3232 = vadd.s32 %v3227, %v3231
        %v3233 = vadd.s32 %v3232, 536870912
        %v3234 = vshrl.u32 %v3233, 30
        %v3235 = vshll.u32 %v3234, 30
        %v3236 = vsub.s32 %v3232, %v3235
        %vm3237 = vcmp.lt.s32.totalorder %v3236, 0
        %v3238 = vsub.s32 0, %v3236
        %v3239 = vsel %vm3237, %v3238, %v3236
        %v3240 = vclz %v3239
        %v3241 = vsub.s32 %v3240, 2
        %vm3242 = vcmp.gt.s32.totalorder 0, %v3241
        %v3243 = vsel %vm3242, 0, %v3241
        %v3244 = vsub.s32 32, %v3243
        %v3245 = vshll.u32 %v3236, %v3243
        %v3246 = vshrl.u32 %v3228, %v3244
        %v3247 = vor.u32 %v3245, %v3246
        %v3248 = vsub.s32 4294967266, %v3243
        %v3249 = vadd.s32 %v3248, 127
        %v3250 = vshll.u32 %v3249, 23
        %v3251 = vor.u32 4788187, %v3250
        %v3252 = vand.u32 2147483647, %v3251
        %v3254 = vcvt.s32.f32 %v3247
        %v3255 = vmul.f32 %v3254, %v3252
        %v3256 = vxor.u32 %v3255, 2147483648
        %v3257 = vsel %vm3174, %v3256, %v3255
        %v3258 = vsub.s32 4, %v3234
        %v3259 = vsel %vm3174, %v3258, %v3234
        %v3260 = vsel %vm3173, %v3170, %v3257
        %v3261 = vsel %vm3173, 0, %v3259
        %v3262 = vcosq.f32.pop %v3260
        %v3263 = vsinq.f32.pop %v3260
        %vm3264 = vweird.f32 %v3170
        %v3265 = vadd.s32 %v3261, 3
        %v3266 = vand.u32 %v3265, 3
        %vm3267 = vcmp.lt.s32.totalorder %v3266, 2
        %vm3268 = vcmp.eq.s32.totalorder %v3266, 0
        %v3269 = vxor.u32 %v3263, 2147483648
        %v3270 = vsel %vm3268, %v3262, %v3269
        %vm3271 = vcmp.eq.s32.totalorder %v3266, 2
        %v3272 = vxor.u32 %v3262, 2147483648
        %v3273 = vsel %vm3271, %v3272, %v3263
        %v3274 = vsel %vm3267, %v3270, %v3273
        %v3275 = vsel %vm3264, nan, %v3274
        %v3276 = vand.u32 2147483647, %v3171
        %vm3277 = vcmp.le.f32.partialorder %v3276, 0.7853982
        %vm3278 = vcmp.lt.s32.totalorder %v3171, 0
        %v3279 = vand.u32 %v3171, 2139095040
        %v3280 = vshrl.u32 %v3279, 23
        %v3281 = vsub.s32 %v3280, 127
        %v3282 = vand.u32 2147483647, %v3171
        %v3283 = vand.u32 %v3282, 8388607
        %v3284 = vor.u32 %v3283, 8388608
        %v3285 = vsub.s32 0, %v3284
        %v3286 = vadd.s32 %v3281, 1
        %vm3287 = vcmp.gt.s32.totalorder %v3286, 0
        %v3288 = vsel %vm3287, %v3286, 0
        %v3289 = vshrl.u32 %v3288, 5
        %v3290 = vand.u32 %v3288, 31
        %v3291 = vsub.s32 32, %v3290
        %v3292 = vshrl.u32 683565275, %v3291
        %v3293 = vshll.u32 683565275, %v3290
        %v3294 = vshrl.u32 2475754826, %v3291
        %v3295 = vor.u32 %v3293, %v3294
        %v3296 = vshll.u32 2475754826, %v3290
        %v3297 = vshrl.u32 2131351028, %v3291
        %v3298 = vor.u32 %v3296, %v3297
        %v3299 = vshll.u32 2131351028, %v3290
        %v3300 = vshrl.u32 2102212464, %v3291
        %v3301 = vor.u32 %v3299, %v3300
        %v3302 = vshll.u32 2102212464, %v3290
        %v3303 = vshrl.u32 920167782, %v3291
        %v3304 = vor.u32 %v3302, %v3303
        %v3305 = vshll.u32 920167782, %v3290
        %v3306 = vshrl.u32 1326507024, %v3291
        %v3307 = vor.u32 %v3305, %v3306
        %vm3308 = vcmp.lt.s32.totalorder %v3289, 1
        %vm3309 = vcmp.lt.s32.totalorder %v3289, 2
        %vm3310 = vcmp.lt.s32.totalorder %v3289, 3
        %vm3311 = vcmp.lt.s32.totalorder %v3289, 4
        %v3312 = vsel %vm3308, %v3292, %v3295
        %v3313 = vsel %vm3311, %v3301, 2102212464
        %v3314 = vsel %vm3310, %v3298, %v3313
        %v3315 = vsel %vm3309, %v3312, %v3314
        %v3316 = vsel %vm3308, %v3295, %v3298
        %v3317 = vsel %vm3311, %v3304, 920167782
        %v3318 = vsel %vm3310, %v3301, %v3317
        %v3319 = vsel %vm3309, %v3316, %v3318
        %v3320 = vsel %vm3308, %v3298, %v3301
        %v3321 = vsel %vm3311, %v3307, 1326507024
        %v3322 = vsel %vm3310, %v3304, %v3321
        %v3323 = vsel %vm3309, %v3320, %v3322
        %v3324 = vshll.u32 %v3284, 8
        %v3325 = vmul.u32.u64.compose %v3324, %v3323
        %v3326 = vextract.low.u32 %v3325
        %v3327 = vextract.high.u32 %v3325
        %v3328 = vmul.u32.u64.compose %v3324, %v3319
        %v3329 = vextract.low.u32 %v3328
        %v3330 = vextract.high.u32 %v3328
        %v3331 = vmul.u32 %v3324, %v3315
        %v3332 = vadd.s32 %v3327, %v3329
        %vm3333 = vc.u32 %v3327, %v3329
        %v3334 = vadd.s32 %v3330, 1
        %v3335 = vsel %vm3333, %v3334, %v3330
        %v3336 = vadd.s32 %v3331, %v3335
        %v3337 = vadd.s32 %v3336, 536870912
        %v3338 = vshrl.u32 %v3337, 30
        %v3339 = vshll.u32 %v3338, 30
        %v3340 = vsub.s32 %v3336, %v3339
        %vm3341 = vcmp.lt.s32.totalorder %v3340, 0
        %v3342 = vsub.s32 0, %v3340
        %v3343 = vsel %vm3341, %v3342, %v3340
        %v3344 = vclz %v3343
        %v3345 = vsub.s32 %v3344, 2
        %vm3346 = vcmp.gt.s32.totalorder 0, %v3345
        %v3347 = vsel %vm3346, 0, %v3345
        %v3348 = vsub.s32 32, %v3347
        %v3349 = vshll.u32 %v3340, %v3347
        %v3350 = vshrl.u32 %v3332, %v3348
        %v3351 = vor.u32 %v3349, %v3350
        %v3352 = vsub.s32 4294967266, %v3347
        %v3353 = vadd.s32 %v3352, 127
        %v3354 = vshll.u32 %v3353, 23
        %v3355 = vor.u32 4788187, %v3354
        %v3356 = vand.u32 2147483647, %v3355
        %v3358 = vcvt.s32.f32 %v3351
        %v3359 = vmul.f32 %v3358, %v3356
        %v3360 = vxor.u32 %v3359, 2147483648
        %v3361 = vsel %vm3278, %v3360, %v3359
        %v3362 = vsub.s32 4, %v3338
        %v3363 = vsel %vm3278, %v3362, %v3338
        %v3364 = vsel %vm3277, %v3171, %v3361
        %v3365 = vsel %vm3277, 0, %v3363
        %v3366 = vcosq.f32.pop %v3364
        %v3367 = vsinq.f32.pop %v3364
        %vm3368 = vweird.f32 %v3171
        %v3369 = vadd.s32 %v3365, 3
        %v3370 = vand.u32 %v3369, 3
        %vm3371 = vcmp.lt.s32.totalorder %v3370, 2
        %vm3372 = vcmp.eq.s32.totalorder %v3370, 0
        %v3373 = vxor.u32 %v3367, 2147483648
        %v3374 = vsel %vm3372, %v3366, %v3373
        %vm3375 = vcmp.eq.s32.totalorder %v3370, 2
        %v3376 = vxor.u32 %v3366, 2147483648
        %v3377 = vsel %vm3375, %v3376, %v3367
        %v3378 = vsel %vm3371, %v3374, %v3377
        %v3379 = vsel %vm3368, nan, %v3378
        %3380 = vst [vmem:[%s159 + $0x70] sm:$0xff] %v3275
        %3381 = vst [vmem:[%s159 + $0x78] sm:$0xff] %v3379
        %v3382 = vand.u32 2147483647, %v3170
        %vm3383 = vcmp.le.f32.partialorder %v3382, 0.7853982
        %vm3384 = vcmp.lt.s32.totalorder %v3170, 0
        %v3385 = vand.u32 %v3170, 2139095040
        %v3386 = vshrl.u32 %v3385, 23
        %v3387 = vsub.s32 %v3386, 127
        %v3388 = vand.u32 2147483647, %v3170
        %v3389 = vand.u32 %v3388, 8388607
        %v3390 = vor.u32 %v3389, 8388608
        %v3391 = vsub.s32 0, %v3390
        %v3392 = vadd.s32 %v3387, 1
        %vm3393 = vcmp.gt.s32.totalorder %v3392, 0
        %v3394 = vsel %vm3393, %v3392, 0
        %v3395 = vshrl.u32 %v3394, 5
        %v3396 = vand.u32 %v3394, 31
        %v3397 = vsub.s32 32, %v3396
        %v3398 = vshrl.u32 683565275, %v3397
        %v3399 = vshll.u32 683565275, %v3396
        %v3400 = vshrl.u32 2475754826, %v3397
        %v3401 = vor.u32 %v3399, %v3400
        %v3402 = vshll.u32 2475754826, %v3396
        %v3403 = vshrl.u32 2131351028, %v3397
        %v3404 = vor.u32 %v3402, %v3403
        %v3405 = vshll.u32 2131351028, %v3396
        %v3406 = vshrl.u32 2102212464, %v3397
        %v3407 = vor.u32 %v3405, %v3406
        %v3408 = vshll.u32 2102212464, %v3396
        %v3409 = vshrl.u32 920167782, %v3397
        %v3410 = vor.u32 %v3408, %v3409
        %v3411 = vshll.u32 920167782, %v3396
        %v3412 = vshrl.u32 1326507024, %v3397
        %v3413 = vor.u32 %v3411, %v3412
        %vm3414 = vcmp.lt.s32.totalorder %v3395, 1
        %vm3415 = vcmp.lt.s32.totalorder %v3395, 2
        %vm3416 = vcmp.lt.s32.totalorder %v3395, 3
        %vm3417 = vcmp.lt.s32.totalorder %v3395, 4
        %v3418 = vsel %vm3414, %v3398, %v3401
        %v3419 = vsel %vm3417, %v3407, 2102212464
        %v3420 = vsel %vm3416, %v3404, %v3419
        %v3421 = vsel %vm3415, %v3418, %v3420
        %v3422 = vsel %vm3414, %v3401, %v3404
        %v3423 = vsel %vm3417, %v3410, 920167782
        %v3424 = vsel %vm3416, %v3407, %v3423
        %v3425 = vsel %vm3415, %v3422, %v3424
        %v3426 = vsel %vm3414, %v3404, %v3407
        %v3427 = vsel %vm3417, %v3413, 1326507024
        %v3428 = vsel %vm3416, %v3410, %v3427
        %v3429 = vsel %vm3415, %v3426, %v3428
        %v3430 = vshll.u32 %v3390, 8
        %v3431 = vmul.u32.u64.compose %v3430, %v3429
        %v3432 = vextract.low.u32 %v3431
        %v3433 = vextract.high.u32 %v3431
        %v3434 = vmul.u32.u64.compose %v3430, %v3425
        %v3435 = vextract.low.u32 %v3434
        %v3436 = vextract.high.u32 %v3434
        %v3437 = vmul.u32 %v3430, %v3421
        %v3438 = vadd.s32 %v3433, %v3435
        %vm3439 = vc.u32 %v3433, %v3435
        %v3440 = vadd.s32 %v3436, 1
        %v3441 = vsel %vm3439, %v3440, %v3436
        %v3442 = vadd.s32 %v3437, %v3441
        %v3443 = vadd.s32 %v3442, 536870912
        %v3444 = vshrl.u32 %v3443, 30
        %v3445 = vshll.u32 %v3444, 30
        %v3446 = vsub.s32 %v3442, %v3445
        %vm3447 = vcmp.lt.s32.totalorder %v3446, 0
        %v3448 = vsub.s32 0, %v3446
        %v3449 = vsel %vm3447, %v3448, %v3446
        %v3450 = vclz %v3449
        %v3451 = vsub.s32 %v3450, 2
        %vm3452 = vcmp.gt.s32.totalorder 0, %v3451
        %v3453 = vsel %vm3452, 0, %v3451
        %v3454 = vsub.s32 32, %v3453
        %v3455 = vshll.u32 %v3446, %v3453
        %v3456 = vshrl.u32 %v3438, %v3454
        %v3457 = vor.u32 %v3455, %v3456
        %v3458 = vsub.s32 4294967266, %v3453
        %v3459 = vadd.s32 %v3458, 127
        %v3460 = vshll.u32 %v3459, 23
        %v3461 = vor.u32 4788187, %v3460
        %v3462 = vand.u32 2147483647, %v3461
        %v3464 = vcvt.s32.f32 %v3457
        %v3465 = vmul.f32 %v3464, %v3462
        %v3466 = vxor.u32 %v3465, 2147483648
        %v3467 = vsel %vm3384, %v3466, %v3465
        %v3468 = vsub.s32 4, %v3444
        %v3469 = vsel %vm3384, %v3468, %v3444
        %v3470 = vsel %vm3383, %v3170, %v3467
        %v3471 = vsel %vm3383, 0, %v3469
        %v3472 = vcosq.f32.pop %v3470
        %v3473 = vsinq.f32.pop %v3470
        %vm3474 = vweird.f32 %v3170
        %v3475 = vand.u32 %v3471, 3
        %vm3476 = vcmp.lt.s32.totalorder %v3475, 2
        %vm3477 = vcmp.eq.s32.totalorder %v3475, 0
        %v3478 = vxor.u32 %v3473, 2147483648
        %v3479 = vsel %vm3477, %v3472, %v3478
        %vm3480 = vcmp.eq.s32.totalorder %v3475, 2
        %v3481 = vxor.u32 %v3472, 2147483648
        %v3482 = vsel %vm3480, %v3481, %v3473
        %v3483 = vsel %vm3476, %v3479, %v3482
        %v3484 = vsel %vm3474, nan, %v3483
        %v3485 = vand.u32 2147483647, %v3171
        %vm3486 = vcmp.le.f32.partialorder %v3485, 0.7853982
        %vm3487 = vcmp.lt.s32.totalorder %v3171, 0
        %v3488 = vand.u32 %v3171, 2139095040
        %v3489 = vshrl.u32 %v3488, 23
        %v3490 = vsub.s32 %v3489, 127
        %v3491 = vand.u32 2147483647, %v3171
        %v3492 = vand.u32 %v3491, 8388607
        %v3493 = vor.u32 %v3492, 8388608
        %v3494 = vsub.s32 0, %v3493
        %v3495 = vadd.s32 %v3490, 1
        %vm3496 = vcmp.gt.s32.totalorder %v3495, 0
        %v3497 = vsel %vm3496, %v3495, 0
        %v3498 = vshrl.u32 %v3497, 5
        %v3499 = vand.u32 %v3497, 31
        %v3500 = vsub.s32 32, %v3499
        %v3501 = vshrl.u32 683565275, %v3500
        %v3502 = vshll.u32 683565275, %v3499
        %v3503 = vshrl.u32 2475754826, %v3500
        %v3504 = vor.u32 %v3502, %v3503
        %v3505 = vshll.u32 2475754826, %v3499
        %v3506 = vshrl.u32 2131351028, %v3500
        %v3507 = vor.u32 %v3505, %v3506
        %v3508 = vshll.u32 2131351028, %v3499
        %v3509 = vshrl.u32 2102212464, %v3500
        %v3510 = vor.u32 %v3508, %v3509
        %v3511 = vshll.u32 2102212464, %v3499
        %v3512 = vshrl.u32 920167782, %v3500
        %v3513 = vor.u32 %v3511, %v3512
        %v3514 = vshll.u32 920167782, %v3499
        %v3515 = vshrl.u32 1326507024, %v3500
        %v3516 = vor.u32 %v3514, %v3515
        %vm3517 = vcmp.lt.s32.totalorder %v3498, 1
        %vm3518 = vcmp.lt.s32.totalorder %v3498, 2
        %vm3519 = vcmp.lt.s32.totalorder %v3498, 3
        %vm3520 = vcmp.lt.s32.totalorder %v3498, 4
        %v3521 = vsel %vm3517, %v3501, %v3504
        %v3522 = vsel %vm3520, %v3510, 2102212464
        %v3523 = vsel %vm3519, %v3507, %v3522
        %v3524 = vsel %vm3518, %v3521, %v3523
        %v3525 = vsel %vm3517, %v3504, %v3507
        %v3526 = vsel %vm3520, %v3513, 920167782
        %v3527 = vsel %vm3519, %v3510, %v3526
        %v3528 = vsel %vm3518, %v3525, %v3527
        %v3529 = vsel %vm3517, %v3507, %v3510
        %v3530 = vsel %vm3520, %v3516, 1326507024
        %v3531 = vsel %vm3519, %v3513, %v3530
        %v3532 = vsel %vm3518, %v3529, %v3531
        %v3533 = vshll.u32 %v3493, 8
        %v3534 = vmul.u32.u64.compose %v3533, %v3532
        %v3535 = vextract.low.u32 %v3534
        %v3536 = vextract.high.u32 %v3534
        %v3537 = vmul.u32.u64.compose %v3533, %v3528
        %v3538 = vextract.low.u32 %v3537
        %v3539 = vextract.high.u32 %v3537
        %v3540 = vmul.u32 %v3533, %v3524
        %v3541 = vadd.s32 %v3536, %v3538
        %vm3542 = vc.u32 %v3536, %v3538
        %v3543 = vadd.s32 %v3539, 1
        %v3544 = vsel %vm3542, %v3543, %v3539
        %v3545 = vadd.s32 %v3540, %v3544
        %v3546 = vadd.s32 %v3545, 536870912
        %v3547 = vshrl.u32 %v3546, 30
        %v3548 = vshll.u32 %v3547, 30
        %v3549 = vsub.s32 %v3545, %v3548
        %vm3550 = vcmp.lt.s32.totalorder %v3549, 0
        %v3551 = vsub.s32 0, %v3549
        %v3552 = vsel %vm3550, %v3551, %v3549
        %v3553 = vclz %v3552
        %v3554 = vsub.s32 %v3553, 2
        %vm3555 = vcmp.gt.s32.totalorder 0, %v3554
        %v3556 = vsel %vm3555, 0, %v3554
        %v3557 = vsub.s32 32, %v3556
        %v3558 = vshll.u32 %v3549, %v3556
        %v3559 = vshrl.u32 %v3541, %v3557
        %v3560 = vor.u32 %v3558, %v3559
        %v3561 = vsub.s32 4294967266, %v3556
        %v3562 = vadd.s32 %v3561, 127
        %v3563 = vshll.u32 %v3562, 23
        %v3564 = vor.u32 4788187, %v3563
        %v3565 = vand.u32 2147483647, %v3564
        %v3567 = vcvt.s32.f32 %v3560
        %v3568 = vmul.f32 %v3567, %v3565
        %v3569 = vxor.u32 %v3568, 2147483648
        %v3570 = vsel %vm3487, %v3569, %v3568
        %v3571 = vsub.s32 4, %v3547
        %v3572 = vsel %vm3487, %v3571, %v3547
        %v3573 = vsel %vm3486, %v3171, %v3570
        %v3574 = vsel %vm3486, 0, %v3572
        %v3575 = vcosq.f32.pop %v3573
        %v3576 = vsinq.f32.pop %v3573
        %vm3577 = vweird.f32 %v3171
        %v3578 = vand.u32 %v3574, 3
        %vm3579 = vcmp.lt.s32.totalorder %v3578, 2
        %vm3580 = vcmp.eq.s32.totalorder %v3578, 0
        %v3581 = vxor.u32 %v3576, 2147483648
        %v3582 = vsel %vm3580, %v3575, %v3581
        %vm3583 = vcmp.eq.s32.totalorder %v3578, 2
        %v3584 = vxor.u32 %v3575, 2147483648
        %v3585 = vsel %vm3583, %v3584, %v3576
        %v3586 = vsel %vm3579, %v3582, %v3585
        %v3587 = vsel %vm3577, nan, %v3586
        %3588 = vst [vmem:[%s159 + $0xf0] sm:$0xff] %v3484
        %3589 = vst [vmem:[%s159 + $0xf8] sm:$0xff] %v3587
        %s3590 = sand.u32 %s87, 1
        %s3591 = scalar_lea.sflag [#allocation3], %s3590
        %s3592 = sand.u32 %s87, 1
        %s3593 = smul.addr %s3592, 256
        %s3594 = scalar_lea.vmem [#allocation2], %s3593
        // Predicated region
        $region29: #{tpu_custom_call.1} parent=27 // pred_check
          %p3595 = pneg %p97
        $region30: #{tpu_custom_call.1} parent=27 // pred_check_branch
          %3597 = sbr.rel (%p3595) target = $region32
        $region31: #{tpu_custom_call.1} parent=27 // pred_region
          %s3598 = smul.u32 2, %s21
          %s3600 = ssub.s32 4096, 4096
          %3601 = vsyncadd %s3591, %s3600
          %s3602 = smul.addr %s20, 32
          %s3603 = sadd.s32 %s3598, %s3602
          %s3604 = smul.addr %s3603, 128
          %s3605 = scalar_lea.hbm %s2, %s3604
          %s3606 = sshll.u32 %s3594, 4
          %s3607 = int_to_ptr.vmem [resolvable:$true] %s3606
          %3612 = dma.vmem_to_hbm [thread:$0]  %s3607, 4096, %s3605, %s3591, 256, 256, 16
        $region32: #{tpu_custom_call.1} parent=27 // pred_fallthru
          _
      $region28: #{tpu_custom_call.1} parent=5 // pred_fallthru
        _
      %p3613 = scmp.le.s32.totalorder 2, %s11
      // Predicated region
      $region33: #{tpu_custom_call.1} parent=5 // pred_check
        %p3614 = pneg %p3613
      $region34: #{tpu_custom_call.1} parent=5 // pred_check_branch
        %3616 = sbr.rel (%p3614) target = $region36
      $region35: #{tpu_custom_call.1} parent=5 // pred_region
        %s3617 = ssub.s32 %s11, 2
        // Predicated region
        $region37: #{tpu_custom_call.1} parent=35 // pred_check
          %p3618 = pneg %p103
        $region38: #{tpu_custom_call.1} parent=35 // pred_check_branch
          %3620 = sbr.rel (%p3618) target = $region40
        $region39: #{tpu_custom_call.1} parent=35 // pred_region
          %s3621 = sand.u32 %s88, 1
          %s3622 = scalar_lea.sflag [#allocation3], %s3621
          %s3623 = sand.u32 %s88, 1
          %s3624 = smul.addr %s3623, 256
          %s3625 = scalar_lea.vmem [#allocation2], %s3624
          %3626 = dma.done %s3622, 4096
        $region40: #{tpu_custom_call.1} parent=35 // pred_fallthru
          _
      $region36: #{tpu_custom_call.1} parent=5 // pred_fallthru
        _
    $region6: #{tpu_custom_call.1} parent=1 // loop_footer
      %s15 = sadd.s32 1, %s11
    $region7: #{tpu_custom_call.1} parent=1 // loop_footer_branch
      %10 = sbr.rel target = $region3
    $region8: #{tpu_custom_call.1} parent=1 // loop_exit
      _
    %3627 = vsyncpa [#allocation3], 1
    %s3628 = scalar_lea.sflag [#allocation3], 1
    %3629 = vsyncpa %s3628, 1

</llo_original>
